<compile_context>
chip_gen: v7x
topology: tpu7x:2x2x1
jax: 0.10.0
libtpu: 0.0.40
codegen_flags: <defaults>
</compile_context>

<pallas_src>
import jax
import jax.numpy as jnp
import numpy as np
from jax import lax
from jax.experimental import pallas as pl
from jax.experimental.pallas import tpu as pltpu

N_FEATURES = 3
C_IN = N_FEATURES + 2      # 5 input channels
C0 = 128                   # conv0 output channels
C1 = 256                   # conv1 output channels
K = 17                     # kernel size of conv0/conv1
PAD = 8                    # padding of conv0/conv1
LRELU = 0.2                # LeakyReLU negative slope
CIN_UNF = 128              # K*C_IN (=85) zero-padded up to a full lane tile
OUT_LANES = 128            # lane-dense kernel output row width
HALO = 16                  # bf16-tile-aligned placement offset of h0 in h0p
GA = 9                     # conv1 tap-group A size (taps 0..8)
GB = K - GA                # conv1 tap-group B size (taps 9..16)
MXU_ROWS = 256             # target M rows per conv1 matmul (v6e/v7x MXU depth)
MAX_PACK = 8               # cap on batches packed per grid step


def _leaky(v):
    return jnp.where(v > 0, v, LRELU * v)


def disc_kernel(x_ref, w0_ref, b0_ref, w1_ref, b1_ref, wf_ref, bf_ref,
                out_ref, h0p_ref, slab_a_ref, slab_b_ref):
    # x_ref:      (BT, L, CIN_UNF) bf16  -- im2col'ed conv0 input, BT batches
    # w0_ref:     (CIN_UNF, C0) bf16        b0_ref: (1, C0) f32
    # w1_ref:     (K*C0, C1)   bf16         b1_ref: (1, C1) f32
    # wf_ref:     (1, C1)      f32          bf_ref: (1,) f32 in SMEM
    # out_ref:    (BT, 1, OUT_LANES) f32 (scalar broadcast across lanes)
    # h0p_ref:    (BT, L+2*HALO, C0) bf16 scratch (zero-padded conv0 output)
    # slab_a_ref: (BT*L, GA*C0) bf16 scratch (conv1 im2col, taps 0..GA-1)
    # slab_b_ref: (BT*L, GB*C0) bf16 scratch (conv1 im2col, taps GA..K-1)
    BT = x_ref.shape[0]
    L = x_ref.shape[1]
    inv_l = 1.0 / L
    zpad = jnp.zeros((HALO, C0), jnp.bfloat16)

    # ---- conv0: one 128-deep bf16 MXU matmul per packed batch + LeakyReLU ---
    # h0 is cast to bf16 exactly once; the 16-row offset keeps every store
    # aligned to the bf16 sublane tile (L % 16 == 0 enforced by the wrapper).
    for b in range(BT):
        h0 = _leaky(jnp.dot(x_ref[b], w0_ref[...],
                            preferred_element_type=jnp.float32) + b0_ref[...])
        h0p_ref[b, 0:HALO, :] = zpad
        h0p_ref[b, HALO + L:HALO + L + HALO, :] = zpad
        h0p_ref[b, HALO:HALO + L, :] = h0.astype(jnp.bfloat16)

    # ---- conv1: im2col slabs built from *ref slices* of the padded scratch -
    # Tap k of output row i reads padded-h0 row (HALO - PAD) + i + k.
    base = HALO - PAD
    for k in range(GA):                                  # static unroll
        for b in range(BT):
            slab_a_ref[b * L:(b + 1) * L, k * C0:(k + 1) * C0] = \
                h0p_ref[b, base + k:base + k + L, :]
    h1 = jnp.dot(slab_a_ref[...], w1_ref[0:GA * C0, :],
                 preferred_element_type=jnp.float32)

    for k in range(GB):                                  # static unroll
        kk = GA + k
        for b in range(BT):
            slab_b_ref[b * L:(b + 1) * L, k * C0:(k + 1) * C0] = \
                h0p_ref[b, base + kk:base + kk + L, :]
    h1 = h1 + jnp.dot(slab_b_ref[...], w1_ref[GA * C0:K * C0, :],
                      preferred_element_type=jnp.float32)
    h1 = _leaky(h1 + b1_ref[...])                        # (BT*L, C1) f32

    # ---- convf (1x1) fused with the mean over the sequence (linearity) ------
    for b in range(BT):
        cs = jnp.sum(h1[b * L:(b + 1) * L, :], axis=0, keepdims=True)  # (1,C1)
        r = jnp.sum(cs * wf_ref[...], axis=1, keepdims=True) * inv_l
        r = r + bf_ref[0]                                # (1, 1)
        out_ref[b] = jnp.broadcast_to(r, (1, OUT_LANES))


def _disc_forward_impl(x_bcl, params):
    """x_bcl: (B, C_IN, L) float32 (PyTorch NCW). Returns (B, 1) float32."""
    B, C, L = x_bcl.shape
    assert C == C_IN
    assert L % 16 == 0, "sequence length must be a multiple of 16"
    w0, b0, w1, b1, wf, bf = params

    # Pack several batches per grid step when L is small so the conv1 matmul
    # fills the MXU M dimension and the per-step overhead amortizes.
    BT = int(min(B, max(1, MXU_ROWS // L), MAX_PACK))
    Bp = ((B + BT - 1) // BT) * BT

    # channels-last + zero pad + im2col for conv0 (tiny input; fused by jit)
    x_blc = jnp.transpose(x_bcl, (0, 2, 1)).astype(jnp.float32)     # (B, L, C)
    if Bp != B:
        x_blc = jnp.pad(x_blc, ((0, Bp - B), (0, 0), (0, 0)))
    x_pad = jnp.pad(x_blc, ((0, 0), (PAD, PAD), (0, 0)))            # (Bp,Lp,C)
    x_unf = jnp.concatenate([x_pad[:, k:k + L, :] for k in range(K)],
                            axis=-1)                                # (Bp,L,85)
    x_unf = jnp.pad(x_unf, ((0, 0), (0, 0), (0, CIN_UNF - K * C_IN)))
    x_unf = x_unf.astype(jnp.bfloat16)                              # (Bp,L,128)

    w0_flat = jnp.pad(w0.reshape(K * C_IN, C0),
                      ((0, CIN_UNF - K * C_IN), (0, 0)))
    w0_flat = w0_flat.astype(jnp.bfloat16)                          # (128, 128)
    w1_flat = w1.reshape(K * C0, C1).astype(jnp.bfloat16)           # (2176,256)
    wf_row = wf.reshape(1, C1).astype(jnp.float32)                  # (1, 256)
    bf_s = bf.reshape(1).astype(jnp.float32)                        # (1,)

    # VMEM budget: double-buffered x block + weights (x2) + scratch + h1 temp.
    est = (2 * BT * L * CIN_UNF * 2
           + 2 * (K * C0 * C1 * 2 + CIN_UNF * C0 * 2 + (C0 + 2 * C1) * 4)
           + BT * (L + 2 * HALO) * C0 * 2
           + BT * L * K * C0 * 2
           + BT * L * C1 * 4
           + (2 << 20))
    vmem_limit = int(min(64 << 20, max(32 << 20, int(1.4 * est))))

    grid_spec = pltpu.PrefetchScalarGridSpec(
        num_scalar_prefetch=0,
        grid=(Bp // BT,),
        in_specs=[
            pl.BlockSpec((BT, L, CIN_UNF), lambda g: (g, 0, 0)),
            pl.BlockSpec((CIN_UNF, C0), lambda g: (0, 0)),
            pl.BlockSpec((1, C0), lambda g: (0, 0)),
            pl.BlockSpec((K * C0, C1), lambda g: (0, 0)),
            pl.BlockSpec((1, C1), lambda g: (0, 0)),
            pl.BlockSpec((1, C1), lambda g: (0, 0)),
            pl.BlockSpec(memory_space=pltpu.MemorySpace.SMEM),
        ],
        out_specs=pl.BlockSpec((BT, 1, OUT_LANES), lambda g: (g, 0, 0)),
        scratch_shapes=[
            pltpu.VMEM((BT, L + 2 * HALO, C0), jnp.bfloat16),
            pltpu.VMEM((BT * L, GA * C0), jnp.bfloat16),
            pltpu.VMEM((BT * L, GB * C0), jnp.bfloat16),
        ],
    )
    out3 = pl.pallas_call(
        disc_kernel,
        out_shape=jax.ShapeDtypeStruct((Bp, 1, OUT_LANES), jnp.float32),
        grid_spec=grid_spec,
        compiler_params=pltpu.CompilerParams(
            dimension_semantics=("parallel",),
            vmem_limit_bytes=vmem_limit),
    )(x_unf, w0_flat, b0.astype(jnp.float32), w1_flat,
      b1.astype(jnp.float32), wf_row, bf_s)
    return out3[:B, 0, :1]                                          # (B, 1)


disc_forward = jax.jit(_disc_forward_impl)


def init_params(key):
    """Deterministic Conv1d-style init (uniform +/- 1/sqrt(fan_in))."""
    ks = jax.random.split(key, 6)

    def conv_init(kw, kb, kernel, cin, cout):
        bound = 1.0 / np.sqrt(cin * kernel)
        w = jax.random.uniform(kw, (kernel, cin, cout), jnp.float32,
                               -bound, bound)
        b = jax.random.uniform(kb, (1, cout), jnp.float32, -bound, bound)
        return w, b

    w0, b0 = conv_init(ks[0], ks[1], K, C_IN, C0)
    w1, b1 = conv_init(ks[2], ks[3], K, C0, C1)
    wf3, bf = conv_init(ks[4], ks[5], 1, C1, 1)
    wf = wf3[0]                       # (C1, 1)
    return w0, b0, w1, b1, wf, bf


def disc_reference(x_bcl, params):
    """Pure-JAX f32 reference with lax.conv (matches PyTorch semantics)."""
    w0, b0, w1, b1, wf, bf = params

    def conv1d(x, w, b, pad):
        wt = jnp.transpose(w, (2, 1, 0))   # (Cout, Cin, K) == torch layout
        y = lax.conv_general_dilated(
            x, wt, window_strides=(1,), padding=[(pad, pad)],
            dimension_numbers=('NCH', 'OIH', 'NCH'))
        return y + b.reshape(1, -1, 1)

    h = _leaky(conv1d(x_bcl, w0, b0, PAD))
    h = _leaky(conv1d(h, w1, b1, PAD))
    h = conv1d(h, wf[None], bf, 0)         # (B, 1, L)
    return jnp.mean(h, axis=2)             # (B, 1)


if __name__ == "__main__":
    key = jax.random.PRNGKey(0)
    kx, kp = jax.random.split(key)
    B, L = 2, 32
    x = jax.random.normal(kx, (B, C_IN, L), jnp.float32)
    params = init_params(kp)

    out = disc_forward(x, params)
    out = jax.block_until_ready(out)

    ref = disc_reference(x, params)
    # conv0/conv1 operands and the h0 activations are bf16 (f32 accumulation),
    # so tolerance is loosened relative to the pure-f32 reference.
    np.testing.assert_allclose(np.asarray(out), np.asarray(ref),
                               rtol=3e-2, atol=5e-3)
    print("KERNEL_OK")
</pallas_src>

<mosaic_0001>
module attributes {stable_mosaic.version = 11 : i64} {
  func.func @disc_kernel(%arg0: i32, %arg1: memref<2x32x128xbf16, #tpu.memory_space<vmem>>, %arg2: memref<128x128xbf16, #tpu.memory_space<vmem>>, %arg3: memref<1x128xf32, #tpu.memory_space<vmem>>, %arg4: memref<2176x256xbf16, #tpu.memory_space<vmem>>, %arg5: memref<1x256xf32, #tpu.memory_space<vmem>>, %arg6: memref<1x256xf32, #tpu.memory_space<vmem>>, %arg7: memref<1xf32, #tpu.memory_space<smem>>, %arg8: memref<2x1x128xf32, #tpu.memory_space<vmem>>, %arg9: memref<2x64x128xbf16, #tpu.memory_space<vmem>>, %arg10: memref<64x1152xbf16, #tpu.memory_space<vmem>>, %arg11: memref<64x1024xbf16, #tpu.memory_space<vmem>>) attributes {dimension_semantics = [#tpu.dimension_semantics<parallel>], iteration_bounds = array<i64: 1>, scalar_prefetch = 0 : i64, scratch_operands = 3 : i64, tpu.core_type = #tpu.core_type<tc>, window_params = [{transform_indices = @transform_0, window_bounds = array<i64: 2, 32, 128>}, {pipeline_mode = #tpu.pipeline_mode<synchronous>, transform_indices = @transform_1, window_bounds = array<i64: 128, 128>}, {pipeline_mode = #tpu.pipeline_mode<synchronous>, transform_indices = @transform_2, window_bounds = array<i64: 1, 128>}, {pipeline_mode = #tpu.pipeline_mode<synchronous>, transform_indices = @transform_3, window_bounds = array<i64: 2176, 256>}, {pipeline_mode = #tpu.pipeline_mode<synchronous>, transform_indices = @transform_4, window_bounds = array<i64: 1, 256>}, {pipeline_mode = #tpu.pipeline_mode<synchronous>, transform_indices = @transform_5, window_bounds = array<i64: 1, 256>}, {transform_indices = @transform_6, window_bounds = array<i64: 1>}, {transform_indices = @transform_7, window_bounds = array<i64: 2, 1, 128>}]} {
    %cst = arith.constant 0.000000e+00 : bf16
    %0 = vector.broadcast %cst : bf16 to vector<16x128xbf16>
    %c0 = arith.constant 0 : index
    %c0_0 = arith.constant 0 : index
    %c0_1 = arith.constant 0 : index
    %1 = vector.load %arg1[%c0, %c0_0, %c0_1] : memref<2x32x128xbf16, #tpu.memory_space<vmem>>, vector<1x32x128xbf16>
    %2 = vector.shape_cast %1 : vector<1x32x128xbf16> to vector<32x128xbf16>
    %c0_2 = arith.constant 0 : index
    %c0_3 = arith.constant 0 : index
    %3 = vector.load %arg2[%c0_2, %c0_3] : memref<128x128xbf16, #tpu.memory_space<vmem>>, vector<128x128xbf16>
    %cst_4 = arith.constant dense<0.000000e+00> : vector<32x128xf32>
    %4 = tpu.matmul %2, %3, %cst_4 {dimension_numbers = #tpu.dot_dimension_numbers<[1], [0], [0], [1], [0, 0, 1, 1], [], []>} : vector<32x128xbf16>, vector<128x128xbf16>, vector<32x128xf32> -> vector<32x128xf32>
    %c0_5 = arith.constant 0 : index
    %c0_6 = arith.constant 0 : index
    %5 = vector.load %arg3[%c0_5, %c0_6] : memref<1x128xf32, #tpu.memory_space<vmem>>, vector<1x128xf32>
    %6 = vector.broadcast %5 : vector<1x128xf32> to vector<32x128xf32>
    %7 = arith.addf %4, %6 : vector<32x128xf32>
    %cst_7 = arith.constant 0.000000e+00 : f32
    %8 = vector.broadcast %cst_7 : f32 to vector<32x128xf32>
    %9 = arith.cmpf ogt, %7, %8 : vector<32x128xf32>
    %cst_8 = arith.constant 2.000000e-01 : f32
    %10 = vector.broadcast %cst_8 : f32 to vector<32x128xf32>
    %11 = arith.mulf %10, %7 : vector<32x128xf32>
    %12 = arith.select %9, %7, %11 : vector<32x128xi1>, vector<32x128xf32>
    %c0_9 = arith.constant 0 : index
    %c0_10 = arith.constant 0 : index
    %c0_11 = arith.constant 0 : index
    %13 = vector.load %arg9[%c0_9, %c0_10, %c0_11] : memref<2x64x128xbf16, #tpu.memory_space<vmem>>, vector<1x16x128xbf16>
    %14 = vector.shape_cast %13 : vector<1x16x128xbf16> to vector<16x128xbf16>
    %15 = vector.shape_cast %0 : vector<16x128xbf16> to vector<1x16x128xbf16>
    tpu.vector_store %arg9[%c0_9, %c0_10, %c0_11], %15 {strides = array<i32>} : memref<2x64x128xbf16, #tpu.memory_space<vmem>>, vector<1x16x128xbf16>,
    %c0_12 = arith.constant 0 : index
    %c48 = arith.constant 48 : index
    %c0_13 = arith.constant 0 : index
    %16 = vector.load %arg9[%c0_12, %c48, %c0_13] : memref<2x64x128xbf16, #tpu.memory_space<vmem>>, vector<1x16x128xbf16>
    %17 = vector.shape_cast %16 : vector<1x16x128xbf16> to vector<16x128xbf16>
    %18 = vector.shape_cast %0 : vector<16x128xbf16> to vector<1x16x128xbf16>
    tpu.vector_store %arg9[%c0_12, %c48, %c0_13], %18 {strides = array<i32>} : memref<2x64x128xbf16, #tpu.memory_space<vmem>>, vector<1x16x128xbf16>,
    %19 = arith.truncf %12 : vector<32x128xf32> to vector<32x128xbf16>
    %c0_14 = arith.constant 0 : index
    %c16 = arith.constant 16 : index
    %c0_15 = arith.constant 0 : index
    %20 = vector.load %arg9[%c0_14, %c16, %c0_15] : memref<2x64x128xbf16, #tpu.memory_space<vmem>>, vector<1x32x128xbf16>
    %21 = vector.shape_cast %20 : vector<1x32x128xbf16> to vector<32x128xbf16>
    %22 = vector.shape_cast %19 : vector<32x128xbf16> to vector<1x32x128xbf16>
    tpu.vector_store %arg9[%c0_14, %c16, %c0_15], %22 {strides = array<i32>} : memref<2x64x128xbf16, #tpu.memory_space<vmem>>, vector<1x32x128xbf16>,
    %c1 = arith.constant 1 : index
    %c0_16 = arith.constant 0 : index
    %c0_17 = arith.constant 0 : index
    %23 = vector.load %arg1[%c1, %c0_16, %c0_17] : memref<2x32x128xbf16, #tpu.memory_space<vmem>>, vector<1x32x128xbf16>
    %24 = vector.shape_cast %23 : vector<1x32x128xbf16> to vector<32x128xbf16>
    %c0_18 = arith.constant 0 : index
    %c0_19 = arith.constant 0 : index
    %25 = vector.load %arg2[%c0_18, %c0_19] : memref<128x128xbf16, #tpu.memory_space<vmem>>, vector<128x128xbf16>
    %cst_20 = arith.constant dense<0.000000e+00> : vector<32x128xf32>
    %26 = tpu.matmul %24, %25, %cst_20 {dimension_numbers = #tpu.dot_dimension_numbers<[1], [0], [0], [1], [0, 0, 1, 1], [], []>} : vector<32x128xbf16>, vector<128x128xbf16>, vector<32x128xf32> -> vector<32x128xf32>
    %c0_21 = arith.constant 0 : index
    %c0_22 = arith.constant 0 : index
    %27 = vector.load %arg3[%c0_21, %c0_22] : memref<1x128xf32, #tpu.memory_space<vmem>>, vector<1x128xf32>
    %28 = vector.broadcast %27 : vector<1x128xf32> to vector<32x128xf32>
    %29 = arith.addf %26, %28 : vector<32x128xf32>
    %cst_23 = arith.constant 0.000000e+00 : f32
    %30 = vector.broadcast %cst_23 : f32 to vector<32x128xf32>
    %31 = arith.cmpf ogt, %29, %30 : vector<32x128xf32>
    %cst_24 = arith.constant 2.000000e-01 : f32
    %32 = vector.broadcast %cst_24 : f32 to vector<32x128xf32>
    %33 = arith.mulf %32, %29 : vector<32x128xf32>
    %34 = arith.select %31, %29, %33 : vector<32x128xi1>, vector<32x128xf32>
    %c1_25 = arith.constant 1 : index
    %c0_26 = arith.constant 0 : index
    %c0_27 = arith.constant 0 : index
    %35 = vector.load %arg9[%c1_25, %c0_26, %c0_27] : memref<2x64x128xbf16, #tpu.memory_space<vmem>>, vector<1x16x128xbf16>
    %36 = vector.shape_cast %35 : vector<1x16x128xbf16> to vector<16x128xbf16>
    %37 = vector.shape_cast %0 : vector<16x128xbf16> to vector<1x16x128xbf16>
    tpu.vector_store %arg9[%c1_25, %c0_26, %c0_27], %37 {strides = array<i32>} : memref<2x64x128xbf16, #tpu.memory_space<vmem>>, vector<1x16x128xbf16>,
    %c1_28 = arith.constant 1 : index
    %c48_29 = arith.constant 48 : index
    %c0_30 = arith.constant 0 : index
    %38 = vector.load %arg9[%c1_28, %c48_29, %c0_30] : memref<2x64x128xbf16, #tpu.memory_space<vmem>>, vector<1x16x128xbf16>
    %39 = vector.shape_cast %38 : vector<1x16x128xbf16> to vector<16x128xbf16>
    %40 = vector.shape_cast %0 : vector<16x128xbf16> to vector<1x16x128xbf16>
    tpu.vector_store %arg9[%c1_28, %c48_29, %c0_30], %40 {strides = array<i32>} : memref<2x64x128xbf16, #tpu.memory_space<vmem>>, vector<1x16x128xbf16>,
    %41 = arith.truncf %34 : vector<32x128xf32> to vector<32x128xbf16>
    %c1_31 = arith.constant 1 : index
    %c16_32 = arith.constant 16 : index
    %c0_33 = arith.constant 0 : index
    %42 = vector.load %arg9[%c1_31, %c16_32, %c0_33] : memref<2x64x128xbf16, #tpu.memory_space<vmem>>, vector<1x32x128xbf16>
    %43 = vector.shape_cast %42 : vector<1x32x128xbf16> to vector<32x128xbf16>
    %44 = vector.shape_cast %41 : vector<32x128xbf16> to vector<1x32x128xbf16>
    tpu.vector_store %arg9[%c1_31, %c16_32, %c0_33], %44 {strides = array<i32>} : memref<2x64x128xbf16, #tpu.memory_space<vmem>>, vector<1x32x128xbf16>,
    %c0_34 = arith.constant 0 : index
    %c8 = arith.constant 8 : index
    %c0_35 = arith.constant 0 : index
    %45 = vector.load %arg9[%c0_34, %c8, %c0_35] : memref<2x64x128xbf16, #tpu.memory_space<vmem>>, vector<1x32x128xbf16>
    %46 = vector.shape_cast %45 : vector<1x32x128xbf16> to vector<32x128xbf16>
    %c0_36 = arith.constant 0 : index
    %c0_37 = arith.constant 0 : index
    %47 = vector.load %arg10[%c0_36, %c0_37] : memref<64x1152xbf16, #tpu.memory_space<vmem>>, vector<32x128xbf16>
    tpu.vector_store %arg10[%c0_36, %c0_37], %46 {strides = array<i32>} : memref<64x1152xbf16, #tpu.memory_space<vmem>>, vector<32x128xbf16>,
    %c1_38 = arith.constant 1 : index
    %c8_39 = arith.constant 8 : index
    %c0_40 = arith.constant 0 : index
    %48 = vector.load %arg9[%c1_38, %c8_39, %c0_40] : memref<2x64x128xbf16, #tpu.memory_space<vmem>>, vector<1x32x128xbf16>
    %49 = vector.shape_cast %48 : vector<1x32x128xbf16> to vector<32x128xbf16>
    %c32 = arith.constant 32 : index
    %c0_41 = arith.constant 0 : index
    %50 = vector.load %arg10[%c32, %c0_41] : memref<64x1152xbf16, #tpu.memory_space<vmem>>, vector<32x128xbf16>
    tpu.vector_store %arg10[%c32, %c0_41], %49 {strides = array<i32>} : memref<64x1152xbf16, #tpu.memory_space<vmem>>, vector<32x128xbf16>,
    %c0_42 = arith.constant 0 : index
    %c9 = arith.constant 9 : index
    %c0_43 = arith.constant 0 : index
    %51 = vector.load %arg9[%c0_42, %c9, %c0_43] : memref<2x64x128xbf16, #tpu.memory_space<vmem>>, vector<1x32x128xbf16>
    %52 = vector.shape_cast %51 : vector<1x32x128xbf16> to vector<32x128xbf16>
    %c0_44 = arith.constant 0 : index
    %c128 = arith.constant 128 : index
    %53 = vector.load %arg10[%c0_44, %c128] : memref<64x1152xbf16, #tpu.memory_space<vmem>>, vector<32x128xbf16>
    tpu.vector_store %arg10[%c0_44, %c128], %52 {strides = array<i32>} : memref<64x1152xbf16, #tpu.memory_space<vmem>>, vector<32x128xbf16>,
    %c1_45 = arith.constant 1 : index
    %c9_46 = arith.constant 9 : index
    %c0_47 = arith.constant 0 : index
    %54 = vector.load %arg9[%c1_45, %c9_46, %c0_47] : memref<2x64x128xbf16, #tpu.memory_space<vmem>>, vector<1x32x128xbf16>
    %55 = vector.shape_cast %54 : vector<1x32x128xbf16> to vector<32x128xbf16>
    %c32_48 = arith.constant 32 : index
    %c128_49 = arith.constant 128 : index
    %56 = vector.load %arg10[%c32_48, %c128_49] : memref<64x1152xbf16, #tpu.memory_space<vmem>>, vector<32x128xbf16>
    tpu.vector_store %arg10[%c32_48, %c128_49], %55 {strides = array<i32>} : memref<64x1152xbf16, #tpu.memory_space<vmem>>, vector<32x128xbf16>,
    %c0_50 = arith.constant 0 : index
    %c10 = arith.constant 10 : index
    %c0_51 = arith.constant 0 : index
    %57 = vector.load %arg9[%c0_50, %c10, %c0_51] : memref<2x64x128xbf16, #tpu.memory_space<vmem>>, vector<1x32x128xbf16>
    %58 = vector.shape_cast %57 : vector<1x32x128xbf16> to vector<32x128xbf16>
    %c0_52 = arith.constant 0 : index
    %c256 = arith.constant 256 : index
    %59 = vector.load %arg10[%c0_52, %c256] : memref<64x1152xbf16, #tpu.memory_space<vmem>>, vector<32x128xbf16>
    tpu.vector_store %arg10[%c0_52, %c256], %58 {strides = array<i32>} : memref<64x1152xbf16, #tpu.memory_space<vmem>>, vector<32x128xbf16>,
    %c1_53 = arith.constant 1 : index
    %c10_54 = arith.constant 10 : index
    %c0_55 = arith.constant 0 : index
    %60 = vector.load %arg9[%c1_53, %c10_54, %c0_55] : memref<2x64x128xbf16, #tpu.memory_space<vmem>>, vector<1x32x128xbf16>
    %61 = vector.shape_cast %60 : vector<1x32x128xbf16> to vector<32x128xbf16>
    %c32_56 = arith.constant 32 : index
    %c256_57 = arith.constant 256 : index
    %62 = vector.load %arg10[%c32_56, %c256_57] : memref<64x1152xbf16, #tpu.memory_space<vmem>>, vector<32x128xbf16>
    tpu.vector_store %arg10[%c32_56, %c256_57], %61 {strides = array<i32>} : memref<64x1152xbf16, #tpu.memory_space<vmem>>, vector<32x128xbf16>,
    %c0_58 = arith.constant 0 : index
    %c11 = arith.constant 11 : index
    %c0_59 = arith.constant 0 : index
    %63 = vector.load %arg9[%c0_58, %c11, %c0_59] : memref<2x64x128xbf16, #tpu.memory_space<vmem>>, vector<1x32x128xbf16>
    %64 = vector.shape_cast %63 : vector<1x32x128xbf16> to vector<32x128xbf16>
    %c0_60 = arith.constant 0 : index
    %c384 = arith.constant 384 : index
    %65 = vector.load %arg10[%c0_60, %c384] : memref<64x1152xbf16, #tpu.memory_space<vmem>>, vector<32x128xbf16>
    tpu.vector_store %arg10[%c0_60, %c384], %64 {strides = array<i32>} : memref<64x1152xbf16, #tpu.memory_space<vmem>>, vector<32x128xbf16>,
    %c1_61 = arith.constant 1 : index
    %c11_62 = arith.constant 11 : index
    %c0_63 = arith.constant 0 : index
    %66 = vector.load %arg9[%c1_61, %c11_62, %c0_63] : memref<2x64x128xbf16, #tpu.memory_space<vmem>>, vector<1x32x128xbf16>
    %67 = vector.shape_cast %66 : vector<1x32x128xbf16> to vector<32x128xbf16>
    %c32_64 = arith.constant 32 : index
    %c384_65 = arith.constant 384 : index
    %68 = vector.load %arg10[%c32_64, %c384_65] : memref<64x1152xbf16, #tpu.memory_space<vmem>>, vector<32x128xbf16>
    tpu.vector_store %arg10[%c32_64, %c384_65], %67 {strides = array<i32>} : memref<64x1152xbf16, #tpu.memory_space<vmem>>, vector<32x128xbf16>,
    %c0_66 = arith.constant 0 : index
    %c12 = arith.constant 12 : index
    %c0_67 = arith.constant 0 : index
    %69 = vector.load %arg9[%c0_66, %c12, %c0_67] : memref<2x64x128xbf16, #tpu.memory_space<vmem>>, vector<1x32x128xbf16>
    %70 = vector.shape_cast %69 : vector<1x32x128xbf16> to vector<32x128xbf16>
    %c0_68 = arith.constant 0 : index
    %c512 = arith.constant 512 : index
    %71 = vector.load %arg10[%c0_68, %c512] : memref<64x1152xbf16, #tpu.memory_space<vmem>>, vector<32x128xbf16>
    tpu.vector_store %arg10[%c0_68, %c512], %70 {strides = array<i32>} : memref<64x1152xbf16, #tpu.memory_space<vmem>>, vector<32x128xbf16>,
    %c1_69 = arith.constant 1 : index
    %c12_70 = arith.constant 12 : index
    %c0_71 = arith.constant 0 : index
    %72 = vector.load %arg9[%c1_69, %c12_70, %c0_71] : memref<2x64x128xbf16, #tpu.memory_space<vmem>>, vector<1x32x128xbf16>
    %73 = vector.shape_cast %72 : vector<1x32x128xbf16> to vector<32x128xbf16>
    %c32_72 = arith.constant 32 : index
    %c512_73 = arith.constant 512 : index
    %74 = vector.load %arg10[%c32_72, %c512_73] : memref<64x1152xbf16, #tpu.memory_space<vmem>>, vector<32x128xbf16>
    tpu.vector_store %arg10[%c32_72, %c512_73], %73 {strides = array<i32>} : memref<64x1152xbf16, #tpu.memory_space<vmem>>, vector<32x128xbf16>,
    %c0_74 = arith.constant 0 : index
    %c13 = arith.constant 13 : index
    %c0_75 = arith.constant 0 : index
    %75 = vector.load %arg9[%c0_74, %c13, %c0_75] : memref<2x64x128xbf16, #tpu.memory_space<vmem>>, vector<1x32x128xbf16>
    %76 = vector.shape_cast %75 : vector<1x32x128xbf16> to vector<32x128xbf16>
    %c0_76 = arith.constant 0 : index
    %c640 = arith.constant 640 : index
    %77 = vector.load %arg10[%c0_76, %c640] : memref<64x1152xbf16, #tpu.memory_space<vmem>>, vector<32x128xbf16>
    tpu.vector_store %arg10[%c0_76, %c640], %76 {strides = array<i32>} : memref<64x1152xbf16, #tpu.memory_space<vmem>>, vector<32x128xbf16>,
    %c1_77 = arith.constant 1 : index
    %c13_78 = arith.constant 13 : index
    %c0_79 = arith.constant 0 : index
    %78 = vector.load %arg9[%c1_77, %c13_78, %c0_79] : memref<2x64x128xbf16, #tpu.memory_space<vmem>>, vector<1x32x128xbf16>
    %79 = vector.shape_cast %78 : vector<1x32x128xbf16> to vector<32x128xbf16>
    %c32_80 = arith.constant 32 : index
    %c640_81 = arith.constant 640 : index
    %80 = vector.load %arg10[%c32_80, %c640_81] : memref<64x1152xbf16, #tpu.memory_space<vmem>>, vector<32x128xbf16>
    tpu.vector_store %arg10[%c32_80, %c640_81], %79 {strides = array<i32>} : memref<64x1152xbf16, #tpu.memory_space<vmem>>, vector<32x128xbf16>,
    %c0_82 = arith.constant 0 : index
    %c14 = arith.constant 14 : index
    %c0_83 = arith.constant 0 : index
    %81 = vector.load %arg9[%c0_82, %c14, %c0_83] : memref<2x64x128xbf16, #tpu.memory_space<vmem>>, vector<1x32x128xbf16>
    %82 = vector.shape_cast %81 : vector<1x32x128xbf16> to vector<32x128xbf16>
    %c0_84 = arith.constant 0 : index
    %c768 = arith.constant 768 : index
    %83 = vector.load %arg10[%c0_84, %c768] : memref<64x1152xbf16, #tpu.memory_space<vmem>>, vector<32x128xbf16>
    tpu.vector_store %arg10[%c0_84, %c768], %82 {strides = array<i32>} : memref<64x1152xbf16, #tpu.memory_space<vmem>>, vector<32x128xbf16>,
    %c1_85 = arith.constant 1 : index
    %c14_86 = arith.constant 14 : index
    %c0_87 = arith.constant 0 : index
    %84 = vector.load %arg9[%c1_85, %c14_86, %c0_87] : memref<2x64x128xbf16, #tpu.memory_space<vmem>>, vector<1x32x128xbf16>
    %85 = vector.shape_cast %84 : vector<1x32x128xbf16> to vector<32x128xbf16>
    %c32_88 = arith.constant 32 : index
    %c768_89 = arith.constant 768 : index
    %86 = vector.load %arg10[%c32_88, %c768_89] : memref<64x1152xbf16, #tpu.memory_space<vmem>>, vector<32x128xbf16>
    tpu.vector_store %arg10[%c32_88, %c768_89], %85 {strides = array<i32>} : memref<64x1152xbf16, #tpu.memory_space<vmem>>, vector<32x128xbf16>,
    %c0_90 = arith.constant 0 : index
    %c15 = arith.constant 15 : index
    %c0_91 = arith.constant 0 : index
    %87 = vector.load %arg9[%c0_90, %c15, %c0_91] : memref<2x64x128xbf16, #tpu.memory_space<vmem>>, vector<1x32x128xbf16>
    %88 = vector.shape_cast %87 : vector<1x32x128xbf16> to vector<32x128xbf16>
    %c0_92 = arith.constant 0 : index
    %c896 = arith.constant 896 : index
    %89 = vector.load %arg10[%c0_92, %c896] : memref<64x1152xbf16, #tpu.memory_space<vmem>>, vector<32x128xbf16>
    tpu.vector_store %arg10[%c0_92, %c896], %88 {strides = array<i32>} : memref<64x1152xbf16, #tpu.memory_space<vmem>>, vector<32x128xbf16>,
    %c1_93 = arith.constant 1 : index
    %c15_94 = arith.constant 15 : index
    %c0_95 = arith.constant 0 : index
    %90 = vector.load %arg9[%c1_93, %c15_94, %c0_95] : memref<2x64x128xbf16, #tpu.memory_space<vmem>>, vector<1x32x128xbf16>
    %91 = vector.shape_cast %90 : vector<1x32x128xbf16> to vector<32x128xbf16>
    %c32_96 = arith.constant 32 : index
    %c896_97 = arith.constant 896 : index
    %92 = vector.load %arg10[%c32_96, %c896_97] : memref<64x1152xbf16, #tpu.memory_space<vmem>>, vector<32x128xbf16>
    tpu.vector_store %arg10[%c32_96, %c896_97], %91 {strides = array<i32>} : memref<64x1152xbf16, #tpu.memory_space<vmem>>, vector<32x128xbf16>,
    %c0_98 = arith.constant 0 : index
    %c16_99 = arith.constant 16 : index
    %c0_100 = arith.constant 0 : index
    %93 = vector.load %arg9[%c0_98, %c16_99, %c0_100] : memref<2x64x128xbf16, #tpu.memory_space<vmem>>, vector<1x32x128xbf16>
    %94 = vector.shape_cast %93 : vector<1x32x128xbf16> to vector<32x128xbf16>
    %c0_101 = arith.constant 0 : index
    %c1024 = arith.constant 1024 : index
    %95 = vector.load %arg10[%c0_101, %c1024] : memref<64x1152xbf16, #tpu.memory_space<vmem>>, vector<32x128xbf16>
    tpu.vector_store %arg10[%c0_101, %c1024], %94 {strides = array<i32>} : memref<64x1152xbf16, #tpu.memory_space<vmem>>, vector<32x128xbf16>,
    %c1_102 = arith.constant 1 : index
    %c16_103 = arith.constant 16 : index
    %c0_104 = arith.constant 0 : index
    %96 = vector.load %arg9[%c1_102, %c16_103, %c0_104] : memref<2x64x128xbf16, #tpu.memory_space<vmem>>, vector<1x32x128xbf16>
    %97 = vector.shape_cast %96 : vector<1x32x128xbf16> to vector<32x128xbf16>
    %c32_105 = arith.constant 32 : index
    %c1024_106 = arith.constant 1024 : index
    %98 = vector.load %arg10[%c32_105, %c1024_106] : memref<64x1152xbf16, #tpu.memory_space<vmem>>, vector<32x128xbf16>
    tpu.vector_store %arg10[%c32_105, %c1024_106], %97 {strides = array<i32>} : memref<64x1152xbf16, #tpu.memory_space<vmem>>, vector<32x128xbf16>,
    %c0_107 = arith.constant 0 : index
    %c0_108 = arith.constant 0 : index
    %99 = vector.load %arg10[%c0_107, %c0_108] : memref<64x1152xbf16, #tpu.memory_space<vmem>>, vector<64x1152xbf16>
    %c0_109 = arith.constant 0 : index
    %c0_110 = arith.constant 0 : index
    %100 = vector.load %arg4[%c0_109, %c0_110] : memref<2176x256xbf16, #tpu.memory_space<vmem>>, vector<1152x256xbf16>
    %cst_111 = arith.constant dense<0.000000e+00> : vector<64x256xf32>
    %101 = tpu.matmul %99, %100, %cst_111 {dimension_numbers = #tpu.dot_dimension_numbers<[1], [0], [0], [1], [0, 0, 1, 1], [], []>} : vector<64x1152xbf16>, vector<1152x256xbf16>, vector<64x256xf32> -> vector<64x256xf32>
    %c0_112 = arith.constant 0 : index
    %c17 = arith.constant 17 : index
    %c0_113 = arith.constant 0 : index
    %102 = vector.load %arg9[%c0_112, %c17, %c0_113] : memref<2x64x128xbf16, #tpu.memory_space<vmem>>, vector<1x32x128xbf16>
    %103 = vector.shape_cast %102 : vector<1x32x128xbf16> to vector<32x128xbf16>
    %c0_114 = arith.constant 0 : index
    %c0_115 = arith.constant 0 : index
    %104 = vector.load %arg11[%c0_114, %c0_115] : memref<64x1024xbf16, #tpu.memory_space<vmem>>, vector<32x128xbf16>
    tpu.vector_store %arg11[%c0_114, %c0_115], %103 {strides = array<i32>} : memref<64x1024xbf16, #tpu.memory_space<vmem>>, vector<32x128xbf16>,
    %c1_116 = arith.constant 1 : index
    %c17_117 = arith.constant 17 : index
    %c0_118 = arith.constant 0 : index
    %105 = vector.load %arg9[%c1_116, %c17_117, %c0_118] : memref<2x64x128xbf16, #tpu.memory_space<vmem>>, vector<1x32x128xbf16>
    %106 = vector.shape_cast %105 : vector<1x32x128xbf16> to vector<32x128xbf16>
    %c32_119 = arith.constant 32 : index
    %c0_120 = arith.constant 0 : index
    %107 = vector.load %arg11[%c32_119, %c0_120] : memref<64x1024xbf16, #tpu.memory_space<vmem>>, vector<32x128xbf16>
    tpu.vector_store %arg11[%c32_119, %c0_120], %106 {strides = array<i32>} : memref<64x1024xbf16, #tpu.memory_space<vmem>>, vector<32x128xbf16>,
    %c0_121 = arith.constant 0 : index
    %c18 = arith.constant 18 : index
    %c0_122 = arith.constant 0 : index
    %108 = vector.load %arg9[%c0_121, %c18, %c0_122] : memref<2x64x128xbf16, #tpu.memory_space<vmem>>, vector<1x32x128xbf16>
    %109 = vector.shape_cast %108 : vector<1x32x128xbf16> to vector<32x128xbf16>
    %c0_123 = arith.constant 0 : index
    %c128_124 = arith.constant 128 : index
    %110 = vector.load %arg11[%c0_123, %c128_124] : memref<64x1024xbf16, #tpu.memory_space<vmem>>, vector<32x128xbf16>
    tpu.vector_store %arg11[%c0_123, %c128_124], %109 {strides = array<i32>} : memref<64x1024xbf16, #tpu.memory_space<vmem>>, vector<32x128xbf16>,
    %c1_125 = arith.constant 1 : index
    %c18_126 = arith.constant 18 : index
    %c0_127 = arith.constant 0 : index
    %111 = vector.load %arg9[%c1_125, %c18_126, %c0_127] : memref<2x64x128xbf16, #tpu.memory_space<vmem>>, vector<1x32x128xbf16>
    %112 = vector.shape_cast %111 : vector<1x32x128xbf16> to vector<32x128xbf16>
    %c32_128 = arith.constant 32 : index
    %c128_129 = arith.constant 128 : index
    %113 = vector.load %arg11[%c32_128, %c128_129] : memref<64x1024xbf16, #tpu.memory_space<vmem>>, vector<32x128xbf16>
    tpu.vector_store %arg11[%c32_128, %c128_129], %112 {strides = array<i32>} : memref<64x1024xbf16, #tpu.memory_space<vmem>>, vector<32x128xbf16>,
    %c0_130 = arith.constant 0 : index
    %c19 = arith.constant 19 : index
    %c0_131 = arith.constant 0 : index
    %114 = vector.load %arg9[%c0_130, %c19, %c0_131] : memref<2x64x128xbf16, #tpu.memory_space<vmem>>, vector<1x32x128xbf16>
    %115 = vector.shape_cast %114 : vector<1x32x128xbf16> to vector<32x128xbf16>
    %c0_132 = arith.constant 0 : index
    %c256_133 = arith.constant 256 : index
    %116 = vector.load %arg11[%c0_132, %c256_133] : memref<64x1024xbf16, #tpu.memory_space<vmem>>, vector<32x128xbf16>
    tpu.vector_store %arg11[%c0_132, %c256_133], %115 {strides = array<i32>} : memref<64x1024xbf16, #tpu.memory_space<vmem>>, vector<32x128xbf16>,
    %c1_134 = arith.constant 1 : index
    %c19_135 = arith.constant 19 : index
    %c0_136 = arith.constant 0 : index
    %117 = vector.load %arg9[%c1_134, %c19_135, %c0_136] : memref<2x64x128xbf16, #tpu.memory_space<vmem>>, vector<1x32x128xbf16>
    %118 = vector.shape_cast %117 : vector<1x32x128xbf16> to vector<32x128xbf16>
    %c32_137 = arith.constant 32 : index
    %c256_138 = arith.constant 256 : index
    %119 = vector.load %arg11[%c32_137, %c256_138] : memref<64x1024xbf16, #tpu.memory_space<vmem>>, vector<32x128xbf16>
    tpu.vector_store %arg11[%c32_137, %c256_138], %118 {strides = array<i32>} : memref<64x1024xbf16, #tpu.memory_space<vmem>>, vector<32x128xbf16>,
    %c0_139 = arith.constant 0 : index
    %c20 = arith.constant 20 : index
    %c0_140 = arith.constant 0 : index
    %120 = vector.load %arg9[%c0_139, %c20, %c0_140] : memref<2x64x128xbf16, #tpu.memory_space<vmem>>, vector<1x32x128xbf16>
    %121 = vector.shape_cast %120 : vector<1x32x128xbf16> to vector<32x128xbf16>
    %c0_141 = arith.constant 0 : index
    %c384_142 = arith.constant 384 : index
    %122 = vector.load %arg11[%c0_141, %c384_142] : memref<64x1024xbf16, #tpu.memory_space<vmem>>, vector<32x128xbf16>
    tpu.vector_store %arg11[%c0_141, %c384_142], %121 {strides = array<i32>} : memref<64x1024xbf16, #tpu.memory_space<vmem>>, vector<32x128xbf16>,
    %c1_143 = arith.constant 1 : index
    %c20_144 = arith.constant 20 : index
    %c0_145 = arith.constant 0 : index
    %123 = vector.load %arg9[%c1_143, %c20_144, %c0_145] : memref<2x64x128xbf16, #tpu.memory_space<vmem>>, vector<1x32x128xbf16>
    %124 = vector.shape_cast %123 : vector<1x32x128xbf16> to vector<32x128xbf16>
    %c32_146 = arith.constant 32 : index
    %c384_147 = arith.constant 384 : index
    %125 = vector.load %arg11[%c32_146, %c384_147] : memref<64x1024xbf16, #tpu.memory_space<vmem>>, vector<32x128xbf16>
    tpu.vector_store %arg11[%c32_146, %c384_147], %124 {strides = array<i32>} : memref<64x1024xbf16, #tpu.memory_space<vmem>>, vector<32x128xbf16>,
    %c0_148 = arith.constant 0 : index
    %c21 = arith.constant 21 : index
    %c0_149 = arith.constant 0 : index
    %126 = vector.load %arg9[%c0_148, %c21, %c0_149] : memref<2x64x128xbf16, #tpu.memory_space<vmem>>, vector<1x32x128xbf16>
    %127 = vector.shape_cast %126 : vector<1x32x128xbf16> to vector<32x128xbf16>
    %c0_150 = arith.constant 0 : index
    %c512_151 = arith.constant 512 : index
    %128 = vector.load %arg11[%c0_150, %c512_151] : memref<64x1024xbf16, #tpu.memory_space<vmem>>, vector<32x128xbf16>
    tpu.vector_store %arg11[%c0_150, %c512_151], %127 {strides = array<i32>} : memref<64x1024xbf16, #tpu.memory_space<vmem>>, vector<32x128xbf16>,
    %c1_152 = arith.constant 1 : index
    %c21_153 = arith.constant 21 : index
    %c0_154 = arith.constant 0 : index
    %129 = vector.load %arg9[%c1_152, %c21_153, %c0_154] : memref<2x64x128xbf16, #tpu.memory_space<vmem>>, vector<1x32x128xbf16>
    %130 = vector.shape_cast %129 : vector<1x32x128xbf16> to vector<32x128xbf16>
    %c32_155 = arith.constant 32 : index
    %c512_156 = arith.constant 512 : index
    %131 = vector.load %arg11[%c32_155, %c512_156] : memref<64x1024xbf16, #tpu.memory_space<vmem>>, vector<32x128xbf16>
    tpu.vector_store %arg11[%c32_155, %c512_156], %130 {strides = array<i32>} : memref<64x1024xbf16, #tpu.memory_space<vmem>>, vector<32x128xbf16>,
    %c0_157 = arith.constant 0 : index
    %c22 = arith.constant 22 : index
    %c0_158 = arith.constant 0 : index
    %132 = vector.load %arg9[%c0_157, %c22, %c0_158] : memref<2x64x128xbf16, #tpu.memory_space<vmem>>, vector<1x32x128xbf16>
    %133 = vector.shape_cast %132 : vector<1x32x128xbf16> to vector<32x128xbf16>
    %c0_159 = arith.constant 0 : index
    %c640_160 = arith.constant 640 : index
    %134 = vector.load %arg11[%c0_159, %c640_160] : memref<64x1024xbf16, #tpu.memory_space<vmem>>, vector<32x128xbf16>
    tpu.vector_store %arg11[%c0_159, %c640_160], %133 {strides = array<i32>} : memref<64x1024xbf16, #tpu.memory_space<vmem>>, vector<32x128xbf16>,
    %c1_161 = arith.constant 1 : index
    %c22_162 = arith.constant 22 : index
    %c0_163 = arith.constant 0 : index
    %135 = vector.load %arg9[%c1_161, %c22_162, %c0_163] : memref<2x64x128xbf16, #tpu.memory_space<vmem>>, vector<1x32x128xbf16>
    %136 = vector.shape_cast %135 : vector<1x32x128xbf16> to vector<32x128xbf16>
    %c32_164 = arith.constant 32 : index
    %c640_165 = arith.constant 640 : index
    %137 = vector.load %arg11[%c32_164, %c640_165] : memref<64x1024xbf16, #tpu.memory_space<vmem>>, vector<32x128xbf16>
    tpu.vector_store %arg11[%c32_164, %c640_165], %136 {strides = array<i32>} : memref<64x1024xbf16, #tpu.memory_space<vmem>>, vector<32x128xbf16>,
    %c0_166 = arith.constant 0 : index
    %c23 = arith.constant 23 : index
    %c0_167 = arith.constant 0 : index
    %138 = vector.load %arg9[%c0_166, %c23, %c0_167] : memref<2x64x128xbf16, #tpu.memory_space<vmem>>, vector<1x32x128xbf16>
    %139 = vector.shape_cast %138 : vector<1x32x128xbf16> to vector<32x128xbf16>
    %c0_168 = arith.constant 0 : index
    %c768_169 = arith.constant 768 : index
    %140 = vector.load %arg11[%c0_168, %c768_169] : memref<64x1024xbf16, #tpu.memory_space<vmem>>, vector<32x128xbf16>
    tpu.vector_store %arg11[%c0_168, %c768_169], %139 {strides = array<i32>} : memref<64x1024xbf16, #tpu.memory_space<vmem>>, vector<32x128xbf16>,
    %c1_170 = arith.constant 1 : index
    %c23_171 = arith.constant 23 : index
    %c0_172 = arith.constant 0 : index
    %141 = vector.load %arg9[%c1_170, %c23_171, %c0_172] : memref<2x64x128xbf16, #tpu.memory_space<vmem>>, vector<1x32x128xbf16>
    %142 = vector.shape_cast %141 : vector<1x32x128xbf16> to vector<32x128xbf16>
    %c32_173 = arith.constant 32 : index
    %c768_174 = arith.constant 768 : index
    %143 = vector.load %arg11[%c32_173, %c768_174] : memref<64x1024xbf16, #tpu.memory_space<vmem>>, vector<32x128xbf16>
    tpu.vector_store %arg11[%c32_173, %c768_174], %142 {strides = array<i32>} : memref<64x1024xbf16, #tpu.memory_space<vmem>>, vector<32x128xbf16>,
    %c0_175 = arith.constant 0 : index
    %c24 = arith.constant 24 : index
    %c0_176 = arith.constant 0 : index
    %144 = vector.load %arg9[%c0_175, %c24, %c0_176] : memref<2x64x128xbf16, #tpu.memory_space<vmem>>, vector<1x32x128xbf16>
    %145 = vector.shape_cast %144 : vector<1x32x128xbf16> to vector<32x128xbf16>
    %c0_177 = arith.constant 0 : index
    %c896_178 = arith.constant 896 : index
    %146 = vector.load %arg11[%c0_177, %c896_178] : memref<64x1024xbf16, #tpu.memory_space<vmem>>, vector<32x128xbf16>
    tpu.vector_store %arg11[%c0_177, %c896_178], %145 {strides = array<i32>} : memref<64x1024xbf16, #tpu.memory_space<vmem>>, vector<32x128xbf16>,
    %c1_179 = arith.constant 1 : index
    %c24_180 = arith.constant 24 : index
    %c0_181 = arith.constant 0 : index
    %147 = vector.load %arg9[%c1_179, %c24_180, %c0_181] : memref<2x64x128xbf16, #tpu.memory_space<vmem>>, vector<1x32x128xbf16>
    %148 = vector.shape_cast %147 : vector<1x32x128xbf16> to vector<32x128xbf16>
    %c32_182 = arith.constant 32 : index
    %c896_183 = arith.constant 896 : index
    %149 = vector.load %arg11[%c32_182, %c896_183] : memref<64x1024xbf16, #tpu.memory_space<vmem>>, vector<32x128xbf16>
    tpu.vector_store %arg11[%c32_182, %c896_183], %148 {strides = array<i32>} : memref<64x1024xbf16, #tpu.memory_space<vmem>>, vector<32x128xbf16>,
    %c0_184 = arith.constant 0 : index
    %c0_185 = arith.constant 0 : index
    %150 = vector.load %arg11[%c0_184, %c0_185] : memref<64x1024xbf16, #tpu.memory_space<vmem>>, vector<64x1024xbf16>
    %c1152 = arith.constant 1152 : index
    %c0_186 = arith.constant 0 : index
    %151 = vector.load %arg4[%c1152, %c0_186] : memref<2176x256xbf16, #tpu.memory_space<vmem>>, vector<1024x256xbf16>
    %cst_187 = arith.constant dense<0.000000e+00> : vector<64x256xf32>
    %152 = tpu.matmul %150, %151, %cst_187 {dimension_numbers = #tpu.dot_dimension_numbers<[1], [0], [0], [1], [0, 0, 1, 1], [], []>} : vector<64x1024xbf16>, vector<1024x256xbf16>, vector<64x256xf32> -> vector<64x256xf32>
    %153 = arith.addf %101, %152 : vector<64x256xf32>
    %c0_188 = arith.constant 0 : index
    %c0_189 = arith.constant 0 : index
    %154 = vector.load %arg5[%c0_188, %c0_189] : memref<1x256xf32, #tpu.memory_space<vmem>>, vector<1x256xf32>
    %155 = vector.broadcast %154 : vector<1x256xf32> to vector<64x256xf32>
    %156 = arith.addf %153, %155 : vector<64x256xf32>
    %cst_190 = arith.constant 0.000000e+00 : f32
    %157 = vector.broadcast %cst_190 : f32 to vector<64x256xf32>
    %158 = arith.cmpf ogt, %156, %157 : vector<64x256xf32>
    %cst_191 = arith.constant 2.000000e-01 : f32
    %159 = vector.broadcast %cst_191 : f32 to vector<64x256xf32>
    %160 = arith.mulf %159, %156 : vector<64x256xf32>
    %161 = arith.select %158, %156, %160 : vector<64x256xi1>, vector<64x256xf32>
    %162 = vector.extract_strided_slice %161 {offsets = [0, 0], sizes = [32, 256], strides = [1, 1]} : vector<64x256xf32> to vector<32x256xf32>
    %cst_192 = arith.constant dense<0.000000e+00> : vector<256xf32>
    %163 = vector.multi_reduction <add>, %162, %cst_192 [0] : vector<32x256xf32> to vector<256xf32>
    %164 = vector.shape_cast %163 : vector<256xf32> to vector<1x256xf32>
    %c0_193 = arith.constant 0 : index
    %c0_194 = arith.constant 0 : index
    %165 = vector.load %arg6[%c0_193, %c0_194] : memref<1x256xf32, #tpu.memory_space<vmem>>, vector<1x256xf32>
    %166 = arith.mulf %164, %165 : vector<1x256xf32>
    %cst_195 = arith.constant dense<0.000000e+00> : vector<1xf32>
    %167 = vector.multi_reduction <add>, %166, %cst_195 [1] : vector<1x256xf32> to vector<1xf32>
    %168 = vector.shape_cast %167 : vector<1xf32> to vector<1x1xf32>
    %cst_196 = arith.constant 3.125000e-02 : f32
    %169 = vector.broadcast %cst_196 : f32 to vector<1x1xf32>
    %170 = arith.mulf %168, %169 : vector<1x1xf32>
    %c0_197 = arith.constant 0 : index
    %171 = memref.load %arg7[%c0_197] : memref<1xf32, #tpu.memory_space<smem>>
    %172 = vector.broadcast %171 : f32 to vector<1x1xf32>
    %173 = arith.addf %170, %172 : vector<1x1xf32>
    %174 = vector.shape_cast %173 : vector<1x1xf32> to vector<1x1xf32>
    %175 = vector.broadcast %174 : vector<1x1xf32> to vector<1x128xf32>
    %c0_198 = arith.constant 0 : index
    %c0_199 = arith.constant 0 : index
    %c0_200 = arith.constant 0 : index
    %176 = vector.load %arg8[%c0_198, %c0_199, %c0_200] : memref<2x1x128xf32, #tpu.memory_space<vmem>>, vector<1x1x128xf32>
    %177 = vector.shape_cast %176 : vector<1x1x128xf32> to vector<1x128xf32>
    %178 = vector.shape_cast %175 : vector<1x128xf32> to vector<1x1x128xf32>
    tpu.vector_store %arg8[%c0_198, %c0_199, %c0_200], %178 {strides = array<i32>} : memref<2x1x128xf32, #tpu.memory_space<vmem>>, vector<1x1x128xf32>,
    %179 = vector.extract_strided_slice %161 {offsets = [32, 0], sizes = [32, 256], strides = [1, 1]} : vector<64x256xf32> to vector<32x256xf32>
    %cst_201 = arith.constant dense<0.000000e+00> : vector<256xf32>
    %180 = vector.multi_reduction <add>, %179, %cst_201 [0] : vector<32x256xf32> to vector<256xf32>
    %181 = vector.shape_cast %180 : vector<256xf32> to vector<1x256xf32>
    %c0_202 = arith.constant 0 : index
    %c0_203 = arith.constant 0 : index
    %182 = vector.load %arg6[%c0_202, %c0_203] : memref<1x256xf32, #tpu.memory_space<vmem>>, vector<1x256xf32>
    %183 = arith.mulf %181, %182 : vector<1x256xf32>
    %cst_204 = arith.constant dense<0.000000e+00> : vector<1xf32>
    %184 = vector.multi_reduction <add>, %183, %cst_204 [1] : vector<1x256xf32> to vector<1xf32>
    %185 = vector.shape_cast %184 : vector<1xf32> to vector<1x1xf32>
    %cst_205 = arith.constant 3.125000e-02 : f32
    %186 = vector.broadcast %cst_205 : f32 to vector<1x1xf32>
    %187 = arith.mulf %185, %186 : vector<1x1xf32>
    %c0_206 = arith.constant 0 : index
    %188 = memref.load %arg7[%c0_206] : memref<1xf32, #tpu.memory_space<smem>>
    %189 = vector.broadcast %188 : f32 to vector<1x1xf32>
    %190 = arith.addf %187, %189 : vector<1x1xf32>
    %191 = vector.shape_cast %190 : vector<1x1xf32> to vector<1x1xf32>
    %192 = vector.broadcast %191 : vector<1x1xf32> to vector<1x128xf32>
    %c1_207 = arith.constant 1 : index
    %c0_208 = arith.constant 0 : index
    %c0_209 = arith.constant 0 : index
    %193 = vector.load %arg8[%c1_207, %c0_208, %c0_209] : memref<2x1x128xf32, #tpu.memory_space<vmem>>, vector<1x1x128xf32>
    %194 = vector.shape_cast %193 : vector<1x1x128xf32> to vector<1x128xf32>
    %195 = vector.shape_cast %192 : vector<1x128xf32> to vector<1x1x128xf32>
    tpu.vector_store %arg8[%c1_207, %c0_208, %c0_209], %195 {strides = array<i32>} : memref<2x1x128xf32, #tpu.memory_space<vmem>>, vector<1x1x128xf32>,
    return
  }
  func.func @transform_0(%arg0: i32) -> (i32, i32, i32) {
    %c0_i32 = arith.constant 0 : i32
    %c0_i32_0 = arith.constant 0 : i32
    %c0_i32_1 = arith.constant 0 : i32
    return %arg0, %c0_i32, %c0_i32_0 : i32, i32, i32
  }
  func.func @transform_1(%arg0: i32) -> (i32, i32) {
    %c0_i32 = arith.constant 0 : i32
    %c0_i32_0 = arith.constant 0 : i32
    %c0_i32_1 = arith.constant 0 : i32
    return %c0_i32, %c0_i32_0 : i32, i32
  }
  func.func @transform_2(%arg0: i32) -> (i32, i32) {
    %c0_i32 = arith.constant 0 : i32
    %c0_i32_0 = arith.constant 0 : i32
    %c0_i32_1 = arith.constant 0 : i32
    return %c0_i32, %c0_i32_0 : i32, i32
  }
  func.func @transform_3(%arg0: i32) -> (i32, i32) {
    %c0_i32 = arith.constant 0 : i32
    %c0_i32_0 = arith.constant 0 : i32
    %c0_i32_1 = arith.constant 0 : i32
    return %c0_i32, %c0_i32_0 : i32, i32
  }
  func.func @transform_4(%arg0: i32) -> (i32, i32) {
    %c0_i32 = arith.constant 0 : i32
    %c0_i32_0 = arith.constant 0 : i32
    %c0_i32_1 = arith.constant 0 : i32
    return %c0_i32, %c0_i32_0 : i32, i32
  }
  func.func @transform_5(%arg0: i32) -> (i32, i32) {
    %c0_i32 = arith.constant 0 : i32
    %c0_i32_0 = arith.constant 0 : i32
    %c0_i32_1 = arith.constant 0 : i32
    return %c0_i32, %c0_i32_0 : i32, i32
  }
  func.func @transform_6(%arg0: i32) -> i32 {
    %c0_i32 = arith.constant 0 : i32
    %c0_i32_0 = arith.constant 0 : i32
    return %c0_i32 : i32
  }
  func.func @transform_7(%arg0: i32) -> (i32, i32, i32) {
    %c0_i32 = arith.constant 0 : i32
    %c0_i32_0 = arith.constant 0 : i32
    %c0_i32_1 = arith.constant 0 : i32
    return %arg0, %c0_i32, %c0_i32_0 : i32, i32, i32
  }
}

</mosaic_0001>

<llo_original>
// kernel: _disc_forward_impl.1
$region0: #{_disc_forward_impl.1}
  #allocation0 [shape = 'u32[]', space=smem, size = 0x4, offset = 0x4, fixed_abs, tag = 'smem constant byte address 0x4 - core index']
  #allocation1 [shape = 'u32[144,128]{1,0:T(1,128)}', space=vmem, size = 0x12000, scoped, tag = 'internal scratch']
  #allocation2 [shape = 'bf16[2,64,128]{2,1,0:T(16,128)(2,1)}', space=vmem, size = 0x8000, scoped, tag = 'scratch operand']
  #allocation3 [shape = 'bf16[64,1152]{1,0:T(16,128)(2,1)}', space=vmem, size = 0x24000, scoped, tag = 'scratch operand']
  #allocation4 [shape = 'bf16[64,1024]{1,0:T(16,128)(2,1)}', space=vmem, size = 0x20000, scoped, tag = 'scratch operand']
  #allocation5 [shape = 'f32[1]{0:T(128)S(6)}', space=smem, size = 0x200, scoped, tag = 'scoped memory for _disc_forward_impl.1']
  %s0 = inlined_call_operand.vmem [shape: bf16[2,32,128], index: 0, kind: input, shape index: {}]
  %s1 = inlined_call_operand.vmem [shape: bf16[128,128], index: 1, kind: input, shape index: {}]
  %s2 = inlined_call_operand.vmem [shape: f32[1,128], index: 2, kind: input, shape index: {}]
  %s3 = inlined_call_operand.vmem [shape: bf16[2176,256], index: 3, kind: input, shape index: {}]
  %s4 = inlined_call_operand.vmem [shape: f32[1,256], index: 4, kind: input, shape index: {}]
  %s5 = inlined_call_operand.vmem [shape: f32[1,256], index: 5, kind: input, shape index: {}]
  %s6 = inlined_call_operand.<no memory space> [shape: f32[1], index: 6, kind: input, shape index: {}]
  %s7 = inlined_call_operand.vmem [shape: f32[2,1,128], index: 7, kind: output, shape index: {}]
  %s8 = sld [smem:[#allocation0]]
  $region38: #{_disc_forward_impl.1} parent=0
    _
  %s10 = ssub.s32 1, %s8
  %s11 = scalar_select 0, %s10, %s8
  %12 = sst [smem:[#allocation5]] %s6
  // Predicated region
  $region2: #{_disc_forward_impl.1} parent=0 // pred_check
    _
  $region3: #{_disc_forward_impl.1} parent=0 // pred_check_branch
    %14 = sbr.rel (0) target = $region5
  $region4: #{_disc_forward_impl.1} parent=0 // pred_region
    _
  $region5: #{_disc_forward_impl.1} parent=0 // pred_fallthru
    _
  // Predicated region
  $region6: #{_disc_forward_impl.1} parent=0 // pred_check
    _
  $region7: #{_disc_forward_impl.1} parent=0 // pred_check_branch
    %16 = sbr.rel (0) target = $region9
  $region8: #{_disc_forward_impl.1} parent=0 // pred_region
    _
  $region9: #{_disc_forward_impl.1} parent=0 // pred_fallthru
    _
  // Predicated region
  $region10: #{_disc_forward_impl.1} parent=0 // pred_check
    _
  $region11: #{_disc_forward_impl.1} parent=0 // pred_check_branch
    %18 = sbr.rel (0) target = $region13
  $region12: #{_disc_forward_impl.1} parent=0 // pred_region
    _
  $region13: #{_disc_forward_impl.1} parent=0 // pred_fallthru
    _
  // Predicated region
  $region14: #{_disc_forward_impl.1} parent=0 // pred_check
    _
  $region15: #{_disc_forward_impl.1} parent=0 // pred_check_branch
    %20 = sbr.rel (0) target = $region17
  $region16: #{_disc_forward_impl.1} parent=0 // pred_region
    _
  $region17: #{_disc_forward_impl.1} parent=0 // pred_fallthru
    _
  // Predicated region
  $region18: #{_disc_forward_impl.1} parent=0 // pred_check
    _
  $region19: #{_disc_forward_impl.1} parent=0 // pred_check_branch
    %22 = sbr.rel (0) target = $region21
  $region20: #{_disc_forward_impl.1} parent=0 // pred_region
    _
  $region21: #{_disc_forward_impl.1} parent=0 // pred_fallthru
    _
  // Predicated region
  $region22: #{_disc_forward_impl.1} parent=0 // pred_check
    _
  $region23: #{_disc_forward_impl.1} parent=0 // pred_check_branch
    %24 = sbr.rel (0) target = $region25
  $region24: #{_disc_forward_impl.1} parent=0 // pred_region
    _
  $region25: #{_disc_forward_impl.1} parent=0 // pred_fallthru
    _
  // Predicated region
  $region26: #{_disc_forward_impl.1} parent=0 // pred_check
    _
  $region27: #{_disc_forward_impl.1} parent=0 // pred_check_branch
    %26 = sbr.rel (0) target = $region29
  $region28: #{_disc_forward_impl.1} parent=0 // pred_region
    _
  $region29: #{_disc_forward_impl.1} parent=0 // pred_fallthru
    _
  %v28 = vld [vmem:[%s0] sm:$0xf]
  %v29 = vld [vmem:[%s0 + $0x4] sm:$0xf]
  %v30 = vld [vmem:[%s0 + $0x8] sm:$0xf]
  %v31 = vld [vmem:[%s0 + $0xc] sm:$0xf]
  %v32 = vld [vmem:[%s1] sm:$0xf]
  %v33 = vld [vmem:[%s1 + $0x4] sm:$0xf]
  %v34 = vld [vmem:[%s1 + $0x8] sm:$0xf]
  %v35 = vld [vmem:[%s1 + $0xc] sm:$0xf]
  %v36 = vld [vmem:[%s1 + $0x10] sm:$0xf]
  %v37 = vld [vmem:[%s1 + $0x14] sm:$0xf]
  %v38 = vld [vmem:[%s1 + $0x18] sm:$0xf]
  %v39 = vld [vmem:[%s1 + $0x1c] sm:$0xf]
  %v40 = vld [vmem:[%s1 + $0x20] sm:$0xf]
  %v41 = vld [vmem:[%s1 + $0x24] sm:$0xf]
  %v42 = vld [vmem:[%s1 + $0x28] sm:$0xf]
  %v43 = vld [vmem:[%s1 + $0x2c] sm:$0xf]
  %v44 = vld [vmem:[%s1 + $0x30] sm:$0xf]
  %v45 = vld [vmem:[%s1 + $0x34] sm:$0xf]
  %v46 = vld [vmem:[%s1 + $0x38] sm:$0xf]
  %v47 = vld [vmem:[%s1 + $0x3c] sm:$0xf]
  %v48 = vld [vmem:[%s2] sm:$0x1]
  %v50 = vlaneseq
  %v51 = vshrl.u32 %v50, 7
  %v52 = vsub.s32 0, %v51
  %v53 = vrot.slane %v48, %v52
  %v59 = vunpack.c.l.b16 %v28
  %v60 = vunpack.c.l.b16 %v29
  %v61 = vunpack.c.l.b16 %v30
  %v62 = vunpack.c.l.b16 %v31
  %v63 = vpack.c.b16 %v60, %v59
  %v64 = vpack.c.b16 %v62, %v61
  %v83 = vunpack.c.l.b16 %v32
  %v84 = vunpack.c.l.b16 %v33
  %v85 = vunpack.c.l.b16 %v34
  %v86 = vunpack.c.l.b16 %v35
  %v87 = vunpack.c.l.b16 %v36
  %v88 = vunpack.c.l.b16 %v37
  %v89 = vunpack.c.l.b16 %v38
  %v90 = vunpack.c.l.b16 %v39
  %v91 = vunpack.c.l.b16 %v40
  %v92 = vunpack.c.l.b16 %v41
  %v93 = vunpack.c.l.b16 %v42
  %v94 = vunpack.c.l.b16 %v43
  %v95 = vunpack.c.l.b16 %v44
  %v96 = vunpack.c.l.b16 %v45
  %v97 = vunpack.c.l.b16 %v46
  %v98 = vunpack.c.l.b16 %v47
  %v99 = vpack.c.b16 %v84, %v83
  %v100 = vpack.c.b16 %v86, %v85
  %v101 = vpack.c.b16 %v88, %v87
  %v102 = vpack.c.b16 %v90, %v89
  %v103 = vpack.c.b16 %v92, %v91
  %v104 = vpack.c.b16 %v94, %v93
  %v105 = vpack.c.b16 %v96, %v95
  %v106 = vpack.c.b16 %v98, %v97
  %115 = vmatprep.subr.bf16.mxu0 0
  %116 = vmatpush1.bf16.msra.mxu0 %v99
  %117 = vmatprep.subr.bf16.mxu0 0
  %118 = vmatpush1.bf16.msra.mxu0 %v100
  %119 = vmatprep.subr.bf16.mxu0 0
  %120 = vmatpush1.bf16.msra.mxu0 %v101
  %121 = vmatprep.subr.bf16.mxu0 0
  %122 = vmatpush1.bf16.msra.mxu0 %v102
  %123 = vmatprep.subr.bf16.mxu0 0
  %124 = vmatpush1.bf16.msra.mxu0 %v103
  %125 = vmatprep.subr.bf16.mxu0 0
  %126 = vmatpush1.bf16.msra.mxu0 %v104
  %127 = vmatprep.subr.bf16.mxu0 0
  %128 = vmatpush1.bf16.msra.mxu0 %v105
  %129 = vmatprep.subr.bf16.mxu0 0
  %130 = vmatpush1.bf16.msra.mxu0 %v106
  %131 = vmatprep.subr.bf16.mxu0 0
  %132 = vmatpush1.bf16.msra.mxu0 0
  %133 = vmatprep.subr.bf16.mxu0 0
  %134 = vmatpush1.bf16.msra.mxu0 0
  %135 = vmatprep.subr.bf16.mxu0 0
  %136 = vmatpush1.bf16.msra.mxu0 0
  %137 = vmatprep.subr.bf16.mxu0 0
  %138 = vmatpush1.bf16.msra.mxu0 0
  %139 = vmatprep.subr.bf16.mxu0 0
  %140 = vmatpush1.bf16.msra.mxu0 0
  %141 = vmatprep.subr.bf16.mxu0 0
  %142 = vmatpush1.bf16.msra.mxu0 0
  %143 = vmatprep.subr.bf16.mxu0 0
  %144 = vmatpush1.bf16.msra.mxu0 0
  %145 = vmatprep.subr.bf16.mxu0 0
  %146 = vmatpush1.bf16.msra.mxu0 0
  %147 = vmatprep.mubr.bf16.mxu0 0
  %148 = vmatmul.mubr.bf16.gmra.mrb[0].mxu0 %v63
  %v149 = vpop.f32.mrb[0].mxu0
  %v150 = vadd.f32 %v53, %v149
  %v151 = vpop.f32.mrb[0].mxu0
  %v152 = vpop.f32.mrb[0].mxu0
  %v153 = vadd.f32 %v53, %v152
  %v154 = vpop.f32.mrb[0].mxu0
  %155 = vmatprep.mubr.bf16.mxu0 0
  %156 = vmatmul.mubr.bf16.gmra.mrb[0].mxu0 %v64
  %v157 = vpop.f32.mrb[0].mxu0
  %v158 = vadd.f32 %v53, %v157
  %v159 = vpop.f32.mrb[0].mxu0
  %v160 = vpop.f32.mrb[0].mxu0
  %v161 = vadd.f32 %v53, %v160
  %v162 = vpop.f32.mrb[0].mxu0
  %163 = vdwg.mxu0
  %vm164 = vcmp.gt.f32.partialorder %v150, 0.0
  %vm165 = vcmp.gt.f32.partialorder %v153, 0.0
  %vm166 = vcmp.gt.f32.partialorder %v158, 0.0
  %vm167 = vcmp.gt.f32.partialorder %v161, 0.0
  %v168 = vmul.f32 %v150, 0.2
  %v169 = vmul.f32 %v153, 0.2
  %v170 = vmul.f32 %v158, 0.2
  %v171 = vmul.f32 %v161, 0.2
  %v172 = vsel %vm164, %v150, %v168
  %v173 = vsel %vm165, %v153, %v169
  %v174 = vsel %vm166, %v158, %v170
  %v175 = vsel %vm167, %v161, %v171
  %176 = vst [vmem:[#allocation2] sm:$0xff] 0
  %177 = vst [vmem:[#allocation2 + $0x18] sm:$0xff] 0
  %v178 = vpack.c.bf16 %v173, %v172
  %v179 = vpack.c.bf16 %v175, %v174
  %180 = vst [vmem:[#allocation2 + $0x8] sm:$0xff] %v178
  %181 = vst [vmem:[#allocation2 + $0x10] sm:$0xff] %v179
  %s182 = scalar_lea.vmem %s0, 16
  %v183 = vld [vmem:[%s182] sm:$0xf]
  %v184 = vld [vmem:[%s182 + $0x4] sm:$0xf]
  %v185 = vld [vmem:[%s182 + $0x8] sm:$0xf]
  %v186 = vld [vmem:[%s182 + $0xc] sm:$0xf]
  %v187 = vld [vmem:[%s1] sm:$0xf]
  %v188 = vld [vmem:[%s1 + $0x4] sm:$0xf]
  %v189 = vld [vmem:[%s1 + $0x8] sm:$0xf]
  %v190 = vld [vmem:[%s1 + $0xc] sm:$0xf]
  %v191 = vld [vmem:[%s1 + $0x10] sm:$0xf]
  %v192 = vld [vmem:[%s1 + $0x14] sm:$0xf]
  %v193 = vld [vmem:[%s1 + $0x18] sm:$0xf]
  %v194 = vld [vmem:[%s1 + $0x1c] sm:$0xf]
  %v195 = vld [vmem:[%s1 + $0x20] sm:$0xf]
  %v196 = vld [vmem:[%s1 + $0x24] sm:$0xf]
  %v197 = vld [vmem:[%s1 + $0x28] sm:$0xf]
  %v198 = vld [vmem:[%s1 + $0x2c] sm:$0xf]
  %v199 = vld [vmem:[%s1 + $0x30] sm:$0xf]
  %v200 = vld [vmem:[%s1 + $0x34] sm:$0xf]
  %v201 = vld [vmem:[%s1 + $0x38] sm:$0xf]
  %v202 = vld [vmem:[%s1 + $0x3c] sm:$0xf]
  %v203 = vld [vmem:[%s2] sm:$0x1]
  %v205 = vlaneseq
  %v206 = vshrl.u32 %v205, 7
  %v207 = vsub.s32 0, %v206
  %v208 = vrot.slane %v203, %v207
  %v214 = vunpack.c.l.b16 %v183
  %v215 = vunpack.c.l.b16 %v184
  %v216 = vunpack.c.l.b16 %v185
  %v217 = vunpack.c.l.b16 %v186
  %v218 = vpack.c.b16 %v215, %v214
  %v219 = vpack.c.b16 %v217, %v216
  %v238 = vunpack.c.l.b16 %v187
  %v239 = vunpack.c.l.b16 %v188
  %v240 = vunpack.c.l.b16 %v189
  %v241 = vunpack.c.l.b16 %v190
  %v242 = vunpack.c.l.b16 %v191
  %v243 = vunpack.c.l.b16 %v192
  %v244 = vunpack.c.l.b16 %v193
  %v245 = vunpack.c.l.b16 %v194
  %v246 = vunpack.c.l.b16 %v195
  %v247 = vunpack.c.l.b16 %v196
  %v248 = vunpack.c.l.b16 %v197
  %v249 = vunpack.c.l.b16 %v198
  %v250 = vunpack.c.l.b16 %v199
  %v251 = vunpack.c.l.b16 %v200
  %v252 = vunpack.c.l.b16 %v201
  %v253 = vunpack.c.l.b16 %v202
  %v254 = vpack.c.b16 %v239, %v238
  %v255 = vpack.c.b16 %v241, %v240
  %v256 = vpack.c.b16 %v243, %v242
  %v257 = vpack.c.b16 %v245, %v244
  %v258 = vpack.c.b16 %v247, %v246
  %v259 = vpack.c.b16 %v249, %v248
  %v260 = vpack.c.b16 %v251, %v250
  %v261 = vpack.c.b16 %v253, %v252
  %270 = vmatprep.subr.bf16.mxu0 0
  %271 = vmatpush1.bf16.msra.mxu0 %v254
  %272 = vmatprep.subr.bf16.mxu0 0
  %273 = vmatpush1.bf16.msra.mxu0 %v255
  %274 = vmatprep.subr.bf16.mxu0 0
  %275 = vmatpush1.bf16.msra.mxu0 %v256
  %276 = vmatprep.subr.bf16.mxu0 0
  %277 = vmatpush1.bf16.msra.mxu0 %v257
  %278 = vmatprep.subr.bf16.mxu0 0
  %279 = vmatpush1.bf16.msra.mxu0 %v258
  %280 = vmatprep.subr.bf16.mxu0 0
  %281 = vmatpush1.bf16.msra.mxu0 %v259
  %282 = vmatprep.subr.bf16.mxu0 0
  %283 = vmatpush1.bf16.msra.mxu0 %v260
  %284 = vmatprep.subr.bf16.mxu0 0
  %285 = vmatpush1.bf16.msra.mxu0 %v261
  %286 = vmatprep.subr.bf16.mxu0 0
  %287 = vmatpush1.bf16.msra.mxu0 0
  %288 = vmatprep.subr.bf16.mxu0 0
  %289 = vmatpush1.bf16.msra.mxu0 0
  %290 = vmatprep.subr.bf16.mxu0 0
  %291 = vmatpush1.bf16.msra.mxu0 0
  %292 = vmatprep.subr.bf16.mxu0 0
  %293 = vmatpush1.bf16.msra.mxu0 0
  %294 = vmatprep.subr.bf16.mxu0 0
  %295 = vmatpush1.bf16.msra.mxu0 0
  %296 = vmatprep.subr.bf16.mxu0 0
  %297 = vmatpush1.bf16.msra.mxu0 0
  %298 = vmatprep.subr.bf16.mxu0 0
  %299 = vmatpush1.bf16.msra.mxu0 0
  %300 = vmatprep.subr.bf16.mxu0 0
  %301 = vmatpush1.bf16.msra.mxu0 0
  %302 = vmatprep.mubr.bf16.mxu0 0
  %303 = vmatmul.mubr.bf16.gmra.mrb[0].mxu0 %v218
  %v304 = vpop.f32.mrb[0].mxu0
  %v305 = vadd.f32 %v208, %v304
  %v306 = vpop.f32.mrb[0].mxu0
  %v307 = vpop.f32.mrb[0].mxu0
  %v308 = vadd.f32 %v208, %v307
  %v309 = vpop.f32.mrb[0].mxu0
  %310 = vmatprep.mubr.bf16.mxu0 0
  %311 = vmatmul.mubr.bf16.gmra.mrb[0].mxu0 %v219
  %v312 = vpop.f32.mrb[0].mxu0
  %v313 = vadd.f32 %v208, %v312
  %v314 = vpop.f32.mrb[0].mxu0
  %v315 = vpop.f32.mrb[0].mxu0
  %v316 = vadd.f32 %v208, %v315
  %v317 = vpop.f32.mrb[0].mxu0
  %318 = vdwg.mxu0
  %vm319 = vcmp.gt.f32.partialorder %v305, 0.0
  %vm320 = vcmp.gt.f32.partialorder %v308, 0.0
  %vm321 = vcmp.gt.f32.partialorder %v313, 0.0
  %vm322 = vcmp.gt.f32.partialorder %v316, 0.0
  %v323 = vmul.f32 %v305, 0.2
  %v324 = vmul.f32 %v308, 0.2
  %v325 = vmul.f32 %v313, 0.2
  %v326 = vmul.f32 %v316, 0.2
  %v327 = vsel %vm319, %v305, %v323
  %v328 = vsel %vm320, %v308, %v324
  %v329 = vsel %vm321, %v313, %v325
  %v330 = vsel %vm322, %v316, %v326
  %s331 = scalar_lea.vmem [#allocation2], 32
  %332 = vst [vmem:[%s331] sm:$0xff] 0
  %333 = vst [vmem:[%s331 + $0x18] sm:$0xff] 0
  %v334 = vpack.c.bf16 %v328, %v327
  %v335 = vpack.c.bf16 %v330, %v329
  %336 = vst [vmem:[%s331 + $0x8] sm:$0xff] %v334
  %337 = vst [vmem:[%s331 + $0x10] sm:$0xff] %v335
  %v338 = vld [vmem:[#allocation2] sm:$0xf0]
  %v339 = vld [vmem:[#allocation2 + $0x8] sm:$0xff]
  %v340 = vld [vmem:[#allocation2 + $0x10] sm:$0xf]
  %vm344 = vcmask 1043456
  %v345 = vrot.slane %v338, 4
  %v346 = vrot.slane %v339, 4
  %v347 = vsel %vm344, %v345, %v346
  %v348 = vrot.slane %v340, 4
  %v349 = vsel %vm344, %v346, %v348
  %352 = vst [vmem:[#allocation3] sm:$0xff] %v347
  %353 = vst [vmem:[#allocation3 + $0x48] sm:$0xff] %v349
  %v354 = vld [vmem:[%s331] sm:$0xf0]
  %v355 = vld [vmem:[%s331 + $0x8] sm:$0xff]
  %v356 = vld [vmem:[%s331 + $0x10] sm:$0xf]
  %v360 = vrot.slane %v354, 4
  %v361 = vrot.slane %v355, 4
  %v362 = vsel %vm344, %v360, %v361
  %v363 = vrot.slane %v356, 4
  %v364 = vsel %vm344, %v361, %v363
  %367 = vst [vmem:[#allocation3 + $0x90] sm:$0xff] %v362
  %368 = vst [vmem:[#allocation3 + $0xd8] sm:$0xff] %v364
  %v369 = vld [vmem:[#allocation2] sm:$0xf0]
  %v370 = vld [vmem:[#allocation2 + $0x8] sm:$0xff]
  %v371 = vld [vmem:[#allocation2 + $0x10] sm:$0x1f]
  %vm372 = vsmask.f32 3328
  %v374 = vshrl.u32 %v369, 16
  %v376 = vrot.slane %v374, 4
  %v377 = vshll.u32 %v369, 16
  %v379 = vrot.slane %v377, 5
  %v380 = vor.u32 %v376, %v379
  %v382 = vshrl.u32 %v370, 16
  %v384 = vrot.slane %v382, 4
  %v385 = vshll.u32 %v370, 16
  %v387 = vrot.slane %v385, 5
  %v388 = vor.u32 %v384, %v387
  %v389 = vsel %vm372, %v380, %v388
  %v391 = vshrl.u32 %v371, 16
  %v393 = vrot.slane %v391, 4
  %v394 = vshll.u32 %v371, 16
  %v396 = vrot.slane %v394, 5
  %v397 = vor.u32 %v393, %v396
  %v398 = vsel %vm372, %v388, %v397
  %401 = vst [vmem:[#allocation3 + $0x8] sm:$0xff] %v389
  %402 = vst [vmem:[#allocation3 + $0x50] sm:$0xff] %v398
  %v403 = vld [vmem:[%s331] sm:$0xf0]
  %v404 = vld [vmem:[%s331 + $0x8] sm:$0xff]
  %v405 = vld [vmem:[%s331 + $0x10] sm:$0x1f]
  %v407 = vshrl.u32 %v403, 16
  %v409 = vrot.slane %v407, 4
  %v410 = vshll.u32 %v403, 16
  %v412 = vrot.slane %v410, 5
  %v413 = vor.u32 %v409, %v412
  %v415 = vshrl.u32 %v404, 16
  %v417 = vrot.slane %v415, 4
  %v418 = vshll.u32 %v404, 16
  %v420 = vrot.slane %v418, 5
  %v421 = vor.u32 %v417, %v420
  %v422 = vsel %vm372, %v413, %v421
  %v424 = vshrl.u32 %v405, 16
  %v426 = vrot.slane %v424, 4
  %v427 = vshll.u32 %v405, 16
  %v429 = vrot.slane %v427, 5
  %v430 = vor.u32 %v426, %v429
  %v431 = vsel %vm372, %v421, %v430
  %434 = vst [vmem:[#allocation3 + $0x98] sm:$0xff] %v422
  %435 = vst [vmem:[#allocation3 + $0xe0] sm:$0xff] %v431
  %v436 = vld [vmem:[#allocation2] sm:$0xe0]
  %v437 = vld [vmem:[#allocation2 + $0x8] sm:$0xff]
  %v438 = vld [vmem:[#allocation2 + $0x10] sm:$0x1f]
  %vm442 = vcmask 1042432
  %v443 = vrot.slane %v436, 5
  %v444 = vrot.slane %v437, 5
  %v445 = vsel %vm442, %v443, %v444
  %v446 = vrot.slane %v438, 5
  %v447 = vsel %vm442, %v444, %v446
  %450 = vst [vmem:[#allocation3 + $0x10] sm:$0xff] %v445
  %451 = vst [vmem:[#allocation3 + $0x58] sm:$0xff] %v447
  %v452 = vld [vmem:[%s331] sm:$0xe0]
  %v453 = vld [vmem:[%s331 + $0x8] sm:$0xff]
  %v454 = vld [vmem:[%s331 + $0x10] sm:$0x1f]
  %v458 = vrot.slane %v452, 5
  %v459 = vrot.slane %v453, 5
  %v460 = vsel %vm442, %v458, %v459
  %v461 = vrot.slane %v454, 5
  %v462 = vsel %vm442, %v459, %v461
  %465 = vst [vmem:[#allocation3 + $0xa0] sm:$0xff] %v460
  %466 = vst [vmem:[#allocation3 + $0xe8] sm:$0xff] %v462
  %v467 = vld [vmem:[#allocation2] sm:$0xe0]
  %v468 = vld [vmem:[#allocation2 + $0x8] sm:$0xff]
  %v469 = vld [vmem:[#allocation2 + $0x10] sm:$0x3f]
  %vm470 = vsmask.f32 2304
  %v472 = vshrl.u32 %v467, 16
  %v474 = vrot.slane %v472, 5
  %v475 = vshll.u32 %v467, 16
  %v477 = vrot.slane %v475, 6
  %v478 = vor.u32 %v474, %v477
  %v480 = vshrl.u32 %v468, 16
  %v482 = vrot.slane %v480, 5
  %v483 = vshll.u32 %v468, 16
  %v485 = vrot.slane %v483, 6
  %v486 = vor.u32 %v482, %v485
  %v487 = vsel %vm470, %v478, %v486
  %v489 = vshrl.u32 %v469, 16
  %v491 = vrot.slane %v489, 5
  %v492 = vshll.u32 %v469, 16
  %v494 = vrot.slane %v492, 6
  %v495 = vor.u32 %v491, %v494
  %v496 = vsel %vm470, %v486, %v495
  %499 = vst [vmem:[#allocation3 + $0x18] sm:$0xff] %v487
  %500 = vst [vmem:[#allocation3 + $0x60] sm:$0xff] %v496
  %v501 = vld [vmem:[%s331] sm:$0xe0]
  %v502 = vld [vmem:[%s331 + $0x8] sm:$0xff]
  %v503 = vld [vmem:[%s331 + $0x10] sm:$0x3f]
  %v505 = vshrl.u32 %v501, 16
  %v507 = vrot.slane %v505, 5
  %v508 = vshll.u32 %v501, 16
  %v510 = vrot.slane %v508, 6
  %v511 = vor.u32 %v507, %v510
  %v513 = vshrl.u32 %v502, 16
  %v515 = vrot.slane %v513, 5
  %v516 = vshll.u32 %v502, 16
  %v518 = vrot.slane %v516, 6
  %v519 = vor.u32 %v515, %v518
  %v520 = vsel %vm470, %v511, %v519
  %v522 = vshrl.u32 %v503, 16
  %v524 = vrot.slane %v522, 5
  %v525 = vshll.u32 %v503, 16
  %v527 = vrot.slane %v525, 6
  %v528 = vor.u32 %v524, %v527
  %v529 = vsel %vm470, %v519, %v528
  %532 = vst [vmem:[#allocation3 + $0xa8] sm:$0xff] %v520
  %533 = vst [vmem:[#allocation3 + $0xf0] sm:$0xff] %v529
  %v534 = vld [vmem:[#allocation2] sm:$0xc0]
  %v535 = vld [vmem:[#allocation2 + $0x8] sm:$0xff]
  %v536 = vld [vmem:[#allocation2 + $0x10] sm:$0x3f]
  %vm540 = vcmask 1041408
  %v541 = vrot.slane %v534, 6
  %v542 = vrot.slane %v535, 6
  %v543 = vsel %vm540, %v541, %v542
  %v544 = vrot.slane %v536, 6
  %v545 = vsel %vm540, %v542, %v544
  %548 = vst [vmem:[#allocation3 + $0x20] sm:$0xff] %v543
  %549 = vst [vmem:[#allocation3 + $0x68] sm:$0xff] %v545
  %v550 = vld [vmem:[%s331] sm:$0xc0]
  %v551 = vld [vmem:[%s331 + $0x8] sm:$0xff]
  %v552 = vld [vmem:[%s331 + $0x10] sm:$0x3f]
  %v556 = vrot.slane %v550, 6
  %v557 = vrot.slane %v551, 6
  %v558 = vsel %vm540, %v556, %v557
  %v559 = vrot.slane %v552, 6
  %v560 = vsel %vm540, %v557, %v559
  %563 = vst [vmem:[#allocation3 + $0xb0] sm:$0xff] %v558
  %564 = vst [vmem:[#allocation3 + $0xf8] sm:$0xff] %v560
  %v565 = vld [vmem:[#allocation2] sm:$0xc0]
  %v566 = vld [vmem:[#allocation2 + $0x8] sm:$0xff]
  %v567 = vld [vmem:[#allocation2 + $0x10] sm:$0x7f]
  %vm568 = vsmask.f32 1280
  %v570 = vshrl.u32 %v565, 16
  %v572 = vrot.slane %v570, 6
  %v573 = vshll.u32 %v565, 16
  %v575 = vrot.slane %v573, 7
  %v576 = vor.u32 %v572, %v575
  %v578 = vshrl.u32 %v566, 16
  %v580 = vrot.slane %v578, 6
  %v581 = vshll.u32 %v566, 16
  %v583 = vrot.slane %v581, 7
  %v584 = vor.u32 %v580, %v583
  %v585 = vsel %vm568, %v576, %v584
  %v587 = vshrl.u32 %v567, 16
  %v589 = vrot.slane %v587, 6
  %v590 = vshll.u32 %v567, 16
  %v592 = vrot.slane %v590, 7
  %v593 = vor.u32 %v589, %v592
  %v594 = vsel %vm568, %v584, %v593
  %597 = vst [vmem:[#allocation3 + $0x28] sm:$0xff] %v585
  %598 = vst [vmem:[#allocation3 + $0x70] sm:$0xff] %v594
  %v599 = vld [vmem:[%s331] sm:$0xc0]
  %v600 = vld [vmem:[%s331 + $0x8] sm:$0xff]
  %v601 = vld [vmem:[%s331 + $0x10] sm:$0x7f]
  %v603 = vshrl.u32 %v599, 16
  %v605 = vrot.slane %v603, 6
  %v606 = vshll.u32 %v599, 16
  %v608 = vrot.slane %v606, 7
  %v609 = vor.u32 %v605, %v608
  %v611 = vshrl.u32 %v600, 16
  %v613 = vrot.slane %v611, 6
  %v614 = vshll.u32 %v600, 16
  %v616 = vrot.slane %v614, 7
  %v617 = vor.u32 %v613, %v616
  %v618 = vsel %vm568, %v609, %v617
  %v620 = vshrl.u32 %v601, 16
  %v622 = vrot.slane %v620, 6
  %v623 = vshll.u32 %v601, 16
  %v625 = vrot.slane %v623, 7
  %v626 = vor.u32 %v622, %v625
  %v627 = vsel %vm568, %v617, %v626
  %630 = vst [vmem:[#allocation3 + $0xb8] sm:$0xff] %v618
  %631 = vst [vmem:[#allocation3 + $0x100] sm:$0xff] %v627
  %v632 = vld [vmem:[#allocation2] sm:$0x80]
  %v633 = vld [vmem:[#allocation2 + $0x8] sm:$0xff]
  %v634 = vld [vmem:[#allocation2 + $0x10] sm:$0x7f]
  %vm638 = vcmask 1040384
  %v639 = vrot.slane %v632, 7
  %v640 = vrot.slane %v633, 7
  %v641 = vsel %vm638, %v639, %v640
  %v642 = vrot.slane %v634, 7
  %v643 = vsel %vm638, %v640, %v642
  %646 = vst [vmem:[#allocation3 + $0x30] sm:$0xff] %v641
  %647 = vst [vmem:[#allocation3 + $0x78] sm:$0xff] %v643
  %v648 = vld [vmem:[%s331] sm:$0x80]
  %v649 = vld [vmem:[%s331 + $0x8] sm:$0xff]
  %v650 = vld [vmem:[%s331 + $0x10] sm:$0x7f]
  %v654 = vrot.slane %v648, 7
  %v655 = vrot.slane %v649, 7
  %v656 = vsel %vm638, %v654, %v655
  %v657 = vrot.slane %v650, 7
  %v658 = vsel %vm638, %v655, %v657
  %661 = vst [vmem:[#allocation3 + $0xc0] sm:$0xff] %v656
  %662 = vst [vmem:[#allocation3 + $0x108] sm:$0xff] %v658
  %v663 = vld [vmem:[#allocation2] sm:$0x80]
  %v664 = vld [vmem:[#allocation2 + $0x8] sm:$0xff]
  %v665 = vld [vmem:[#allocation2 + $0x10] sm:$0xff]
  %vm666 = vsmask.f32 256
  %v668 = vshrl.u32 %v663, 16
  %v670 = vrot.slane %v668, 7
  %v672 = vshrl.u32 %v664, 16
  %v674 = vrot.slane %v672, 7
  %v675 = vshll.u32 %v664, 16
  %v677 = vor.u32 %v674, %v675
  %v678 = vsel %vm666, %v670, %v677
  %v680 = vshrl.u32 %v665, 16
  %v682 = vrot.slane %v680, 7
  %v683 = vshll.u32 %v665, 16
  %v685 = vor.u32 %v682, %v683
  %v686 = vsel %vm666, %v674, %v685
  %689 = vst [vmem:[#allocation3 + $0x38] sm:$0xff] %v678
  %690 = vst [vmem:[#allocation3 + $0x80] sm:$0xff] %v686
  %v691 = vld [vmem:[%s331] sm:$0x80]
  %v692 = vld [vmem:[%s331 + $0x8] sm:$0xff]
  %v693 = vld [vmem:[%s331 + $0x10] sm:$0xff]
  %v695 = vshrl.u32 %v691, 16
  %v697 = vrot.slane %v695, 7
  %v699 = vshrl.u32 %v692, 16
  %v701 = vrot.slane %v699, 7
  %v702 = vshll.u32 %v692, 16
  %v704 = vor.u32 %v701, %v702
  %v705 = vsel %vm666, %v697, %v704
  %v707 = vshrl.u32 %v693, 16
  %v709 = vrot.slane %v707, 7
  %v710 = vshll.u32 %v693, 16
  %v712 = vor.u32 %v709, %v710
  %v713 = vsel %vm666, %v701, %v712
  %716 = vst [vmem:[#allocation3 + $0xc8] sm:$0xff] %v705
  %717 = vst [vmem:[#allocation3 + $0x110] sm:$0xff] %v713
  %v718 = vld [vmem:[#allocation2 + $0x8] sm:$0xff]
  %v719 = vld [vmem:[#allocation2 + $0x10] sm:$0xff]
  %720 = vst [vmem:[#allocation3 + $0x40] sm:$0xff] %v718
  %721 = vst [vmem:[#allocation3 + $0x88] sm:$0xff] %v719
  %v722 = vld [vmem:[%s331 + $0x8] sm:$0xff]
  %v723 = vld [vmem:[%s331 + $0x10] sm:$0xff]
  %724 = vst [vmem:[#allocation3 + $0xd0] sm:$0xff] %v722
  %725 = vst [vmem:[#allocation3 + $0x118] sm:$0xff] %v723
  %v726 = vld [vmem:[#allocation3] sm:$0xff]
  %v727 = vld [vmem:[#allocation3 + $0x8] sm:$0xff]
  %v728 = vld [vmem:[#allocation3 + $0x10] sm:$0xff]
  %v729 = vld [vmem:[#allocation3 + $0x18] sm:$0xff]
  %v730 = vld [vmem:[#allocation3 + $0x20] sm:$0xff]
  %v731 = vld [vmem:[#allocation3 + $0x28] sm:$0xff]
  %v732 = vld [vmem:[#allocation3 + $0x30] sm:$0xff]
  %v733 = vld [vmem:[#allocation3 + $0x38] sm:$0xff]
  %v734 = vld [vmem:[#allocation3 + $0x40] sm:$0xff]
  %v735 = vld [vmem:[#allocation3 + $0x48] sm:$0xff]
  %v736 = vld [vmem:[#allocation3 + $0x50] sm:$0xff]
  %v737 = vld [vmem:[#allocation3 + $0x58] sm:$0xff]
  %v738 = vld [vmem:[#allocation3 + $0x60] sm:$0xff]
  %v739 = vld [vmem:[#allocation3 + $0x68] sm:$0xff]
  %v740 = vld [vmem:[#allocation3 + $0x70] sm:$0xff]
  %v741 = vld [vmem:[#allocation3 + $0x78] sm:$0xff]
  %v742 = vld [vmem:[#allocation3 + $0x80] sm:$0xff]
  %v743 = vld [vmem:[#allocation3 + $0x88] sm:$0xff]
  %v744 = vld [vmem:[#allocation3 + $0x90] sm:$0xff]
  %v745 = vld [vmem:[#allocation3 + $0x98] sm:$0xff]
  %v746 = vld [vmem:[#allocation3 + $0xa0] sm:$0xff]
  %v747 = vld [vmem:[#allocation3 + $0xa8] sm:$0xff]
  %v748 = vld [vmem:[#allocation3 + $0xb0] sm:$0xff]
  %v749 = vld [vmem:[#allocation3 + $0xb8] sm:$0xff]
  %v750 = vld [vmem:[#allocation3 + $0xc0] sm:$0xff]
  %v751 = vld [vmem:[#allocation3 + $0xc8] sm:$0xff]
  %v752 = vld [vmem:[#allocation3 + $0xd0] sm:$0xff]
  %v753 = vld [vmem:[#allocation3 + $0xd8] sm:$0xff]
  %v754 = vld [vmem:[#allocation3 + $0xe0] sm:$0xff]
  %v755 = vld [vmem:[#allocation3 + $0xe8] sm:$0xff]
  %v756 = vld [vmem:[#allocation3 + $0xf0] sm:$0xff]
  %v757 = vld [vmem:[#allocation3 + $0xf8] sm:$0xff]
  %v758 = vld [vmem:[#allocation3 + $0x100] sm:$0xff]
  %v759 = vld [vmem:[#allocation3 + $0x108] sm:$0xff]
  %v760 = vld [vmem:[#allocation3 + $0x110] sm:$0xff]
  %v761 = vld [vmem:[#allocation3 + $0x118] sm:$0xff]
  %v762 = vld [vmem:[%s3] sm:$0xff]
  %v763 = vld [vmem:[%s3 + $0x8] sm:$0xff]
  %v764 = vld [vmem:[%s3 + $0x10] sm:$0xff]
  %v765 = vld [vmem:[%s3 + $0x18] sm:$0xff]
  %v766 = vld [vmem:[%s3 + $0x20] sm:$0xff]
  %v767 = vld [vmem:[%s3 + $0x28] sm:$0xff]
  %v768 = vld [vmem:[%s3 + $0x30] sm:$0xff]
  %v769 = vld [vmem:[%s3 + $0x38] sm:$0xff]
  %v770 = vld [vmem:[%s3 + $0x40] sm:$0xff]
  %v771 = vld [vmem:[%s3 + $0x48] sm:$0xff]
  %v772 = vld [vmem:[%s3 + $0x50] sm:$0xff]
  %v773 = vld [vmem:[%s3 + $0x58] sm:$0xff]
  %v774 = vld [vmem:[%s3 + $0x60] sm:$0xff]
  %v775 = vld [vmem:[%s3 + $0x68] sm:$0xff]
  %v776 = vld [vmem:[%s3 + $0x70] sm:$0xff]
  %v777 = vld [vmem:[%s3 + $0x78] sm:$0xff]
  %v778 = vld [vmem:[%s3 + $0x80] sm:$0xff]
  %v779 = vld [vmem:[%s3 + $0x88] sm:$0xff]
  %v780 = vld [vmem:[%s3 + $0x90] sm:$0xff]
  %v781 = vld [vmem:[%s3 + $0x98] sm:$0xff]
  %v782 = vld [vmem:[%s3 + $0xa0] sm:$0xff]
  %v783 = vld [vmem:[%s3 + $0xa8] sm:$0xff]
  %v784 = vld [vmem:[%s3 + $0xb0] sm:$0xff]
  %v785 = vld [vmem:[%s3 + $0xb8] sm:$0xff]
  %v786 = vld [vmem:[%s3 + $0xc0] sm:$0xff]
  %v787 = vld [vmem:[%s3 + $0xc8] sm:$0xff]
  %v788 = vld [vmem:[%s3 + $0xd0] sm:$0xff]
  %v789 = vld [vmem:[%s3 + $0xd8] sm:$0xff]
  %v790 = vld [vmem:[%s3 + $0xe0] sm:$0xff]
  %v791 = vld [vmem:[%s3 + $0xe8] sm:$0xff]
  %v792 = vld [vmem:[%s3 + $0xf0] sm:$0xff]
  %v793 = vld [vmem:[%s3 + $0xf8] sm:$0xff]
  %v794 = vld [vmem:[%s3 + $0x100] sm:$0xff]
  %v795 = vld [vmem:[%s3 + $0x108] sm:$0xff]
  %v796 = vld [vmem:[%s3 + $0x110] sm:$0xff]
  %v797 = vld [vmem:[%s3 + $0x118] sm:$0xff]
  %v798 = vld [vmem:[%s3 + $0x120] sm:$0xff]
  %v799 = vld [vmem:[%s3 + $0x128] sm:$0xff]
  %v800 = vld [vmem:[%s3 + $0x130] sm:$0xff]
  %v801 = vld [vmem:[%s3 + $0x138] sm:$0xff]
  %v802 = vld [vmem:[%s3 + $0x140] sm:$0xff]
  %v803 = vld [vmem:[%s3 + $0x148] sm:$0xff]
  %v804 = vld [vmem:[%s3 + $0x150] sm:$0xff]
  %v805 = vld [vmem:[%s3 + $0x158] sm:$0xff]
  %v806 = vld [vmem:[%s3 + $0x160] sm:$0xff]
  %v807 = vld [vmem:[%s3 + $0x168] sm:$0xff]
  %v808 = vld [vmem:[%s3 + $0x170] sm:$0xff]
  %v809 = vld [vmem:[%s3 + $0x178] sm:$0xff]
  %v810 = vld [vmem:[%s3 + $0x180] sm:$0xff]
  %v811 = vld [vmem:[%s3 + $0x188] sm:$0xff]
  %v812 = vld [vmem:[%s3 + $0x190] sm:$0xff]
  %v813 = vld [vmem:[%s3 + $0x198] sm:$0xff]
  %v814 = vld [vmem:[%s3 + $0x1a0] sm:$0xff]
  %v815 = vld [vmem:[%s3 + $0x1a8] sm:$0xff]
  %v816 = vld [vmem:[%s3 + $0x1b0] sm:$0xff]
  %v817 = vld [vmem:[%s3 + $0x1b8] sm:$0xff]
  %v818 = vld [vmem:[%s3 + $0x1c0] sm:$0xff]
  %v819 = vld [vmem:[%s3 + $0x1c8] sm:$0xff]
  %v820 = vld [vmem:[%s3 + $0x1d0] sm:$0xff]
  %v821 = vld [vmem:[%s3 + $0x1d8] sm:$0xff]
  %v822 = vld [vmem:[%s3 + $0x1e0] sm:$0xff]
  %v823 = vld [vmem:[%s3 + $0x1e8] sm:$0xff]
  %v824 = vld [vmem:[%s3 + $0x1f0] sm:$0xff]
  %v825 = vld [vmem:[%s3 + $0x1f8] sm:$0xff]
  %v826 = vld [vmem:[%s3 + $0x200] sm:$0xff]
  %v827 = vld [vmem:[%s3 + $0x208] sm:$0xff]
  %v828 = vld [vmem:[%s3 + $0x210] sm:$0xff]
  %v829 = vld [vmem:[%s3 + $0x218] sm:$0xff]
  %v830 = vld [vmem:[%s3 + $0x220] sm:$0xff]
  %v831 = vld [vmem:[%s3 + $0x228] sm:$0xff]
  %v832 = vld [vmem:[%s3 + $0x230] sm:$0xff]
  %v833 = vld [vmem:[%s3 + $0x238] sm:$0xff]
  %v834 = vld [vmem:[%s3 + $0x240] sm:$0xff]
  %v835 = vld [vmem:[%s3 + $0x248] sm:$0xff]
  %v836 = vld [vmem:[%s3 + $0x250] sm:$0xff]
  %v837 = vld [vmem:[%s3 + $0x258] sm:$0xff]
  %v838 = vld [vmem:[%s3 + $0x260] sm:$0xff]
  %v839 = vld [vmem:[%s3 + $0x268] sm:$0xff]
  %v840 = vld [vmem:[%s3 + $0x270] sm:$0xff]
  %v841 = vld [vmem:[%s3 + $0x278] sm:$0xff]
  %v842 = vld [vmem:[%s3 + $0x280] sm:$0xff]
  %v843 = vld [vmem:[%s3 + $0x288] sm:$0xff]
  %v844 = vld [vmem:[%s3 + $0x290] sm:$0xff]
  %v845 = vld [vmem:[%s3 + $0x298] sm:$0xff]
  %v846 = vld [vmem:[%s3 + $0x2a0] sm:$0xff]
  %v847 = vld [vmem:[%s3 + $0x2a8] sm:$0xff]
  %v848 = vld [vmem:[%s3 + $0x2b0] sm:$0xff]
  %v849 = vld [vmem:[%s3 + $0x2b8] sm:$0xff]
  %v850 = vld [vmem:[%s3 + $0x2c0] sm:$0xff]
  %v851 = vld [vmem:[%s3 + $0x2c8] sm:$0xff]
  %v852 = vld [vmem:[%s3 + $0x2d0] sm:$0xff]
  %v853 = vld [vmem:[%s3 + $0x2d8] sm:$0xff]
  %v854 = vld [vmem:[%s3 + $0x2e0] sm:$0xff]
  %v855 = vld [vmem:[%s3 + $0x2e8] sm:$0xff]
  %v856 = vld [vmem:[%s3 + $0x2f0] sm:$0xff]
  %v857 = vld [vmem:[%s3 + $0x2f8] sm:$0xff]
  %v858 = vld [vmem:[%s3 + $0x300] sm:$0xff]
  %v859 = vld [vmem:[%s3 + $0x308] sm:$0xff]
  %v860 = vld [vmem:[%s3 + $0x310] sm:$0xff]
  %v861 = vld [vmem:[%s3 + $0x318] sm:$0xff]
  %v862 = vld [vmem:[%s3 + $0x320] sm:$0xff]
  %v863 = vld [vmem:[%s3 + $0x328] sm:$0xff]
  %v864 = vld [vmem:[%s3 + $0x330] sm:$0xff]
  %v865 = vld [vmem:[%s3 + $0x338] sm:$0xff]
  %v866 = vld [vmem:[%s3 + $0x340] sm:$0xff]
  %v867 = vld [vmem:[%s3 + $0x348] sm:$0xff]
  %v868 = vld [vmem:[%s3 + $0x350] sm:$0xff]
  %v869 = vld [vmem:[%s3 + $0x358] sm:$0xff]
  %v870 = vld [vmem:[%s3 + $0x360] sm:$0xff]
  %v871 = vld [vmem:[%s3 + $0x368] sm:$0xff]
  %v872 = vld [vmem:[%s3 + $0x370] sm:$0xff]
  %v873 = vld [vmem:[%s3 + $0x378] sm:$0xff]
  %v874 = vld [vmem:[%s3 + $0x380] sm:$0xff]
  %v875 = vld [vmem:[%s3 + $0x388] sm:$0xff]
  %v876 = vld [vmem:[%s3 + $0x390] sm:$0xff]
  %v877 = vld [vmem:[%s3 + $0x398] sm:$0xff]
  %v878 = vld [vmem:[%s3 + $0x3a0] sm:$0xff]
  %v879 = vld [vmem:[%s3 + $0x3a8] sm:$0xff]
  %v880 = vld [vmem:[%s3 + $0x3b0] sm:$0xff]
  %v881 = vld [vmem:[%s3 + $0x3b8] sm:$0xff]
  %v882 = vld [vmem:[%s3 + $0x3c0] sm:$0xff]
  %v883 = vld [vmem:[%s3 + $0x3c8] sm:$0xff]
  %v884 = vld [vmem:[%s3 + $0x3d0] sm:$0xff]
  %v885 = vld [vmem:[%s3 + $0x3d8] sm:$0xff]
  %v886 = vld [vmem:[%s3 + $0x3e0] sm:$0xff]
  %v887 = vld [vmem:[%s3 + $0x3e8] sm:$0xff]
  %v888 = vld [vmem:[%s3 + $0x3f0] sm:$0xff]
  %v889 = vld [vmem:[%s3 + $0x3f8] sm:$0xff]
  %v890 = vld [vmem:[%s3 + $0x400] sm:$0xff]
  %v891 = vld [vmem:[%s3 + $0x408] sm:$0xff]
  %v892 = vld [vmem:[%s3 + $0x410] sm:$0xff]
  %v893 = vld [vmem:[%s3 + $0x418] sm:$0xff]
  %v894 = vld [vmem:[%s3 + $0x420] sm:$0xff]
  %v895 = vld [vmem:[%s3 + $0x428] sm:$0xff]
  %v896 = vld [vmem:[%s3 + $0x430] sm:$0xff]
  %v897 = vld [vmem:[%s3 + $0x438] sm:$0xff]
  %v898 = vld [vmem:[%s3 + $0x440] sm:$0xff]
  %v899 = vld [vmem:[%s3 + $0x448] sm:$0xff]
  %v900 = vld [vmem:[%s3 + $0x450] sm:$0xff]
  %v901 = vld [vmem:[%s3 + $0x458] sm:$0xff]
  %v902 = vld [vmem:[%s3 + $0x460] sm:$0xff]
  %v903 = vld [vmem:[%s3 + $0x468] sm:$0xff]
  %v904 = vld [vmem:[%s3 + $0x470] sm:$0xff]
  %v905 = vld [vmem:[%s3 + $0x478] sm:$0xff]
  %v906 = vld [vmem:[#allocation2 + $0x8] sm:$0xff]
  %v907 = vld [vmem:[#allocation2 + $0x10] sm:$0xff]
  %v908 = vld [vmem:[#allocation2 + $0x18] sm:$0x1]
  %vm909 = vsmask.f32 7424
  %v911 = vshrl.u32 %v906, 16
  %v913 = vshll.u32 %v906, 16
  %v915 = vrot.slane %v913, 1
  %v916 = vor.u32 %v911, %v915
  %v918 = vshll.u32 %v907, 16
  %v920 = vrot.slane %v918, 1
  %v921 = vsel %vm909, %v916, %v920
  %v922 = vshrl.u32 %v907, 16
  %v924 = vor.u32 %v922, %v920
  %v926 = vshll.u32 %v908, 16
  %v928 = vrot.slane %v926, 1
  %v929 = vsel %vm909, %v924, %v928
  %932 = vst [vmem:[#allocation4] sm:$0xff] %v921
  %933 = vst [vmem:[#allocation4 + $0x40] sm:$0xff] %v929
  %v934 = vld [vmem:[%s331 + $0x8] sm:$0xff]
  %v935 = vld [vmem:[%s331 + $0x10] sm:$0xff]
  %v936 = vld [vmem:[%s331 + $0x18] sm:$0x1]
  %v938 = vshrl.u32 %v934, 16
  %v940 = vshll.u32 %v934, 16
  %v942 = vrot.slane %v940, 1
  %v943 = vor.u32 %v938, %v942
  %v945 = vshll.u32 %v935, 16
  %v947 = vrot.slane %v945, 1
  %v948 = vsel %vm909, %v943, %v947
  %v949 = vshrl.u32 %v935, 16
  %v951 = vor.u32 %v949, %v947
  %v953 = vshll.u32 %v936, 16
  %v955 = vrot.slane %v953, 1
  %v956 = vsel %vm909, %v951, %v955
  %959 = vst [vmem:[#allocation4 + $0x80] sm:$0xff] %v948
  %960 = vst [vmem:[#allocation4 + $0xc0] sm:$0xff] %v956
  %v961 = vld [vmem:[#allocation2 + $0x8] sm:$0xfe]
  %v962 = vld [vmem:[#allocation2 + $0x10] sm:$0xff]
  %v963 = vld [vmem:[#allocation2 + $0x18] sm:$0x1]
  %vm967 = vcmask 1046528
  %v968 = vrot.slane %v961, 1
  %v969 = vrot.slane %v962, 1
  %v970 = vsel %vm967, %v968, %v969
  %v971 = vrot.slane %v963, 1
  %v972 = vsel %vm967, %v969, %v971
  %975 = vst [vmem:[#allocation4 + $0x8] sm:$0xff] %v970
  %976 = vst [vmem:[#allocation4 + $0x48] sm:$0xff] %v972
  %v977 = vld [vmem:[%s331 + $0x8] sm:$0xfe]
  %v978 = vld [vmem:[%s331 + $0x10] sm:$0xff]
  %v979 = vld [vmem:[%s331 + $0x18] sm:$0x1]
  %v983 = vrot.slane %v977, 1
  %v984 = vrot.slane %v978, 1
  %v985 = vsel %vm967, %v983, %v984
  %v986 = vrot.slane %v979, 1
  %v987 = vsel %vm967, %v984, %v986
  %990 = vst [vmem:[#allocation4 + $0x88] sm:$0xff] %v985
  %991 = vst [vmem:[#allocation4 + $0xc8] sm:$0xff] %v987
  %v992 = vld [vmem:[#allocation2 + $0x8] sm:$0xfe]
  %v993 = vld [vmem:[#allocation2 + $0x10] sm:$0xff]
  %v994 = vld [vmem:[#allocation2 + $0x18] sm:$0x3]
  %vm995 = vsmask.f32 6400
  %v997 = vshrl.u32 %v992, 16
  %v999 = vrot.slane %v997, 1
  %v1000 = vshll.u32 %v992, 16
  %v1002 = vrot.slane %v1000, 2
  %v1003 = vor.u32 %v999, %v1002
  %v1005 = vshrl.u32 %v993, 16
  %v1007 = vrot.slane %v1005, 1
  %v1008 = vshll.u32 %v993, 16
  %v1010 = vrot.slane %v1008, 2
  %v1011 = vor.u32 %v1007, %v1010
  %v1012 = vsel %vm995, %v1003, %v1011
  %v1014 = vshrl.u32 %v994, 16
  %v1016 = vrot.slane %v1014, 1
  %v1017 = vshll.u32 %v994, 16
  %v1019 = vrot.slane %v1017, 2
  %v1020 = vor.u32 %v1016, %v1019
  %v1021 = vsel %vm995, %v1011, %v1020
  %1024 = vst [vmem:[#allocation4 + $0x10] sm:$0xff] %v1012
  %1025 = vst [vmem:[#allocation4 + $0x50] sm:$0xff] %v1021
  %v1026 = vld [vmem:[%s331 + $0x8] sm:$0xfe]
  %v1027 = vld [vmem:[%s331 + $0x10] sm:$0xff]
  %v1028 = vld [vmem:[%s331 + $0x18] sm:$0x3]
  %v1030 = vshrl.u32 %v1026, 16
  %v1032 = vrot.slane %v1030, 1
  %v1033 = vshll.u32 %v1026, 16
  %v1035 = vrot.slane %v1033, 2
  %v1036 = vor.u32 %v1032, %v1035
  %v1038 = vshrl.u32 %v1027, 16
  %v1040 = vrot.slane %v1038, 1
  %v1041 = vshll.u32 %v1027, 16
  %v1043 = vrot.slane %v1041, 2
  %v1044 = vor.u32 %v1040, %v1043
  %v1045 = vsel %vm995, %v1036, %v1044
  %v1047 = vshrl.u32 %v1028, 16
  %v1049 = vrot.slane %v1047, 1
  %v1050 = vshll.u32 %v1028, 16
  %v1052 = vrot.slane %v1050, 2
  %v1053 = vor.u32 %v1049, %v1052
  %v1054 = vsel %vm995, %v1044, %v1053
  %1057 = vst [vmem:[#allocation4 + $0x90] sm:$0xff] %v1045
  %1058 = vst [vmem:[#allocation4 + $0xd0] sm:$0xff] %v1054
  %v1059 = vld [vmem:[#allocation2 + $0x8] sm:$0xfc]
  %v1060 = vld [vmem:[#allocation2 + $0x10] sm:$0xff]
  %v1061 = vld [vmem:[#allocation2 + $0x18] sm:$0x3]
  %vm1065 = vcmask 1045504
  %v1066 = vrot.slane %v1059, 2
  %v1067 = vrot.slane %v1060, 2
  %v1068 = vsel %vm1065, %v1066, %v1067
  %v1069 = vrot.slane %v1061, 2
  %v1070 = vsel %vm1065, %v1067, %v1069
  %1073 = vst [vmem:[#allocation4 + $0x18] sm:$0xff] %v1068
  %1074 = vst [vmem:[#allocation4 + $0x58] sm:$0xff] %v1070
  %v1075 = vld [vmem:[%s331 + $0x8] sm:$0xfc]
  %v1076 = vld [vmem:[%s331 + $0x10] sm:$0xff]
  %v1077 = vld [vmem:[%s331 + $0x18] sm:$0x3]
  %v1081 = vrot.slane %v1075, 2
  %v1082 = vrot.slane %v1076, 2
  %v1083 = vsel %vm1065, %v1081, %v1082
  %v1084 = vrot.slane %v1077, 2
  %v1085 = vsel %vm1065, %v1082, %v1084
  %1088 = vst [vmem:[#allocation4 + $0x98] sm:$0xff] %v1083
  %1089 = vst [vmem:[#allocation4 + $0xd8] sm:$0xff] %v1085
  %v1090 = vld [vmem:[#allocation2 + $0x8] sm:$0xfc]
  %v1091 = vld [vmem:[#allocation2 + $0x10] sm:$0xff]
  %v1092 = vld [vmem:[#allocation2 + $0x18] sm:$0x7]
  %vm1093 = vsmask.f32 5376
  %v1095 = vshrl.u32 %v1090, 16
  %v1097 = vrot.slane %v1095, 2
  %v1098 = vshll.u32 %v1090, 16
  %v1100 = vrot.slane %v1098, 3
  %v1101 = vor.u32 %v1097, %v1100
  %v1103 = vshrl.u32 %v1091, 16
  %v1105 = vrot.slane %v1103, 2
  %v1106 = vshll.u32 %v1091, 16
  %v1108 = vrot.slane %v1106, 3
  %v1109 = vor.u32 %v1105, %v1108
  %v1110 = vsel %vm1093, %v1101, %v1109
  %v1112 = vshrl.u32 %v1092, 16
  %v1114 = vrot.slane %v1112, 2
  %v1115 = vshll.u32 %v1092, 16
  %v1117 = vrot.slane %v1115, 3
  %v1118 = vor.u32 %v1114, %v1117
  %v1119 = vsel %vm1093, %v1109, %v1118
  %1122 = vst [vmem:[#allocation4 + $0x20] sm:$0xff] %v1110
  %1123 = vst [vmem:[#allocation4 + $0x60] sm:$0xff] %v1119
  %v1124 = vld [vmem:[%s331 + $0x8] sm:$0xfc]
  %v1125 = vld [vmem:[%s331 + $0x10] sm:$0xff]
  %v1126 = vld [vmem:[%s331 + $0x18] sm:$0x7]
  %v1128 = vshrl.u32 %v1124, 16
  %v1130 = vrot.slane %v1128, 2
  %v1131 = vshll.u32 %v1124, 16
  %v1133 = vrot.slane %v1131, 3
  %v1134 = vor.u32 %v1130, %v1133
  %v1136 = vshrl.u32 %v1125, 16
  %v1138 = vrot.slane %v1136, 2
  %v1139 = vshll.u32 %v1125, 16
  %v1141 = vrot.slane %v1139, 3
  %v1142 = vor.u32 %v1138, %v1141
  %v1143 = vsel %vm1093, %v1134, %v1142
  %v1145 = vshrl.u32 %v1126, 16
  %v1147 = vrot.slane %v1145, 2
  %v1148 = vshll.u32 %v1126, 16
  %v1150 = vrot.slane %v1148, 3
  %v1151 = vor.u32 %v1147, %v1150
  %v1152 = vsel %vm1093, %v1142, %v1151
  %1155 = vst [vmem:[#allocation4 + $0xa0] sm:$0xff] %v1143
  %1156 = vst [vmem:[#allocation4 + $0xe0] sm:$0xff] %v1152
  %v1157 = vld [vmem:[#allocation2 + $0x8] sm:$0xf8]
  %v1158 = vld [vmem:[#allocation2 + $0x10] sm:$0xff]
  %v1159 = vld [vmem:[#allocation2 + $0x18] sm:$0x7]
  %vm1163 = vcmask 1044480
  %v1164 = vrot.slane %v1157, 3
  %v1165 = vrot.slane %v1158, 3
  %v1166 = vsel %vm1163, %v1164, %v1165
  %v1167 = vrot.slane %v1159, 3
  %v1168 = vsel %vm1163, %v1165, %v1167
  %1171 = vst [vmem:[#allocation4 + $0x28] sm:$0xff] %v1166
  %1172 = vst [vmem:[#allocation4 + $0x68] sm:$0xff] %v1168
  %v1173 = vld [vmem:[%s331 + $0x8] sm:$0xf8]
  %v1174 = vld [vmem:[%s331 + $0x10] sm:$0xff]
  %v1175 = vld [vmem:[%s331 + $0x18] sm:$0x7]
  %v1179 = vrot.slane %v1173, 3
  %v1180 = vrot.slane %v1174, 3
  %v1181 = vsel %vm1163, %v1179, %v1180
  %v1182 = vrot.slane %v1175, 3
  %v1183 = vsel %vm1163, %v1180, %v1182
  %1186 = vst [vmem:[#allocation4 + $0xa8] sm:$0xff] %v1181
  %1187 = vst [vmem:[#allocation4 + $0xe8] sm:$0xff] %v1183
  %v1188 = vld [vmem:[#allocation2 + $0x8] sm:$0xf8]
  %v1189 = vld [vmem:[#allocation2 + $0x10] sm:$0xff]
  %v1190 = vld [vmem:[#allocation2 + $0x18] sm:$0xf]
  %vm1191 = vsmask.f32 4352
  %v1193 = vshrl.u32 %v1188, 16
  %v1195 = vrot.slane %v1193, 3
  %v1196 = vshll.u32 %v1188, 16
  %v1198 = vrot.slane %v1196, 4
  %v1199 = vor.u32 %v1195, %v1198
  %v1201 = vshrl.u32 %v1189, 16
  %v1203 = vrot.slane %v1201, 3
  %v1204 = vshll.u32 %v1189, 16
  %v1206 = vrot.slane %v1204, 4
  %v1207 = vor.u32 %v1203, %v1206
  %v1208 = vsel %vm1191, %v1199, %v1207
  %v1210 = vshrl.u32 %v1190, 16
  %v1212 = vrot.slane %v1210, 3
  %v1213 = vshll.u32 %v1190, 16
  %v1215 = vrot.slane %v1213, 4
  %v1216 = vor.u32 %v1212, %v1215
  %v1217 = vsel %vm1191, %v1207, %v1216
  %1220 = vst [vmem:[#allocation4 + $0x30] sm:$0xff] %v1208
  %1221 = vst [vmem:[#allocation4 + $0x70] sm:$0xff] %v1217
  %v1222 = vld [vmem:[%s331 + $0x8] sm:$0xf8]
  %v1223 = vld [vmem:[%s331 + $0x10] sm:$0xff]
  %v1224 = vld [vmem:[%s331 + $0x18] sm:$0xf]
  %v1226 = vshrl.u32 %v1222, 16
  %v1228 = vrot.slane %v1226, 3
  %v1229 = vshll.u32 %v1222, 16
  %v1231 = vrot.slane %v1229, 4
  %v1232 = vor.u32 %v1228, %v1231
  %v1234 = vshrl.u32 %v1223, 16
  %v1236 = vrot.slane %v1234, 3
  %v1237 = vshll.u32 %v1223, 16
  %v1239 = vrot.slane %v1237, 4
  %v1240 = vor.u32 %v1236, %v1239
  %v1241 = vsel %vm1191, %v1232, %v1240
  %v1243 = vshrl.u32 %v1224, 16
  %v1245 = vrot.slane %v1243, 3
  %v1246 = vshll.u32 %v1224, 16
  %v1248 = vrot.slane %v1246, 4
  %v1249 = vor.u32 %v1245, %v1248
  %v1250 = vsel %vm1191, %v1240, %v1249
  %1253 = vst [vmem:[#allocation4 + $0xb0] sm:$0xff] %v1241
  %1254 = vst [vmem:[#allocation4 + $0xf0] sm:$0xff] %v1250
  %v1255 = vld [vmem:[#allocation2 + $0x8] sm:$0xf0]
  %v1256 = vld [vmem:[#allocation2 + $0x10] sm:$0xff]
  %v1257 = vld [vmem:[#allocation2 + $0x18] sm:$0xf]
  %v1261 = vrot.slane %v1255, 4
  %v1262 = vrot.slane %v1256, 4
  %v1263 = vsel %vm344, %v1261, %v1262
  %v1264 = vrot.slane %v1257, 4
  %v1265 = vsel %vm344, %v1262, %v1264
  %1268 = vst [vmem:[#allocation4 + $0x38] sm:$0xff] %v1263
  %1269 = vst [vmem:[#allocation4 + $0x78] sm:$0xff] %v1265
  %v1270 = vld [vmem:[%s331 + $0x8] sm:$0xf0]
  %v1271 = vld [vmem:[%s331 + $0x10] sm:$0xff]
  %v1272 = vld [vmem:[%s331 + $0x18] sm:$0xf]
  %v1276 = vrot.slane %v1270, 4
  %v1277 = vrot.slane %v1271, 4
  %v1278 = vsel %vm344, %v1276, %v1277
  %v1279 = vrot.slane %v1272, 4
  %v1280 = vsel %vm344, %v1277, %v1279
  %1283 = vst [vmem:[#allocation4 + $0xb8] sm:$0xff] %v1278
  %1284 = vst [vmem:[#allocation4 + $0xf8] sm:$0xff] %v1280
  %v1285 = vld [vmem:[#allocation4] sm:$0xff]
  %v1286 = vld [vmem:[#allocation4 + $0x8] sm:$0xff]
  %v1287 = vld [vmem:[#allocation4 + $0x10] sm:$0xff]
  %v1288 = vld [vmem:[#allocation4 + $0x18] sm:$0xff]
  %v1289 = vld [vmem:[#allocation4 + $0x20] sm:$0xff]
  %v1290 = vld [vmem:[#allocation4 + $0x28] sm:$0xff]
  %v1291 = vld [vmem:[#allocation4 + $0x30] sm:$0xff]
  %v1292 = vld [vmem:[#allocation4 + $0x38] sm:$0xff]
  %v1293 = vld [vmem:[#allocation4 + $0x40] sm:$0xff]
  %v1294 = vld [vmem:[#allocation4 + $0x48] sm:$0xff]
  %v1295 = vld [vmem:[#allocation4 + $0x50] sm:$0xff]
  %v1296 = vld [vmem:[#allocation4 + $0x58] sm:$0xff]
  %v1297 = vld [vmem:[#allocation4 + $0x60] sm:$0xff]
  %v1298 = vld [vmem:[#allocation4 + $0x68] sm:$0xff]
  %v1299 = vld [vmem:[#allocation4 + $0x70] sm:$0xff]
  %v1300 = vld [vmem:[#allocation4 + $0x78] sm:$0xff]
  %v1301 = vld [vmem:[#allocation4 + $0x80] sm:$0xff]
  %v1302 = vld [vmem:[#allocation4 + $0x88] sm:$0xff]
  %v1303 = vld [vmem:[#allocation4 + $0x90] sm:$0xff]
  %v1304 = vld [vmem:[#allocation4 + $0x98] sm:$0xff]
  %v1305 = vld [vmem:[#allocation4 + $0xa0] sm:$0xff]
  %v1306 = vld [vmem:[#allocation4 + $0xa8] sm:$0xff]
  %v1307 = vld [vmem:[#allocation4 + $0xb0] sm:$0xff]
  %v1308 = vld [vmem:[#allocation4 + $0xb8] sm:$0xff]
  %v1309 = vld [vmem:[#allocation4 + $0xc0] sm:$0xff]
  %v1310 = vld [vmem:[#allocation4 + $0xc8] sm:$0xff]
  %v1311 = vld [vmem:[#allocation4 + $0xd0] sm:$0xff]
  %v1312 = vld [vmem:[#allocation4 + $0xd8] sm:$0xff]
  %v1313 = vld [vmem:[#allocation4 + $0xe0] sm:$0xff]
  %v1314 = vld [vmem:[#allocation4 + $0xe8] sm:$0xff]
  %v1315 = vld [vmem:[#allocation4 + $0xf0] sm:$0xff]
  %v1316 = vld [vmem:[#allocation4 + $0xf8] sm:$0xff]
  %v1317 = vld [vmem:[%s3 + $0x480] sm:$0xff]
  %v1318 = vld [vmem:[%s3 + $0x488] sm:$0xff]
  %v1319 = vld [vmem:[%s3 + $0x490] sm:$0xff]
  %v1320 = vld [vmem:[%s3 + $0x498] sm:$0xff]
  %v1321 = vld [vmem:[%s3 + $0x4a0] sm:$0xff]
  %v1322 = vld [vmem:[%s3 + $0x4a8] sm:$0xff]
  %v1323 = vld [vmem:[%s3 + $0x4b0] sm:$0xff]
  %v1324 = vld [vmem:[%s3 + $0x4b8] sm:$0xff]
  %v1325 = vld [vmem:[%s3 + $0x4c0] sm:$0xff]
  %v1326 = vld [vmem:[%s3 + $0x4c8] sm:$0xff]
  %v1327 = vld [vmem:[%s3 + $0x4d0] sm:$0xff]
  %v1328 = vld [vmem:[%s3 + $0x4d8] sm:$0xff]
  %v1329 = vld [vmem:[%s3 + $0x4e0] sm:$0xff]
  %v1330 = vld [vmem:[%s3 + $0x4e8] sm:$0xff]
  %v1331 = vld [vmem:[%s3 + $0x4f0] sm:$0xff]
  %v1332 = vld [vmem:[%s3 + $0x4f8] sm:$0xff]
  %v1333 = vld [vmem:[%s3 + $0x500] sm:$0xff]
  %v1334 = vld [vmem:[%s3 + $0x508] sm:$0xff]
  %v1335 = vld [vmem:[%s3 + $0x510] sm:$0xff]
  %v1336 = vld [vmem:[%s3 + $0x518] sm:$0xff]
  %v1337 = vld [vmem:[%s3 + $0x520] sm:$0xff]
  %v1338 = vld [vmem:[%s3 + $0x528] sm:$0xff]
  %v1339 = vld [vmem:[%s3 + $0x530] sm:$0xff]
  %v1340 = vld [vmem:[%s3 + $0x538] sm:$0xff]
  %v1341 = vld [vmem:[%s3 + $0x540] sm:$0xff]
  %v1342 = vld [vmem:[%s3 + $0x548] sm:$0xff]
  %v1343 = vld [vmem:[%s3 + $0x550] sm:$0xff]
  %v1344 = vld [vmem:[%s3 + $0x558] sm:$0xff]
  %v1345 = vld [vmem:[%s3 + $0x560] sm:$0xff]
  %v1346 = vld [vmem:[%s3 + $0x568] sm:$0xff]
  %v1347 = vld [vmem:[%s3 + $0x570] sm:$0xff]
  %v1348 = vld [vmem:[%s3 + $0x578] sm:$0xff]
  %v1349 = vld [vmem:[%s3 + $0x580] sm:$0xff]
  %v1350 = vld [vmem:[%s3 + $0x588] sm:$0xff]
  %v1351 = vld [vmem:[%s3 + $0x590] sm:$0xff]
  %v1352 = vld [vmem:[%s3 + $0x598] sm:$0xff]
  %v1353 = vld [vmem:[%s3 + $0x5a0] sm:$0xff]
  %v1354 = vld [vmem:[%s3 + $0x5a8] sm:$0xff]
  %v1355 = vld [vmem:[%s3 + $0x5b0] sm:$0xff]
  %v1356 = vld [vmem:[%s3 + $0x5b8] sm:$0xff]
  %v1357 = vld [vmem:[%s3 + $0x5c0] sm:$0xff]
  %v1358 = vld [vmem:[%s3 + $0x5c8] sm:$0xff]
  %v1359 = vld [vmem:[%s3 + $0x5d0] sm:$0xff]
  %v1360 = vld [vmem:[%s3 + $0x5d8] sm:$0xff]
  %v1361 = vld [vmem:[%s3 + $0x5e0] sm:$0xff]
  %v1362 = vld [vmem:[%s3 + $0x5e8] sm:$0xff]
  %v1363 = vld [vmem:[%s3 + $0x5f0] sm:$0xff]
  %v1364 = vld [vmem:[%s3 + $0x5f8] sm:$0xff]
  %v1365 = vld [vmem:[%s3 + $0x600] sm:$0xff]
  %v1366 = vld [vmem:[%s3 + $0x608] sm:$0xff]
  %v1367 = vld [vmem:[%s3 + $0x610] sm:$0xff]
  %v1368 = vld [vmem:[%s3 + $0x618] sm:$0xff]
  %v1369 = vld [vmem:[%s3 + $0x620] sm:$0xff]
  %v1370 = vld [vmem:[%s3 + $0x628] sm:$0xff]
  %v1371 = vld [vmem:[%s3 + $0x630] sm:$0xff]
  %v1372 = vld [vmem:[%s3 + $0x638] sm:$0xff]
  %v1373 = vld [vmem:[%s3 + $0x640] sm:$0xff]
  %v1374 = vld [vmem:[%s3 + $0x648] sm:$0xff]
  %v1375 = vld [vmem:[%s3 + $0x650] sm:$0xff]
  %v1376 = vld [vmem:[%s3 + $0x658] sm:$0xff]
  %v1377 = vld [vmem:[%s3 + $0x660] sm:$0xff]
  %v1378 = vld [vmem:[%s3 + $0x668] sm:$0xff]
  %v1379 = vld [vmem:[%s3 + $0x670] sm:$0xff]
  %v1380 = vld [vmem:[%s3 + $0x678] sm:$0xff]
  %v1381 = vld [vmem:[%s3 + $0x680] sm:$0xff]
  %v1382 = vld [vmem:[%s3 + $0x688] sm:$0xff]
  %v1383 = vld [vmem:[%s3 + $0x690] sm:$0xff]
  %v1384 = vld [vmem:[%s3 + $0x698] sm:$0xff]
  %v1385 = vld [vmem:[%s3 + $0x6a0] sm:$0xff]
  %v1386 = vld [vmem:[%s3 + $0x6a8] sm:$0xff]
  %v1387 = vld [vmem:[%s3 + $0x6b0] sm:$0xff]
  %v1388 = vld [vmem:[%s3 + $0x6b8] sm:$0xff]
  %v1389 = vld [vmem:[%s3 + $0x6c0] sm:$0xff]
  %v1390 = vld [vmem:[%s3 + $0x6c8] sm:$0xff]
  %v1391 = vld [vmem:[%s3 + $0x6d0] sm:$0xff]
  %v1392 = vld [vmem:[%s3 + $0x6d8] sm:$0xff]
  %v1393 = vld [vmem:[%s3 + $0x6e0] sm:$0xff]
  %v1394 = vld [vmem:[%s3 + $0x6e8] sm:$0xff]
  %v1395 = vld [vmem:[%s3 + $0x6f0] sm:$0xff]
  %v1396 = vld [vmem:[%s3 + $0x6f8] sm:$0xff]
  %v1397 = vld [vmem:[%s3 + $0x700] sm:$0xff]
  %v1398 = vld [vmem:[%s3 + $0x708] sm:$0xff]
  %v1399 = vld [vmem:[%s3 + $0x710] sm:$0xff]
  %v1400 = vld [vmem:[%s3 + $0x718] sm:$0xff]
  %v1401 = vld [vmem:[%s3 + $0x720] sm:$0xff]
  %v1402 = vld [vmem:[%s3 + $0x728] sm:$0xff]
  %v1403 = vld [vmem:[%s3 + $0x730] sm:$0xff]
  %v1404 = vld [vmem:[%s3 + $0x738] sm:$0xff]
  %v1405 = vld [vmem:[%s3 + $0x740] sm:$0xff]
  %v1406 = vld [vmem:[%s3 + $0x748] sm:$0xff]
  %v1407 = vld [vmem:[%s3 + $0x750] sm:$0xff]
  %v1408 = vld [vmem:[%s3 + $0x758] sm:$0xff]
  %v1409 = vld [vmem:[%s3 + $0x760] sm:$0xff]
  %v1410 = vld [vmem:[%s3 + $0x768] sm:$0xff]
  %v1411 = vld [vmem:[%s3 + $0x770] sm:$0xff]
  %v1412 = vld [vmem:[%s3 + $0x778] sm:$0xff]
  %v1413 = vld [vmem:[%s3 + $0x780] sm:$0xff]
  %v1414 = vld [vmem:[%s3 + $0x788] sm:$0xff]
  %v1415 = vld [vmem:[%s3 + $0x790] sm:$0xff]
  %v1416 = vld [vmem:[%s3 + $0x798] sm:$0xff]
  %v1417 = vld [vmem:[%s3 + $0x7a0] sm:$0xff]
  %v1418 = vld [vmem:[%s3 + $0x7a8] sm:$0xff]
  %v1419 = vld [vmem:[%s3 + $0x7b0] sm:$0xff]
  %v1420 = vld [vmem:[%s3 + $0x7b8] sm:$0xff]
  %v1421 = vld [vmem:[%s3 + $0x7c0] sm:$0xff]
  %v1422 = vld [vmem:[%s3 + $0x7c8] sm:$0xff]
  %v1423 = vld [vmem:[%s3 + $0x7d0] sm:$0xff]
  %v1424 = vld [vmem:[%s3 + $0x7d8] sm:$0xff]
  %v1425 = vld [vmem:[%s3 + $0x7e0] sm:$0xff]
  %v1426 = vld [vmem:[%s3 + $0x7e8] sm:$0xff]
  %v1427 = vld [vmem:[%s3 + $0x7f0] sm:$0xff]
  %v1428 = vld [vmem:[%s3 + $0x7f8] sm:$0xff]
  %v1429 = vld [vmem:[%s3 + $0x800] sm:$0xff]
  %v1430 = vld [vmem:[%s3 + $0x808] sm:$0xff]
  %v1431 = vld [vmem:[%s3 + $0x810] sm:$0xff]
  %v1432 = vld [vmem:[%s3 + $0x818] sm:$0xff]
  %v1433 = vld [vmem:[%s3 + $0x820] sm:$0xff]
  %v1434 = vld [vmem:[%s3 + $0x828] sm:$0xff]
  %v1435 = vld [vmem:[%s3 + $0x830] sm:$0xff]
  %v1436 = vld [vmem:[%s3 + $0x838] sm:$0xff]
  %v1437 = vld [vmem:[%s3 + $0x840] sm:$0xff]
  %v1438 = vld [vmem:[%s3 + $0x848] sm:$0xff]
  %v1439 = vld [vmem:[%s3 + $0x850] sm:$0xff]
  %v1440 = vld [vmem:[%s3 + $0x858] sm:$0xff]
  %v1441 = vld [vmem:[%s3 + $0x860] sm:$0xff]
  %v1442 = vld [vmem:[%s3 + $0x868] sm:$0xff]
  %v1443 = vld [vmem:[%s3 + $0x870] sm:$0xff]
  %v1444 = vld [vmem:[%s3 + $0x878] sm:$0xff]
  %v1573 = vunpack.c.l.b16 %v1317
  %v1574 = vunpack.c.h.b16 %v1317
  %v1575 = vunpack.c.l.b16 %v1318
  %v1576 = vunpack.c.h.b16 %v1318
  %v1577 = vunpack.c.l.b16 %v1319
  %v1578 = vunpack.c.h.b16 %v1319
  %v1579 = vunpack.c.l.b16 %v1320
  %v1580 = vunpack.c.h.b16 %v1320
  %v1581 = vunpack.c.l.b16 %v1321
  %v1582 = vunpack.c.h.b16 %v1321
  %v1583 = vunpack.c.l.b16 %v1322
  %v1584 = vunpack.c.h.b16 %v1322
  %v1585 = vunpack.c.l.b16 %v1323
  %v1586 = vunpack.c.h.b16 %v1323
  %v1587 = vunpack.c.l.b16 %v1324
  %v1588 = vunpack.c.h.b16 %v1324
  %v1589 = vunpack.c.l.b16 %v1325
  %v1590 = vunpack.c.h.b16 %v1325
  %v1591 = vunpack.c.l.b16 %v1326
  %v1592 = vunpack.c.h.b16 %v1326
  %v1593 = vunpack.c.l.b16 %v1327
  %v1594 = vunpack.c.h.b16 %v1327
  %v1595 = vunpack.c.l.b16 %v1328
  %v1596 = vunpack.c.h.b16 %v1328
  %v1597 = vunpack.c.l.b16 %v1329
  %v1598 = vunpack.c.h.b16 %v1329
  %v1599 = vunpack.c.l.b16 %v1330
  %v1600 = vunpack.c.h.b16 %v1330
  %v1601 = vunpack.c.l.b16 %v1331
  %v1602 = vunpack.c.h.b16 %v1331
  %v1603 = vunpack.c.l.b16 %v1332
  %v1604 = vunpack.c.h.b16 %v1332
  %v1605 = vunpack.c.l.b16 %v1333
  %v1606 = vunpack.c.h.b16 %v1333
  %v1607 = vunpack.c.l.b16 %v1334
  %v1608 = vunpack.c.h.b16 %v1334
  %v1609 = vunpack.c.l.b16 %v1335
  %v1610 = vunpack.c.h.b16 %v1335
  %v1611 = vunpack.c.l.b16 %v1336
  %v1612 = vunpack.c.h.b16 %v1336
  %v1613 = vunpack.c.l.b16 %v1337
  %v1614 = vunpack.c.h.b16 %v1337
  %v1615 = vunpack.c.l.b16 %v1338
  %v1616 = vunpack.c.h.b16 %v1338
  %v1617 = vunpack.c.l.b16 %v1339
  %v1618 = vunpack.c.h.b16 %v1339
  %v1619 = vunpack.c.l.b16 %v1340
  %v1620 = vunpack.c.h.b16 %v1340
  %v1621 = vunpack.c.l.b16 %v1341
  %v1622 = vunpack.c.h.b16 %v1341
  %v1623 = vunpack.c.l.b16 %v1342
  %v1624 = vunpack.c.h.b16 %v1342
  %v1625 = vunpack.c.l.b16 %v1343
  %v1626 = vunpack.c.h.b16 %v1343
  %v1627 = vunpack.c.l.b16 %v1344
  %v1628 = vunpack.c.h.b16 %v1344
  %v1629 = vunpack.c.l.b16 %v1345
  %v1630 = vunpack.c.h.b16 %v1345
  %v1631 = vunpack.c.l.b16 %v1346
  %v1632 = vunpack.c.h.b16 %v1346
  %v1633 = vunpack.c.l.b16 %v1347
  %v1634 = vunpack.c.h.b16 %v1347
  %v1635 = vunpack.c.l.b16 %v1348
  %v1636 = vunpack.c.h.b16 %v1348
  %v1637 = vunpack.c.l.b16 %v1349
  %v1638 = vunpack.c.h.b16 %v1349
  %v1639 = vunpack.c.l.b16 %v1350
  %v1640 = vunpack.c.h.b16 %v1350
  %v1641 = vunpack.c.l.b16 %v1351
  %v1642 = vunpack.c.h.b16 %v1351
  %v1643 = vunpack.c.l.b16 %v1352
  %v1644 = vunpack.c.h.b16 %v1352
  %v1645 = vunpack.c.l.b16 %v1353
  %v1646 = vunpack.c.h.b16 %v1353
  %v1647 = vunpack.c.l.b16 %v1354
  %v1648 = vunpack.c.h.b16 %v1354
  %v1649 = vunpack.c.l.b16 %v1355
  %v1650 = vunpack.c.h.b16 %v1355
  %v1651 = vunpack.c.l.b16 %v1356
  %v1652 = vunpack.c.h.b16 %v1356
  %v1653 = vunpack.c.l.b16 %v1357
  %v1654 = vunpack.c.h.b16 %v1357
  %v1655 = vunpack.c.l.b16 %v1358
  %v1656 = vunpack.c.h.b16 %v1358
  %v1657 = vunpack.c.l.b16 %v1359
  %v1658 = vunpack.c.h.b16 %v1359
  %v1659 = vunpack.c.l.b16 %v1360
  %v1660 = vunpack.c.h.b16 %v1360
  %v1661 = vunpack.c.l.b16 %v1361
  %v1662 = vunpack.c.h.b16 %v1361
  %v1663 = vunpack.c.l.b16 %v1362
  %v1664 = vunpack.c.h.b16 %v1362
  %v1665 = vunpack.c.l.b16 %v1363
  %v1666 = vunpack.c.h.b16 %v1363
  %v1667 = vunpack.c.l.b16 %v1364
  %v1668 = vunpack.c.h.b16 %v1364
  %v1669 = vunpack.c.l.b16 %v1365
  %v1670 = vunpack.c.h.b16 %v1365
  %v1671 = vunpack.c.l.b16 %v1366
  %v1672 = vunpack.c.h.b16 %v1366
  %v1673 = vunpack.c.l.b16 %v1367
  %v1674 = vunpack.c.h.b16 %v1367
  %v1675 = vunpack.c.l.b16 %v1368
  %v1676 = vunpack.c.h.b16 %v1368
  %v1677 = vunpack.c.l.b16 %v1369
  %v1678 = vunpack.c.h.b16 %v1369
  %v1679 = vunpack.c.l.b16 %v1370
  %v1680 = vunpack.c.h.b16 %v1370
  %v1681 = vunpack.c.l.b16 %v1371
  %v1682 = vunpack.c.h.b16 %v1371
  %v1683 = vunpack.c.l.b16 %v1372
  %v1684 = vunpack.c.h.b16 %v1372
  %v1685 = vunpack.c.l.b16 %v1373
  %v1686 = vunpack.c.h.b16 %v1373
  %v1687 = vunpack.c.l.b16 %v1374
  %v1688 = vunpack.c.h.b16 %v1374
  %v1689 = vunpack.c.l.b16 %v1375
  %v1690 = vunpack.c.h.b16 %v1375
  %v1691 = vunpack.c.l.b16 %v1376
  %v1692 = vunpack.c.h.b16 %v1376
  %v1693 = vunpack.c.l.b16 %v1377
  %v1694 = vunpack.c.h.b16 %v1377
  %v1695 = vunpack.c.l.b16 %v1378
  %v1696 = vunpack.c.h.b16 %v1378
  %v1697 = vunpack.c.l.b16 %v1379
  %v1698 = vunpack.c.h.b16 %v1379
  %v1699 = vunpack.c.l.b16 %v1380
  %v1700 = vunpack.c.h.b16 %v1380
  %v1701 = vunpack.c.l.b16 %v1381
  %v1702 = vunpack.c.h.b16 %v1381
  %v1703 = vunpack.c.l.b16 %v1382
  %v1704 = vunpack.c.h.b16 %v1382
  %v1705 = vunpack.c.l.b16 %v1383
  %v1706 = vunpack.c.h.b16 %v1383
  %v1707 = vunpack.c.l.b16 %v1384
  %v1708 = vunpack.c.h.b16 %v1384
  %v1709 = vunpack.c.l.b16 %v1385
  %v1710 = vunpack.c.h.b16 %v1385
  %v1711 = vunpack.c.l.b16 %v1386
  %v1712 = vunpack.c.h.b16 %v1386
  %v1713 = vunpack.c.l.b16 %v1387
  %v1714 = vunpack.c.h.b16 %v1387
  %v1715 = vunpack.c.l.b16 %v1388
  %v1716 = vunpack.c.h.b16 %v1388
  %v1717 = vunpack.c.l.b16 %v1389
  %v1718 = vunpack.c.h.b16 %v1389
  %v1719 = vunpack.c.l.b16 %v1390
  %v1720 = vunpack.c.h.b16 %v1390
  %v1721 = vunpack.c.l.b16 %v1391
  %v1722 = vunpack.c.h.b16 %v1391
  %v1723 = vunpack.c.l.b16 %v1392
  %v1724 = vunpack.c.h.b16 %v1392
  %v1725 = vunpack.c.l.b16 %v1393
  %v1726 = vunpack.c.h.b16 %v1393
  %v1727 = vunpack.c.l.b16 %v1394
  %v1728 = vunpack.c.h.b16 %v1394
  %v1729 = vunpack.c.l.b16 %v1395
  %v1730 = vunpack.c.h.b16 %v1395
  %v1731 = vunpack.c.l.b16 %v1396
  %v1732 = vunpack.c.h.b16 %v1396
  %v1733 = vunpack.c.l.b16 %v1397
  %v1734 = vunpack.c.h.b16 %v1397
  %v1735 = vunpack.c.l.b16 %v1398
  %v1736 = vunpack.c.h.b16 %v1398
  %v1737 = vunpack.c.l.b16 %v1399
  %v1738 = vunpack.c.h.b16 %v1399
  %v1739 = vunpack.c.l.b16 %v1400
  %v1740 = vunpack.c.h.b16 %v1400
  %v1741 = vunpack.c.l.b16 %v1401
  %v1742 = vunpack.c.h.b16 %v1401
  %v1743 = vunpack.c.l.b16 %v1402
  %v1744 = vunpack.c.h.b16 %v1402
  %v1745 = vunpack.c.l.b16 %v1403
  %v1746 = vunpack.c.h.b16 %v1403
  %v1747 = vunpack.c.l.b16 %v1404
  %v1748 = vunpack.c.h.b16 %v1404
  %v1749 = vunpack.c.l.b16 %v1405
  %v1750 = vunpack.c.h.b16 %v1405
  %v1751 = vunpack.c.l.b16 %v1406
  %v1752 = vunpack.c.h.b16 %v1406
  %v1753 = vunpack.c.l.b16 %v1407
  %v1754 = vunpack.c.h.b16 %v1407
  %v1755 = vunpack.c.l.b16 %v1408
  %v1756 = vunpack.c.h.b16 %v1408
  %v1757 = vunpack.c.l.b16 %v1409
  %v1758 = vunpack.c.h.b16 %v1409
  %v1759 = vunpack.c.l.b16 %v1410
  %v1760 = vunpack.c.h.b16 %v1410
  %v1761 = vunpack.c.l.b16 %v1411
  %v1762 = vunpack.c.h.b16 %v1411
  %v1763 = vunpack.c.l.b16 %v1412
  %v1764 = vunpack.c.h.b16 %v1412
  %v1765 = vunpack.c.l.b16 %v1413
  %v1766 = vunpack.c.h.b16 %v1413
  %v1767 = vunpack.c.l.b16 %v1414
  %v1768 = vunpack.c.h.b16 %v1414
  %v1769 = vunpack.c.l.b16 %v1415
  %v1770 = vunpack.c.h.b16 %v1415
  %v1771 = vunpack.c.l.b16 %v1416
  %v1772 = vunpack.c.h.b16 %v1416
  %v1773 = vunpack.c.l.b16 %v1417
  %v1774 = vunpack.c.h.b16 %v1417
  %v1775 = vunpack.c.l.b16 %v1418
  %v1776 = vunpack.c.h.b16 %v1418
  %v1777 = vunpack.c.l.b16 %v1419
  %v1778 = vunpack.c.h.b16 %v1419
  %v1779 = vunpack.c.l.b16 %v1420
  %v1780 = vunpack.c.h.b16 %v1420
  %v1781 = vunpack.c.l.b16 %v1421
  %v1782 = vunpack.c.h.b16 %v1421
  %v1783 = vunpack.c.l.b16 %v1422
  %v1784 = vunpack.c.h.b16 %v1422
  %v1785 = vunpack.c.l.b16 %v1423
  %v1786 = vunpack.c.h.b16 %v1423
  %v1787 = vunpack.c.l.b16 %v1424
  %v1788 = vunpack.c.h.b16 %v1424
  %v1789 = vunpack.c.l.b16 %v1425
  %v1790 = vunpack.c.h.b16 %v1425
  %v1791 = vunpack.c.l.b16 %v1426
  %v1792 = vunpack.c.h.b16 %v1426
  %v1793 = vunpack.c.l.b16 %v1427
  %v1794 = vunpack.c.h.b16 %v1427
  %v1795 = vunpack.c.l.b16 %v1428
  %v1796 = vunpack.c.h.b16 %v1428
  %v1797 = vunpack.c.l.b16 %v1429
  %v1798 = vunpack.c.h.b16 %v1429
  %v1799 = vunpack.c.l.b16 %v1430
  %v1800 = vunpack.c.h.b16 %v1430
  %v1801 = vunpack.c.l.b16 %v1431
  %v1802 = vunpack.c.h.b16 %v1431
  %v1803 = vunpack.c.l.b16 %v1432
  %v1804 = vunpack.c.h.b16 %v1432
  %v1805 = vunpack.c.l.b16 %v1433
  %v1806 = vunpack.c.h.b16 %v1433
  %v1807 = vunpack.c.l.b16 %v1434
  %v1808 = vunpack.c.h.b16 %v1434
  %v1809 = vunpack.c.l.b16 %v1435
  %v1810 = vunpack.c.h.b16 %v1435
  %v1811 = vunpack.c.l.b16 %v1436
  %v1812 = vunpack.c.h.b16 %v1436
  %v1813 = vunpack.c.l.b16 %v1437
  %v1814 = vunpack.c.h.b16 %v1437
  %v1815 = vunpack.c.l.b16 %v1438
  %v1816 = vunpack.c.h.b16 %v1438
  %v1817 = vunpack.c.l.b16 %v1439
  %v1818 = vunpack.c.h.b16 %v1439
  %v1819 = vunpack.c.l.b16 %v1440
  %v1820 = vunpack.c.h.b16 %v1440
  %v1821 = vunpack.c.l.b16 %v1441
  %v1822 = vunpack.c.h.b16 %v1441
  %v1823 = vunpack.c.l.b16 %v1442
  %v1824 = vunpack.c.h.b16 %v1442
  %v1825 = vunpack.c.l.b16 %v1443
  %v1826 = vunpack.c.h.b16 %v1443
  %v1827 = vunpack.c.l.b16 %v1444
  %v1828 = vunpack.c.h.b16 %v1444
  %v1829 = vpack.c.b16 %v1575, %v1573
  %v1830 = vpack.c.b16 %v1576, %v1574
  %v1831 = vpack.c.b16 %v1579, %v1577
  %v1832 = vpack.c.b16 %v1580, %v1578
  %v1833 = vpack.c.b16 %v1583, %v1581
  %v1834 = vpack.c.b16 %v1584, %v1582
  %v1835 = vpack.c.b16 %v1587, %v1585
  %v1836 = vpack.c.b16 %v1588, %v1586
  %v1837 = vpack.c.b16 %v1591, %v1589
  %v1838 = vpack.c.b16 %v1592, %v1590
  %v1839 = vpack.c.b16 %v1595, %v1593
  %v1840 = vpack.c.b16 %v1596, %v1594
  %v1841 = vpack.c.b16 %v1599, %v1597
  %v1842 = vpack.c.b16 %v1600, %v1598
  %v1843 = vpack.c.b16 %v1603, %v1601
  %v1844 = vpack.c.b16 %v1604, %v1602
  %v1845 = vpack.c.b16 %v1607, %v1605
  %v1846 = vpack.c.b16 %v1608, %v1606
  %v1847 = vpack.c.b16 %v1611, %v1609
  %v1848 = vpack.c.b16 %v1612, %v1610
  %v1849 = vpack.c.b16 %v1615, %v1613
  %v1850 = vpack.c.b16 %v1616, %v1614
  %v1851 = vpack.c.b16 %v1619, %v1617
  %v1852 = vpack.c.b16 %v1620, %v1618
  %v1853 = vpack.c.b16 %v1623, %v1621
  %v1854 = vpack.c.b16 %v1624, %v1622
  %v1855 = vpack.c.b16 %v1627, %v1625
  %v1856 = vpack.c.b16 %v1628, %v1626
  %v1857 = vpack.c.b16 %v1631, %v1629
  %v1858 = vpack.c.b16 %v1632, %v1630
  %v1859 = vpack.c.b16 %v1635, %v1633
  %v1860 = vpack.c.b16 %v1636, %v1634
  %v1861 = vpack.c.b16 %v1639, %v1637
  %v1862 = vpack.c.b16 %v1640, %v1638
  %v1863 = vpack.c.b16 %v1643, %v1641
  %v1864 = vpack.c.b16 %v1644, %v1642
  %v1865 = vpack.c.b16 %v1647, %v1645
  %v1866 = vpack.c.b16 %v1648, %v1646
  %v1867 = vpack.c.b16 %v1651, %v1649
  %v1868 = vpack.c.b16 %v1652, %v1650
  %v1869 = vpack.c.b16 %v1655, %v1653
  %v1870 = vpack.c.b16 %v1656, %v1654
  %v1871 = vpack.c.b16 %v1659, %v1657
  %v1872 = vpack.c.b16 %v1660, %v1658
  %v1873 = vpack.c.b16 %v1663, %v1661
  %v1874 = vpack.c.b16 %v1664, %v1662
  %v1875 = vpack.c.b16 %v1667, %v1665
  %v1876 = vpack.c.b16 %v1668, %v1666
  %v1877 = vpack.c.b16 %v1671, %v1669
  %v1878 = vpack.c.b16 %v1672, %v1670
  %v1879 = vpack.c.b16 %v1675, %v1673
  %v1880 = vpack.c.b16 %v1676, %v1674
  %v1881 = vpack.c.b16 %v1679, %v1677
  %v1882 = vpack.c.b16 %v1680, %v1678
  %v1883 = vpack.c.b16 %v1683, %v1681
  %v1884 = vpack.c.b16 %v1684, %v1682
  %v1885 = vpack.c.b16 %v1687, %v1685
  %v1886 = vpack.c.b16 %v1688, %v1686
  %v1887 = vpack.c.b16 %v1691, %v1689
  %v1888 = vpack.c.b16 %v1692, %v1690
  %v1889 = vpack.c.b16 %v1695, %v1693
  %v1890 = vpack.c.b16 %v1696, %v1694
  %v1891 = vpack.c.b16 %v1699, %v1697
  %v1892 = vpack.c.b16 %v1700, %v1698
  %v1893 = vpack.c.b16 %v1703, %v1701
  %v1894 = vpack.c.b16 %v1704, %v1702
  %v1895 = vpack.c.b16 %v1707, %v1705
  %v1896 = vpack.c.b16 %v1708, %v1706
  %v1897 = vpack.c.b16 %v1711, %v1709
  %v1898 = vpack.c.b16 %v1712, %v1710
  %v1899 = vpack.c.b16 %v1715, %v1713
  %v1900 = vpack.c.b16 %v1716, %v1714
  %v1901 = vpack.c.b16 %v1719, %v1717
  %v1902 = vpack.c.b16 %v1720, %v1718
  %v1903 = vpack.c.b16 %v1723, %v1721
  %v1904 = vpack.c.b16 %v1724, %v1722
  %v1905 = vpack.c.b16 %v1727, %v1725
  %v1906 = vpack.c.b16 %v1728, %v1726
  %v1907 = vpack.c.b16 %v1731, %v1729
  %v1908 = vpack.c.b16 %v1732, %v1730
  %v1909 = vpack.c.b16 %v1735, %v1733
  %v1910 = vpack.c.b16 %v1736, %v1734
  %v1911 = vpack.c.b16 %v1739, %v1737
  %v1912 = vpack.c.b16 %v1740, %v1738
  %v1913 = vpack.c.b16 %v1743, %v1741
  %v1914 = vpack.c.b16 %v1744, %v1742
  %v1915 = vpack.c.b16 %v1747, %v1745
  %v1916 = vpack.c.b16 %v1748, %v1746
  %v1917 = vpack.c.b16 %v1751, %v1749
  %v1918 = vpack.c.b16 %v1752, %v1750
  %v1919 = vpack.c.b16 %v1755, %v1753
  %v1920 = vpack.c.b16 %v1756, %v1754
  %v1921 = vpack.c.b16 %v1759, %v1757
  %v1922 = vpack.c.b16 %v1760, %v1758
  %v1923 = vpack.c.b16 %v1763, %v1761
  %v1924 = vpack.c.b16 %v1764, %v1762
  %v1925 = vpack.c.b16 %v1767, %v1765
  %v1926 = vpack.c.b16 %v1768, %v1766
  %v1927 = vpack.c.b16 %v1771, %v1769
  %v1928 = vpack.c.b16 %v1772, %v1770
  %v1929 = vpack.c.b16 %v1775, %v1773
  %v1930 = vpack.c.b16 %v1776, %v1774
  %v1931 = vpack.c.b16 %v1779, %v1777
  %v1932 = vpack.c.b16 %v1780, %v1778
  %v1933 = vpack.c.b16 %v1783, %v1781
  %v1934 = vpack.c.b16 %v1784, %v1782
  %v1935 = vpack.c.b16 %v1787, %v1785
  %v1936 = vpack.c.b16 %v1788, %v1786
  %v1937 = vpack.c.b16 %v1791, %v1789
  %v1938 = vpack.c.b16 %v1792, %v1790
  %v1939 = vpack.c.b16 %v1795, %v1793
  %v1940 = vpack.c.b16 %v1796, %v1794
  %v1941 = vpack.c.b16 %v1799, %v1797
  %v1942 = vpack.c.b16 %v1800, %v1798
  %v1943 = vpack.c.b16 %v1803, %v1801
  %v1944 = vpack.c.b16 %v1804, %v1802
  %v1945 = vpack.c.b16 %v1807, %v1805
  %v1946 = vpack.c.b16 %v1808, %v1806
  %v1947 = vpack.c.b16 %v1811, %v1809
  %v1948 = vpack.c.b16 %v1812, %v1810
  %v1949 = vpack.c.b16 %v1815, %v1813
  %v1950 = vpack.c.b16 %v1816, %v1814
  %v1951 = vpack.c.b16 %v1819, %v1817
  %v1952 = vpack.c.b16 %v1820, %v1818
  %v1953 = vpack.c.b16 %v1823, %v1821
  %v1954 = vpack.c.b16 %v1824, %v1822
  %v1955 = vpack.c.b16 %v1827, %v1825
  %v1956 = vpack.c.b16 %v1828, %v1826
  %2085 = vmatprep.subr.bf16.mxu0 %v1830
  %2086 = vmatpush1.bf16.msra.mxu0 %v1829
  %2087 = vmatprep.subr.bf16.mxu0 %v1832
  %2088 = vmatpush1.bf16.msra.mxu0 %v1831
  %2089 = vmatprep.subr.bf16.mxu0 %v1834
  %2090 = vmatpush1.bf16.msra.mxu0 %v1833
  %2091 = vmatprep.subr.bf16.mxu0 %v1836
  %2092 = vmatpush1.bf16.msra.mxu0 %v1835
  %2093 = vmatprep.subr.bf16.mxu0 %v1838
  %2094 = vmatpush1.bf16.msra.mxu0 %v1837
  %2095 = vmatprep.subr.bf16.mxu0 %v1840
  %2096 = vmatpush1.bf16.msra.mxu0 %v1839
  %2097 = vmatprep.subr.bf16.mxu0 %v1842
  %2098 = vmatpush1.bf16.msra.mxu0 %v1841
  %2099 = vmatprep.subr.bf16.mxu0 %v1844
  %2100 = vmatpush1.bf16.msra.mxu0 %v1843
  %2101 = vmatprep.subr.bf16.mxu0 %v1846
  %2102 = vmatpush1.bf16.msra.mxu0 %v1845
  %2103 = vmatprep.subr.bf16.mxu0 %v1848
  %2104 = vmatpush1.bf16.msra.mxu0 %v1847
  %2105 = vmatprep.subr.bf16.mxu0 %v1850
  %2106 = vmatpush1.bf16.msra.mxu0 %v1849
  %2107 = vmatprep.subr.bf16.mxu0 %v1852
  %2108 = vmatpush1.bf16.msra.mxu0 %v1851
  %2109 = vmatprep.subr.bf16.mxu0 %v1854
  %2110 = vmatpush1.bf16.msra.mxu0 %v1853
  %2111 = vmatprep.subr.bf16.mxu0 %v1856
  %2112 = vmatpush1.bf16.msra.mxu0 %v1855
  %2113 = vmatprep.subr.bf16.mxu0 %v1858
  %2114 = vmatpush1.bf16.msra.mxu0 %v1857
  %2115 = vmatprep.subr.bf16.mxu0 %v1860
  %2116 = vmatpush1.bf16.msra.mxu0 %v1859
  %2117 = vmatprep.mubr.bf16.mxu0 %v1286
  %2118 = vmatmul.mubr.bf16.gmra.mrb[0].mxu0 %v1285
  %v2119 = vpop.f32.mrb[0].mxu0
  %v2120 = vadd.f32 0.0, %v2119
  %v2121 = vpop.f32.mrb[0].mxu0
  %v2122 = vadd.f32 0.0, %v2121
  %v2123 = vpop.f32.mrb[0].mxu0
  %v2124 = vadd.f32 0.0, %v2123
  %v2125 = vpop.f32.mrb[0].mxu0
  %v2126 = vadd.f32 0.0, %v2125
  %2127 = vmatprep.mubr.bf16.mxu0 %v1294
  %2128 = vmatmul.mubr.bf16.gmra.mrb[0].mxu0 %v1293
  %v2129 = vpop.f32.mrb[0].mxu0
  %v2130 = vadd.f32 0.0, %v2129
  %v2131 = vpop.f32.mrb[0].mxu0
  %v2132 = vadd.f32 0.0, %v2131
  %v2133 = vpop.f32.mrb[0].mxu0
  %v2134 = vadd.f32 0.0, %v2133
  %v2135 = vpop.f32.mrb[0].mxu0
  %v2136 = vadd.f32 0.0, %v2135
  %2137 = vmatprep.mubr.bf16.mxu0 %v1302
  %2138 = vmatmul.mubr.bf16.gmra.mrb[0].mxu0 %v1301
  %v2139 = vpop.f32.mrb[0].mxu0
  %v2140 = vadd.f32 0.0, %v2139
  %v2141 = vpop.f32.mrb[0].mxu0
  %v2142 = vadd.f32 0.0, %v2141
  %v2143 = vpop.f32.mrb[0].mxu0
  %v2144 = vadd.f32 0.0, %v2143
  %v2145 = vpop.f32.mrb[0].mxu0
  %v2146 = vadd.f32 0.0, %v2145
  %2147 = vmatprep.mubr.bf16.mxu0 %v1310
  %2148 = vmatmul.mubr.bf16.gmra.mrb[0].mxu0 %v1309
  %v2149 = vpop.f32.mrb[0].mxu0
  %v2150 = vadd.f32 0.0, %v2149
  %v2151 = vpop.f32.mrb[0].mxu0
  %v2152 = vadd.f32 0.0, %v2151
  %v2153 = vpop.f32.mrb[0].mxu0
  %v2154 = vadd.f32 0.0, %v2153
  %v2155 = vpop.f32.mrb[0].mxu0
  %v2156 = vadd.f32 0.0, %v2155
  %2157 = vdwg.mxu0
  %2158 = vmatprep.subr.bf16.mxu0 %v1862
  %2159 = vmatpush1.bf16.msra.mxu0 %v1861
  %2160 = vmatprep.subr.bf16.mxu0 %v1864
  %2161 = vmatpush1.bf16.msra.mxu0 %v1863
  %2162 = vmatprep.subr.bf16.mxu0 %v1866
  %2163 = vmatpush1.bf16.msra.mxu0 %v1865
  %2164 = vmatprep.subr.bf16.mxu0 %v1868
  %2165 = vmatpush1.bf16.msra.mxu0 %v1867
  %2166 = vmatprep.subr.bf16.mxu0 %v1870
  %2167 = vmatpush1.bf16.msra.mxu0 %v1869
  %2168 = vmatprep.subr.bf16.mxu0 %v1872
  %2169 = vmatpush1.bf16.msra.mxu0 %v1871
  %2170 = vmatprep.subr.bf16.mxu0 %v1874
  %2171 = vmatpush1.bf16.msra.mxu0 %v1873
  %2172 = vmatprep.subr.bf16.mxu0 %v1876
  %2173 = vmatpush1.bf16.msra.mxu0 %v1875
  %2174 = vmatprep.subr.bf16.mxu0 %v1878
  %2175 = vmatpush1.bf16.msra.mxu0 %v1877
  %2176 = vmatprep.subr.bf16.mxu0 %v1880
  %2177 = vmatpush1.bf16.msra.mxu0 %v1879
  %2178 = vmatprep.subr.bf16.mxu0 %v1882
  %2179 = vmatpush1.bf16.msra.mxu0 %v1881
  %2180 = vmatprep.subr.bf16.mxu0 %v1884
  %2181 = vmatpush1.bf16.msra.mxu0 %v1883
  %2182 = vmatprep.subr.bf16.mxu0 %v1886
  %2183 = vmatpush1.bf16.msra.mxu0 %v1885
  %2184 = vmatprep.subr.bf16.mxu0 %v1888
  %2185 = vmatpush1.bf16.msra.mxu0 %v1887
  %2186 = vmatprep.subr.bf16.mxu0 %v1890
  %2187 = vmatpush1.bf16.msra.mxu0 %v1889
  %2188 = vmatprep.subr.bf16.mxu0 %v1892
  %2189 = vmatpush1.bf16.msra.mxu0 %v1891
  %2190 = vmatprep.mubr.bf16.mxu0 %v1288
  %2191 = vmatmul.mubr.bf16.gmra.mrb[0].mxu0 %v1287
  %v2192 = vpop.f32.mrb[0].mxu0
  %v2193 = vadd.f32 %v2120, %v2192
  %v2194 = vpop.f32.mrb[0].mxu0
  %v2195 = vadd.f32 %v2122, %v2194
  %v2196 = vpop.f32.mrb[0].mxu0
  %v2197 = vadd.f32 %v2124, %v2196
  %v2198 = vpop.f32.mrb[0].mxu0
  %v2199 = vadd.f32 %v2126, %v2198
  %2200 = vmatprep.mubr.bf16.mxu0 %v1296
  %2201 = vmatmul.mubr.bf16.gmra.mrb[0].mxu0 %v1295
  %v2202 = vpop.f32.mrb[0].mxu0
  %v2203 = vadd.f32 %v2130, %v2202
  %v2204 = vpop.f32.mrb[0].mxu0
  %v2205 = vadd.f32 %v2132, %v2204
  %v2206 = vpop.f32.mrb[0].mxu0
  %v2207 = vadd.f32 %v2134, %v2206
  %v2208 = vpop.f32.mrb[0].mxu0
  %v2209 = vadd.f32 %v2136, %v2208
  %2210 = vmatprep.mubr.bf16.mxu0 %v1304
  %2211 = vmatmul.mubr.bf16.gmra.mrb[0].mxu0 %v1303
  %v2212 = vpop.f32.mrb[0].mxu0
  %v2213 = vadd.f32 %v2140, %v2212
  %v2214 = vpop.f32.mrb[0].mxu0
  %v2215 = vadd.f32 %v2142, %v2214
  %v2216 = vpop.f32.mrb[0].mxu0
  %v2217 = vadd.f32 %v2144, %v2216
  %v2218 = vpop.f32.mrb[0].mxu0
  %v2219 = vadd.f32 %v2146, %v2218
  %2220 = vmatprep.mubr.bf16.mxu0 %v1312
  %2221 = vmatmul.mubr.bf16.gmra.mrb[0].mxu0 %v1311
  %v2222 = vpop.f32.mrb[0].mxu0
  %v2223 = vadd.f32 %v2150, %v2222
  %v2224 = vpop.f32.mrb[0].mxu0
  %v2225 = vadd.f32 %v2152, %v2224
  %v2226 = vpop.f32.mrb[0].mxu0
  %v2227 = vadd.f32 %v2154, %v2226
  %v2228 = vpop.f32.mrb[0].mxu0
  %v2229 = vadd.f32 %v2156, %v2228
  %2230 = vdwg.mxu0
  %2231 = vmatprep.subr.bf16.mxu0 %v1894
  %2232 = vmatpush1.bf16.msra.mxu0 %v1893
  %2233 = vmatprep.subr.bf16.mxu0 %v1896
  %2234 = vmatpush1.bf16.msra.mxu0 %v1895
  %2235 = vmatprep.subr.bf16.mxu0 %v1898
  %2236 = vmatpush1.bf16.msra.mxu0 %v1897
  %2237 = vmatprep.subr.bf16.mxu0 %v1900
  %2238 = vmatpush1.bf16.msra.mxu0 %v1899
  %2239 = vmatprep.subr.bf16.mxu0 %v1902
  %2240 = vmatpush1.bf16.msra.mxu0 %v1901
  %2241 = vmatprep.subr.bf16.mxu0 %v1904
  %2242 = vmatpush1.bf16.msra.mxu0 %v1903
  %2243 = vmatprep.subr.bf16.mxu0 %v1906
  %2244 = vmatpush1.bf16.msra.mxu0 %v1905
  %2245 = vmatprep.subr.bf16.mxu0 %v1908
  %2246 = vmatpush1.bf16.msra.mxu0 %v1907
  %2247 = vmatprep.subr.bf16.mxu0 %v1910
  %2248 = vmatpush1.bf16.msra.mxu0 %v1909
  %2249 = vmatprep.subr.bf16.mxu0 %v1912
  %2250 = vmatpush1.bf16.msra.mxu0 %v1911
  %2251 = vmatprep.subr.bf16.mxu0 %v1914
  %2252 = vmatpush1.bf16.msra.mxu0 %v1913
  %2253 = vmatprep.subr.bf16.mxu0 %v1916
  %2254 = vmatpush1.bf16.msra.mxu0 %v1915
  %2255 = vmatprep.subr.bf16.mxu0 %v1918
  %2256 = vmatpush1.bf16.msra.mxu0 %v1917
  %2257 = vmatprep.subr.bf16.mxu0 %v1920
  %2258 = vmatpush1.bf16.msra.mxu0 %v1919
  %2259 = vmatprep.subr.bf16.mxu0 %v1922
  %2260 = vmatpush1.bf16.msra.mxu0 %v1921
  %2261 = vmatprep.subr.bf16.mxu0 %v1924
  %2262 = vmatpush1.bf16.msra.mxu0 %v1923
  %2263 = vmatprep.mubr.bf16.mxu0 %v1290
  %2264 = vmatmul.mubr.bf16.gmra.mrb[0].mxu0 %v1289
  %v2265 = vpop.f32.mrb[0].mxu0
  %v2266 = vadd.f32 %v2193, %v2265
  %v2267 = vpop.f32.mrb[0].mxu0
  %v2268 = vadd.f32 %v2195, %v2267
  %v2269 = vpop.f32.mrb[0].mxu0
  %v2270 = vadd.f32 %v2197, %v2269
  %v2271 = vpop.f32.mrb[0].mxu0
  %v2272 = vadd.f32 %v2199, %v2271
  %2273 = vmatprep.mubr.bf16.mxu0 %v1298
  %2274 = vmatmul.mubr.bf16.gmra.mrb[0].mxu0 %v1297
  %v2275 = vpop.f32.mrb[0].mxu0
  %v2276 = vadd.f32 %v2203, %v2275
  %v2277 = vpop.f32.mrb[0].mxu0
  %v2278 = vadd.f32 %v2205, %v2277
  %v2279 = vpop.f32.mrb[0].mxu0
  %v2280 = vadd.f32 %v2207, %v2279
  %v2281 = vpop.f32.mrb[0].mxu0
  %v2282 = vadd.f32 %v2209, %v2281
  %2283 = vmatprep.mubr.bf16.mxu0 %v1306
  %2284 = vmatmul.mubr.bf16.gmra.mrb[0].mxu0 %v1305
  %v2285 = vpop.f32.mrb[0].mxu0
  %v2286 = vadd.f32 %v2213, %v2285
  %v2287 = vpop.f32.mrb[0].mxu0
  %v2288 = vadd.f32 %v2215, %v2287
  %v2289 = vpop.f32.mrb[0].mxu0
  %v2290 = vadd.f32 %v2217, %v2289
  %v2291 = vpop.f32.mrb[0].mxu0
  %v2292 = vadd.f32 %v2219, %v2291
  %2293 = vmatprep.mubr.bf16.mxu0 %v1314
  %2294 = vmatmul.mubr.bf16.gmra.mrb[0].mxu0 %v1313
  %v2295 = vpop.f32.mrb[0].mxu0
  %v2296 = vadd.f32 %v2223, %v2295
  %v2297 = vpop.f32.mrb[0].mxu0
  %v2298 = vadd.f32 %v2225, %v2297
  %v2299 = vpop.f32.mrb[0].mxu0
  %v2300 = vadd.f32 %v2227, %v2299
  %v2301 = vpop.f32.mrb[0].mxu0
  %v2302 = vadd.f32 %v2229, %v2301
  %2303 = vdwg.mxu0
  %2304 = vmatprep.subr.bf16.mxu0 %v1926
  %2305 = vmatpush1.bf16.msra.mxu0 %v1925
  %2306 = vmatprep.subr.bf16.mxu0 %v1928
  %2307 = vmatpush1.bf16.msra.mxu0 %v1927
  %2308 = vmatprep.subr.bf16.mxu0 %v1930
  %2309 = vmatpush1.bf16.msra.mxu0 %v1929
  %2310 = vmatprep.subr.bf16.mxu0 %v1932
  %2311 = vmatpush1.bf16.msra.mxu0 %v1931
  %2312 = vmatprep.subr.bf16.mxu0 %v1934
  %2313 = vmatpush1.bf16.msra.mxu0 %v1933
  %2314 = vmatprep.subr.bf16.mxu0 %v1936
  %2315 = vmatpush1.bf16.msra.mxu0 %v1935
  %2316 = vmatprep.subr.bf16.mxu0 %v1938
  %2317 = vmatpush1.bf16.msra.mxu0 %v1937
  %2318 = vmatprep.subr.bf16.mxu0 %v1940
  %2319 = vmatpush1.bf16.msra.mxu0 %v1939
  %2320 = vmatprep.subr.bf16.mxu0 %v1942
  %2321 = vmatpush1.bf16.msra.mxu0 %v1941
  %2322 = vmatprep.subr.bf16.mxu0 %v1944
  %2323 = vmatpush1.bf16.msra.mxu0 %v1943
  %2324 = vmatprep.subr.bf16.mxu0 %v1946
  %2325 = vmatpush1.bf16.msra.mxu0 %v1945
  %2326 = vmatprep.subr.bf16.mxu0 %v1948
  %2327 = vmatpush1.bf16.msra.mxu0 %v1947
  %2328 = vmatprep.subr.bf16.mxu0 %v1950
  %2329 = vmatpush1.bf16.msra.mxu0 %v1949
  %2330 = vmatprep.subr.bf16.mxu0 %v1952
  %2331 = vmatpush1.bf16.msra.mxu0 %v1951
  %2332 = vmatprep.subr.bf16.mxu0 %v1954
  %2333 = vmatpush1.bf16.msra.mxu0 %v1953
  %2334 = vmatprep.subr.bf16.mxu0 %v1956
  %2335 = vmatpush1.bf16.msra.mxu0 %v1955
  %2336 = vmatprep.mubr.bf16.mxu0 %v1292
  %2337 = vmatmul.mubr.bf16.gmra.mrb[0].mxu0 %v1291
  %v2338 = vpop.f32.mrb[0].mxu0
  %v2339 = vadd.f32 %v2266, %v2338
  %v2340 = vpop.f32.mrb[0].mxu0
  %v2341 = vadd.f32 %v2268, %v2340
  %v2342 = vpop.f32.mrb[0].mxu0
  %v2343 = vadd.f32 %v2270, %v2342
  %v2344 = vpop.f32.mrb[0].mxu0
  %v2345 = vadd.f32 %v2272, %v2344
  %2346 = vmatprep.mubr.bf16.mxu0 %v1300
  %2347 = vmatmul.mubr.bf16.gmra.mrb[0].mxu0 %v1299
  %v2348 = vpop.f32.mrb[0].mxu0
  %v2349 = vadd.f32 %v2276, %v2348
  %v2350 = vpop.f32.mrb[0].mxu0
  %v2351 = vadd.f32 %v2278, %v2350
  %v2352 = vpop.f32.mrb[0].mxu0
  %v2353 = vadd.f32 %v2280, %v2352
  %v2354 = vpop.f32.mrb[0].mxu0
  %v2355 = vadd.f32 %v2282, %v2354
  %2356 = vmatprep.mubr.bf16.mxu0 %v1308
  %2357 = vmatmul.mubr.bf16.gmra.mrb[0].mxu0 %v1307
  %v2358 = vpop.f32.mrb[0].mxu0
  %v2359 = vadd.f32 %v2286, %v2358
  %v2360 = vpop.f32.mrb[0].mxu0
  %v2361 = vadd.f32 %v2288, %v2360
  %v2362 = vpop.f32.mrb[0].mxu0
  %v2363 = vadd.f32 %v2290, %v2362
  %v2364 = vpop.f32.mrb[0].mxu0
  %v2365 = vadd.f32 %v2292, %v2364
  %2366 = vmatprep.mubr.bf16.mxu0 %v1316
  %2367 = vmatmul.mubr.bf16.gmra.mrb[0].mxu0 %v1315
  %v2368 = vpop.f32.mrb[0].mxu0
  %v2369 = vadd.f32 %v2296, %v2368
  %v2370 = vpop.f32.mrb[0].mxu0
  %v2371 = vadd.f32 %v2298, %v2370
  %v2372 = vpop.f32.mrb[0].mxu0
  %v2373 = vadd.f32 %v2300, %v2372
  %v2374 = vpop.f32.mrb[0].mxu0
  %v2375 = vadd.f32 %v2302, %v2374
  %2376 = vdwg.mxu0
  %v2521 = vunpack.c.l.b16 %v762
  %v2522 = vunpack.c.h.b16 %v762
  %v2523 = vunpack.c.l.b16 %v763
  %v2524 = vunpack.c.h.b16 %v763
  %v2525 = vunpack.c.l.b16 %v764
  %v2526 = vunpack.c.h.b16 %v764
  %v2527 = vunpack.c.l.b16 %v765
  %v2528 = vunpack.c.h.b16 %v765
  %v2529 = vunpack.c.l.b16 %v766
  %v2530 = vunpack.c.h.b16 %v766
  %v2531 = vunpack.c.l.b16 %v767
  %v2532 = vunpack.c.h.b16 %v767
  %v2533 = vunpack.c.l.b16 %v768
  %v2534 = vunpack.c.h.b16 %v768
  %v2535 = vunpack.c.l.b16 %v769
  %v2536 = vunpack.c.h.b16 %v769
  %v2537 = vunpack.c.l.b16 %v770
  %v2538 = vunpack.c.h.b16 %v770
  %v2539 = vunpack.c.l.b16 %v771
  %v2540 = vunpack.c.h.b16 %v771
  %v2541 = vunpack.c.l.b16 %v772
  %v2542 = vunpack.c.h.b16 %v772
  %v2543 = vunpack.c.l.b16 %v773
  %v2544 = vunpack.c.h.b16 %v773
  %v2545 = vunpack.c.l.b16 %v774
  %v2546 = vunpack.c.h.b16 %v774
  %v2547 = vunpack.c.l.b16 %v775
  %v2548 = vunpack.c.h.b16 %v775
  %v2549 = vunpack.c.l.b16 %v776
  %v2550 = vunpack.c.h.b16 %v776
  %v2551 = vunpack.c.l.b16 %v777
  %v2552 = vunpack.c.h.b16 %v777
  %v2553 = vunpack.c.l.b16 %v778
  %v2554 = vunpack.c.h.b16 %v778
  %v2555 = vunpack.c.l.b16 %v779
  %v2556 = vunpack.c.h.b16 %v779
  %v2557 = vunpack.c.l.b16 %v780
  %v2558 = vunpack.c.h.b16 %v780
  %v2559 = vunpack.c.l.b16 %v781
  %v2560 = vunpack.c.h.b16 %v781
  %v2561 = vunpack.c.l.b16 %v782
  %v2562 = vunpack.c.h.b16 %v782
  %v2563 = vunpack.c.l.b16 %v783
  %v2564 = vunpack.c.h.b16 %v783
  %v2565 = vunpack.c.l.b16 %v784
  %v2566 = vunpack.c.h.b16 %v784
  %v2567 = vunpack.c.l.b16 %v785
  %v2568 = vunpack.c.h.b16 %v785
  %v2569 = vunpack.c.l.b16 %v786
  %v2570 = vunpack.c.h.b16 %v786
  %v2571 = vunpack.c.l.b16 %v787
  %v2572 = vunpack.c.h.b16 %v787
  %v2573 = vunpack.c.l.b16 %v788
  %v2574 = vunpack.c.h.b16 %v788
  %v2575 = vunpack.c.l.b16 %v789
  %v2576 = vunpack.c.h.b16 %v789
  %v2577 = vunpack.c.l.b16 %v790
  %v2578 = vunpack.c.h.b16 %v790
  %v2579 = vunpack.c.l.b16 %v791
  %v2580 = vunpack.c.h.b16 %v791
  %v2581 = vunpack.c.l.b16 %v792
  %v2582 = vunpack.c.h.b16 %v792
  %v2583 = vunpack.c.l.b16 %v793
  %v2584 = vunpack.c.h.b16 %v793
  %v2585 = vunpack.c.l.b16 %v794
  %v2586 = vunpack.c.h.b16 %v794
  %v2587 = vunpack.c.l.b16 %v795
  %v2588 = vunpack.c.h.b16 %v795
  %v2589 = vunpack.c.l.b16 %v796
  %v2590 = vunpack.c.h.b16 %v796
  %v2591 = vunpack.c.l.b16 %v797
  %v2592 = vunpack.c.h.b16 %v797
  %v2593 = vunpack.c.l.b16 %v798
  %v2594 = vunpack.c.h.b16 %v798
  %v2595 = vunpack.c.l.b16 %v799
  %v2596 = vunpack.c.h.b16 %v799
  %v2597 = vunpack.c.l.b16 %v800
  %v2598 = vunpack.c.h.b16 %v800
  %v2599 = vunpack.c.l.b16 %v801
  %v2600 = vunpack.c.h.b16 %v801
  %v2601 = vunpack.c.l.b16 %v802
  %v2602 = vunpack.c.h.b16 %v802
  %v2603 = vunpack.c.l.b16 %v803
  %v2604 = vunpack.c.h.b16 %v803
  %v2605 = vunpack.c.l.b16 %v804
  %v2606 = vunpack.c.h.b16 %v804
  %v2607 = vunpack.c.l.b16 %v805
  %v2608 = vunpack.c.h.b16 %v805
  %v2609 = vunpack.c.l.b16 %v806
  %v2610 = vunpack.c.h.b16 %v806
  %v2611 = vunpack.c.l.b16 %v807
  %v2612 = vunpack.c.h.b16 %v807
  %v2613 = vunpack.c.l.b16 %v808
  %v2614 = vunpack.c.h.b16 %v808
  %v2615 = vunpack.c.l.b16 %v809
  %v2616 = vunpack.c.h.b16 %v809
  %v2617 = vunpack.c.l.b16 %v810
  %v2618 = vunpack.c.h.b16 %v810
  %v2619 = vunpack.c.l.b16 %v811
  %v2620 = vunpack.c.h.b16 %v811
  %v2621 = vunpack.c.l.b16 %v812
  %v2622 = vunpack.c.h.b16 %v812
  %v2623 = vunpack.c.l.b16 %v813
  %v2624 = vunpack.c.h.b16 %v813
  %v2625 = vunpack.c.l.b16 %v814
  %v2626 = vunpack.c.h.b16 %v814
  %v2627 = vunpack.c.l.b16 %v815
  %v2628 = vunpack.c.h.b16 %v815
  %v2629 = vunpack.c.l.b16 %v816
  %v2630 = vunpack.c.h.b16 %v816
  %v2631 = vunpack.c.l.b16 %v817
  %v2632 = vunpack.c.h.b16 %v817
  %v2633 = vunpack.c.l.b16 %v818
  %v2634 = vunpack.c.h.b16 %v818
  %v2635 = vunpack.c.l.b16 %v819
  %v2636 = vunpack.c.h.b16 %v819
  %v2637 = vunpack.c.l.b16 %v820
  %v2638 = vunpack.c.h.b16 %v820
  %v2639 = vunpack.c.l.b16 %v821
  %v2640 = vunpack.c.h.b16 %v821
  %v2641 = vunpack.c.l.b16 %v822
  %v2642 = vunpack.c.h.b16 %v822
  %v2643 = vunpack.c.l.b16 %v823
  %v2644 = vunpack.c.h.b16 %v823
  %v2645 = vunpack.c.l.b16 %v824
  %v2646 = vunpack.c.h.b16 %v824
  %v2647 = vunpack.c.l.b16 %v825
  %v2648 = vunpack.c.h.b16 %v825
  %v2649 = vunpack.c.l.b16 %v826
  %v2650 = vunpack.c.h.b16 %v826
  %v2651 = vunpack.c.l.b16 %v827
  %v2652 = vunpack.c.h.b16 %v827
  %v2653 = vunpack.c.l.b16 %v828
  %v2654 = vunpack.c.h.b16 %v828
  %v2655 = vunpack.c.l.b16 %v829
  %v2656 = vunpack.c.h.b16 %v829
  %v2657 = vunpack.c.l.b16 %v830
  %v2658 = vunpack.c.h.b16 %v830
  %v2659 = vunpack.c.l.b16 %v831
  %v2660 = vunpack.c.h.b16 %v831
  %v2661 = vunpack.c.l.b16 %v832
  %v2662 = vunpack.c.h.b16 %v832
  %v2663 = vunpack.c.l.b16 %v833
  %v2664 = vunpack.c.h.b16 %v833
  %v2665 = vunpack.c.l.b16 %v834
  %v2666 = vunpack.c.h.b16 %v834
  %v2667 = vunpack.c.l.b16 %v835
  %v2668 = vunpack.c.h.b16 %v835
  %v2669 = vunpack.c.l.b16 %v836
  %v2670 = vunpack.c.h.b16 %v836
  %v2671 = vunpack.c.l.b16 %v837
  %v2672 = vunpack.c.h.b16 %v837
  %v2673 = vunpack.c.l.b16 %v838
  %v2674 = vunpack.c.h.b16 %v838
  %v2675 = vunpack.c.l.b16 %v839
  %v2676 = vunpack.c.h.b16 %v839
  %v2677 = vunpack.c.l.b16 %v840
  %v2678 = vunpack.c.h.b16 %v840
  %v2679 = vunpack.c.l.b16 %v841
  %v2680 = vunpack.c.h.b16 %v841
  %v2681 = vunpack.c.l.b16 %v842
  %v2682 = vunpack.c.h.b16 %v842
  %v2683 = vunpack.c.l.b16 %v843
  %v2684 = vunpack.c.h.b16 %v843
  %v2685 = vunpack.c.l.b16 %v844
  %v2686 = vunpack.c.h.b16 %v844
  %v2687 = vunpack.c.l.b16 %v845
  %v2688 = vunpack.c.h.b16 %v845
  %v2689 = vunpack.c.l.b16 %v846
  %v2690 = vunpack.c.h.b16 %v846
  %v2691 = vunpack.c.l.b16 %v847
  %v2692 = vunpack.c.h.b16 %v847
  %v2693 = vunpack.c.l.b16 %v848
  %v2694 = vunpack.c.h.b16 %v848
  %v2695 = vunpack.c.l.b16 %v849
  %v2696 = vunpack.c.h.b16 %v849
  %v2697 = vunpack.c.l.b16 %v850
  %v2698 = vunpack.c.h.b16 %v850
  %v2699 = vunpack.c.l.b16 %v851
  %v2700 = vunpack.c.h.b16 %v851
  %v2701 = vunpack.c.l.b16 %v852
  %v2702 = vunpack.c.h.b16 %v852
  %v2703 = vunpack.c.l.b16 %v853
  %v2704 = vunpack.c.h.b16 %v853
  %v2705 = vunpack.c.l.b16 %v854
  %v2706 = vunpack.c.h.b16 %v854
  %v2707 = vunpack.c.l.b16 %v855
  %v2708 = vunpack.c.h.b16 %v855
  %v2709 = vunpack.c.l.b16 %v856
  %v2710 = vunpack.c.h.b16 %v856
  %v2711 = vunpack.c.l.b16 %v857
  %v2712 = vunpack.c.h.b16 %v857
  %v2713 = vunpack.c.l.b16 %v858
  %v2714 = vunpack.c.h.b16 %v858
  %v2715 = vunpack.c.l.b16 %v859
  %v2716 = vunpack.c.h.b16 %v859
  %v2717 = vunpack.c.l.b16 %v860
  %v2718 = vunpack.c.h.b16 %v860
  %v2719 = vunpack.c.l.b16 %v861
  %v2720 = vunpack.c.h.b16 %v861
  %v2721 = vunpack.c.l.b16 %v862
  %v2722 = vunpack.c.h.b16 %v862
  %v2723 = vunpack.c.l.b16 %v863
  %v2724 = vunpack.c.h.b16 %v863
  %v2725 = vunpack.c.l.b16 %v864
  %v2726 = vunpack.c.h.b16 %v864
  %v2727 = vunpack.c.l.b16 %v865
  %v2728 = vunpack.c.h.b16 %v865
  %v2729 = vunpack.c.l.b16 %v866
  %v2730 = vunpack.c.h.b16 %v866
  %v2731 = vunpack.c.l.b16 %v867
  %v2732 = vunpack.c.h.b16 %v867
  %v2733 = vunpack.c.l.b16 %v868
  %v2734 = vunpack.c.h.b16 %v868
  %v2735 = vunpack.c.l.b16 %v869
  %v2736 = vunpack.c.h.b16 %v869
  %v2737 = vunpack.c.l.b16 %v870
  %v2738 = vunpack.c.h.b16 %v870
  %v2739 = vunpack.c.l.b16 %v871
  %v2740 = vunpack.c.h.b16 %v871
  %v2741 = vunpack.c.l.b16 %v872
  %v2742 = vunpack.c.h.b16 %v872
  %v2743 = vunpack.c.l.b16 %v873
  %v2744 = vunpack.c.h.b16 %v873
  %v2745 = vunpack.c.l.b16 %v874
  %v2746 = vunpack.c.h.b16 %v874
  %v2747 = vunpack.c.l.b16 %v875
  %v2748 = vunpack.c.h.b16 %v875
  %v2749 = vunpack.c.l.b16 %v876
  %v2750 = vunpack.c.h.b16 %v876
  %v2751 = vunpack.c.l.b16 %v877
  %v2752 = vunpack.c.h.b16 %v877
  %v2753 = vunpack.c.l.b16 %v878
  %v2754 = vunpack.c.h.b16 %v878
  %v2755 = vunpack.c.l.b16 %v879
  %v2756 = vunpack.c.h.b16 %v879
  %v2757 = vunpack.c.l.b16 %v880
  %v2758 = vunpack.c.h.b16 %v880
  %v2759 = vunpack.c.l.b16 %v881
  %v2760 = vunpack.c.h.b16 %v881
  %v2761 = vunpack.c.l.b16 %v882
  %v2762 = vunpack.c.h.b16 %v882
  %v2763 = vunpack.c.l.b16 %v883
  %v2764 = vunpack.c.h.b16 %v883
  %v2765 = vunpack.c.l.b16 %v884
  %v2766 = vunpack.c.h.b16 %v884
  %v2767 = vunpack.c.l.b16 %v885
  %v2768 = vunpack.c.h.b16 %v885
  %v2769 = vunpack.c.l.b16 %v886
  %v2770 = vunpack.c.h.b16 %v886
  %v2771 = vunpack.c.l.b16 %v887
  %v2772 = vunpack.c.h.b16 %v887
  %v2773 = vunpack.c.l.b16 %v888
  %v2774 = vunpack.c.h.b16 %v888
  %v2775 = vunpack.c.l.b16 %v889
  %v2776 = vunpack.c.h.b16 %v889
  %v2777 = vunpack.c.l.b16 %v890
  %v2778 = vunpack.c.h.b16 %v890
  %v2779 = vunpack.c.l.b16 %v891
  %v2780 = vunpack.c.h.b16 %v891
  %v2781 = vunpack.c.l.b16 %v892
  %v2782 = vunpack.c.h.b16 %v892
  %v2783 = vunpack.c.l.b16 %v893
  %v2784 = vunpack.c.h.b16 %v893
  %v2785 = vunpack.c.l.b16 %v894
  %v2786 = vunpack.c.h.b16 %v894
  %v2787 = vunpack.c.l.b16 %v895
  %v2788 = vunpack.c.h.b16 %v895
  %v2789 = vunpack.c.l.b16 %v896
  %v2790 = vunpack.c.h.b16 %v896
  %v2791 = vunpack.c.l.b16 %v897
  %v2792 = vunpack.c.h.b16 %v897
  %v2793 = vunpack.c.l.b16 %v898
  %v2794 = vunpack.c.h.b16 %v898
  %v2795 = vunpack.c.l.b16 %v899
  %v2796 = vunpack.c.h.b16 %v899
  %v2797 = vunpack.c.l.b16 %v900
  %v2798 = vunpack.c.h.b16 %v900
  %v2799 = vunpack.c.l.b16 %v901
  %v2800 = vunpack.c.h.b16 %v901
  %v2801 = vunpack.c.l.b16 %v902
  %v2802 = vunpack.c.h.b16 %v902
  %v2803 = vunpack.c.l.b16 %v903
  %v2804 = vunpack.c.h.b16 %v903
  %v2805 = vunpack.c.l.b16 %v904
  %v2806 = vunpack.c.h.b16 %v904
  %v2807 = vunpack.c.l.b16 %v905
  %v2808 = vunpack.c.h.b16 %v905
  %v2809 = vpack.c.b16 %v2523, %v2521
  %v2810 = vpack.c.b16 %v2524, %v2522
  %v2811 = vpack.c.b16 %v2527, %v2525
  %v2812 = vpack.c.b16 %v2528, %v2526
  %v2813 = vpack.c.b16 %v2531, %v2529
  %v2814 = vpack.c.b16 %v2532, %v2530
  %v2815 = vpack.c.b16 %v2535, %v2533
  %v2816 = vpack.c.b16 %v2536, %v2534
  %v2817 = vpack.c.b16 %v2539, %v2537
  %v2818 = vpack.c.b16 %v2540, %v2538
  %v2819 = vpack.c.b16 %v2543, %v2541
  %v2820 = vpack.c.b16 %v2544, %v2542
  %v2821 = vpack.c.b16 %v2547, %v2545
  %v2822 = vpack.c.b16 %v2548, %v2546
  %v2823 = vpack.c.b16 %v2551, %v2549
  %v2824 = vpack.c.b16 %v2552, %v2550
  %v2825 = vpack.c.b16 %v2555, %v2553
  %v2826 = vpack.c.b16 %v2556, %v2554
  %v2827 = vpack.c.b16 %v2559, %v2557
  %v2828 = vpack.c.b16 %v2560, %v2558
  %v2829 = vpack.c.b16 %v2563, %v2561
  %v2830 = vpack.c.b16 %v2564, %v2562
  %v2831 = vpack.c.b16 %v2567, %v2565
  %v2832 = vpack.c.b16 %v2568, %v2566
  %v2833 = vpack.c.b16 %v2571, %v2569
  %v2834 = vpack.c.b16 %v2572, %v2570
  %v2835 = vpack.c.b16 %v2575, %v2573
  %v2836 = vpack.c.b16 %v2576, %v2574
  %v2837 = vpack.c.b16 %v2579, %v2577
  %v2838 = vpack.c.b16 %v2580, %v2578
  %v2839 = vpack.c.b16 %v2583, %v2581
  %v2840 = vpack.c.b16 %v2584, %v2582
  %v2841 = vpack.c.b16 %v2587, %v2585
  %v2842 = vpack.c.b16 %v2588, %v2586
  %v2843 = vpack.c.b16 %v2591, %v2589
  %v2844 = vpack.c.b16 %v2592, %v2590
  %v2845 = vpack.c.b16 %v2595, %v2593
  %v2846 = vpack.c.b16 %v2596, %v2594
  %v2847 = vpack.c.b16 %v2599, %v2597
  %v2848 = vpack.c.b16 %v2600, %v2598
  %v2849 = vpack.c.b16 %v2603, %v2601
  %v2850 = vpack.c.b16 %v2604, %v2602
  %v2851 = vpack.c.b16 %v2607, %v2605
  %v2852 = vpack.c.b16 %v2608, %v2606
  %v2853 = vpack.c.b16 %v2611, %v2609
  %v2854 = vpack.c.b16 %v2612, %v2610
  %v2855 = vpack.c.b16 %v2615, %v2613
  %v2856 = vpack.c.b16 %v2616, %v2614
  %v2857 = vpack.c.b16 %v2619, %v2617
  %v2858 = vpack.c.b16 %v2620, %v2618
  %v2859 = vpack.c.b16 %v2623, %v2621
  %v2860 = vpack.c.b16 %v2624, %v2622
  %v2861 = vpack.c.b16 %v2627, %v2625
  %v2862 = vpack.c.b16 %v2628, %v2626
  %v2863 = vpack.c.b16 %v2631, %v2629
  %v2864 = vpack.c.b16 %v2632, %v2630
  %v2865 = vpack.c.b16 %v2635, %v2633
  %v2866 = vpack.c.b16 %v2636, %v2634
  %v2867 = vpack.c.b16 %v2639, %v2637
  %v2868 = vpack.c.b16 %v2640, %v2638
  %v2869 = vpack.c.b16 %v2643, %v2641
  %v2870 = vpack.c.b16 %v2644, %v2642
  %v2871 = vpack.c.b16 %v2647, %v2645
  %v2872 = vpack.c.b16 %v2648, %v2646
  %v2873 = vpack.c.b16 %v2651, %v2649
  %v2874 = vpack.c.b16 %v2652, %v2650
  %v2875 = vpack.c.b16 %v2655, %v2653
  %v2876 = vpack.c.b16 %v2656, %v2654
  %v2877 = vpack.c.b16 %v2659, %v2657
  %v2878 = vpack.c.b16 %v2660, %v2658
  %v2879 = vpack.c.b16 %v2663, %v2661
  %v2880 = vpack.c.b16 %v2664, %v2662
  %v2881 = vpack.c.b16 %v2667, %v2665
  %v2882 = vpack.c.b16 %v2668, %v2666
  %v2883 = vpack.c.b16 %v2671, %v2669
  %v2884 = vpack.c.b16 %v2672, %v2670
  %v2885 = vpack.c.b16 %v2675, %v2673
  %v2886 = vpack.c.b16 %v2676, %v2674
  %v2887 = vpack.c.b16 %v2679, %v2677
  %v2888 = vpack.c.b16 %v2680, %v2678
  %v2889 = vpack.c.b16 %v2683, %v2681
  %v2890 = vpack.c.b16 %v2684, %v2682
  %v2891 = vpack.c.b16 %v2687, %v2685
  %v2892 = vpack.c.b16 %v2688, %v2686
  %v2893 = vpack.c.b16 %v2691, %v2689
  %v2894 = vpack.c.b16 %v2692, %v2690
  %v2895 = vpack.c.b16 %v2695, %v2693
  %v2896 = vpack.c.b16 %v2696, %v2694
  %v2897 = vpack.c.b16 %v2699, %v2697
  %v2898 = vpack.c.b16 %v2700, %v2698
  %v2899 = vpack.c.b16 %v2703, %v2701
  %v2900 = vpack.c.b16 %v2704, %v2702
  %v2901 = vpack.c.b16 %v2707, %v2705
  %v2902 = vpack.c.b16 %v2708, %v2706
  %v2903 = vpack.c.b16 %v2711, %v2709
  %v2904 = vpack.c.b16 %v2712, %v2710
  %v2905 = vpack.c.b16 %v2715, %v2713
  %v2906 = vpack.c.b16 %v2716, %v2714
  %v2907 = vpack.c.b16 %v2719, %v2717
  %v2908 = vpack.c.b16 %v2720, %v2718
  %v2909 = vpack.c.b16 %v2723, %v2721
  %v2910 = vpack.c.b16 %v2724, %v2722
  %v2911 = vpack.c.b16 %v2727, %v2725
  %v2912 = vpack.c.b16 %v2728, %v2726
  %v2913 = vpack.c.b16 %v2731, %v2729
  %v2914 = vpack.c.b16 %v2732, %v2730
  %v2915 = vpack.c.b16 %v2735, %v2733
  %v2916 = vpack.c.b16 %v2736, %v2734
  %v2917 = vpack.c.b16 %v2739, %v2737
  %v2918 = vpack.c.b16 %v2740, %v2738
  %v2919 = vpack.c.b16 %v2743, %v2741
  %v2920 = vpack.c.b16 %v2744, %v2742
  %v2921 = vpack.c.b16 %v2747, %v2745
  %v2922 = vpack.c.b16 %v2748, %v2746
  %v2923 = vpack.c.b16 %v2751, %v2749
  %v2924 = vpack.c.b16 %v2752, %v2750
  %v2925 = vpack.c.b16 %v2755, %v2753
  %v2926 = vpack.c.b16 %v2756, %v2754
  %v2927 = vpack.c.b16 %v2759, %v2757
  %v2928 = vpack.c.b16 %v2760, %v2758
  %v2929 = vpack.c.b16 %v2763, %v2761
  %v2930 = vpack.c.b16 %v2764, %v2762
  %v2931 = vpack.c.b16 %v2767, %v2765
  %v2932 = vpack.c.b16 %v2768, %v2766
  %v2933 = vpack.c.b16 %v2771, %v2769
  %v2934 = vpack.c.b16 %v2772, %v2770
  %v2935 = vpack.c.b16 %v2775, %v2773
  %v2936 = vpack.c.b16 %v2776, %v2774
  %v2937 = vpack.c.b16 %v2779, %v2777
  %v2938 = vpack.c.b16 %v2780, %v2778
  %v2939 = vpack.c.b16 %v2783, %v2781
  %v2940 = vpack.c.b16 %v2784, %v2782
  %v2941 = vpack.c.b16 %v2787, %v2785
  %v2942 = vpack.c.b16 %v2788, %v2786
  %v2943 = vpack.c.b16 %v2791, %v2789
  %v2944 = vpack.c.b16 %v2792, %v2790
  %v2945 = vpack.c.b16 %v2795, %v2793
  %v2946 = vpack.c.b16 %v2796, %v2794
  %v2947 = vpack.c.b16 %v2799, %v2797
  %v2948 = vpack.c.b16 %v2800, %v2798
  %v2949 = vpack.c.b16 %v2803, %v2801
  %v2950 = vpack.c.b16 %v2804, %v2802
  %v2951 = vpack.c.b16 %v2807, %v2805
  %v2952 = vpack.c.b16 %v2808, %v2806
  %3097 = vmatprep.subr.bf16.mxu0 %v2810
  %3098 = vmatpush1.bf16.msra.mxu0 %v2809
  %3099 = vmatprep.subr.bf16.mxu0 %v2812
  %3100 = vmatpush1.bf16.msra.mxu0 %v2811
  %3101 = vmatprep.subr.bf16.mxu0 %v2814
  %3102 = vmatpush1.bf16.msra.mxu0 %v2813
  %3103 = vmatprep.subr.bf16.mxu0 %v2816
  %3104 = vmatpush1.bf16.msra.mxu0 %v2815
  %3105 = vmatprep.subr.bf16.mxu0 %v2818
  %3106 = vmatpush1.bf16.msra.mxu0 %v2817
  %3107 = vmatprep.subr.bf16.mxu0 %v2820
  %3108 = vmatpush1.bf16.msra.mxu0 %v2819
  %3109 = vmatprep.subr.bf16.mxu0 %v2822
  %3110 = vmatpush1.bf16.msra.mxu0 %v2821
  %3111 = vmatprep.subr.bf16.mxu0 %v2824
  %3112 = vmatpush1.bf16.msra.mxu0 %v2823
  %3113 = vmatprep.subr.bf16.mxu0 %v2826
  %3114 = vmatpush1.bf16.msra.mxu0 %v2825
  %3115 = vmatprep.subr.bf16.mxu0 %v2828
  %3116 = vmatpush1.bf16.msra.mxu0 %v2827
  %3117 = vmatprep.subr.bf16.mxu0 %v2830
  %3118 = vmatpush1.bf16.msra.mxu0 %v2829
  %3119 = vmatprep.subr.bf16.mxu0 %v2832
  %3120 = vmatpush1.bf16.msra.mxu0 %v2831
  %3121 = vmatprep.subr.bf16.mxu0 %v2834
  %3122 = vmatpush1.bf16.msra.mxu0 %v2833
  %3123 = vmatprep.subr.bf16.mxu0 %v2836
  %3124 = vmatpush1.bf16.msra.mxu0 %v2835
  %3125 = vmatprep.subr.bf16.mxu0 %v2838
  %3126 = vmatpush1.bf16.msra.mxu0 %v2837
  %3127 = vmatprep.subr.bf16.mxu0 %v2840
  %3128 = vmatpush1.bf16.msra.mxu0 %v2839
  %3129 = vmatprep.mubr.bf16.mxu0 %v727
  %3130 = vmatmul.mubr.bf16.gmra.mrb[0].mxu0 %v726
  %v3131 = vpop.f32.mrb[0].mxu0
  %v3132 = vadd.f32 %v2339, %v3131
  %v3133 = vpop.f32.mrb[0].mxu0
  %v3134 = vadd.f32 %v2341, %v3133
  %v3135 = vpop.f32.mrb[0].mxu0
  %v3136 = vadd.f32 %v2343, %v3135
  %v3137 = vpop.f32.mrb[0].mxu0
  %v3138 = vadd.f32 %v2345, %v3137
  %3139 = vmatprep.mubr.bf16.mxu0 %v736
  %3140 = vmatmul.mubr.bf16.gmra.mrb[0].mxu0 %v735
  %v3141 = vpop.f32.mrb[0].mxu0
  %v3142 = vadd.f32 %v2349, %v3141
  %v3143 = vpop.f32.mrb[0].mxu0
  %v3144 = vadd.f32 %v2351, %v3143
  %v3145 = vpop.f32.mrb[0].mxu0
  %v3146 = vadd.f32 %v2353, %v3145
  %v3147 = vpop.f32.mrb[0].mxu0
  %v3148 = vadd.f32 %v2355, %v3147
  %3149 = vmatprep.mubr.bf16.mxu0 %v745
  %3150 = vmatmul.mubr.bf16.gmra.mrb[0].mxu0 %v744
  %v3151 = vpop.f32.mrb[0].mxu0
  %v3152 = vadd.f32 %v2359, %v3151
  %v3153 = vpop.f32.mrb[0].mxu0
  %v3154 = vadd.f32 %v2361, %v3153
  %v3155 = vpop.f32.mrb[0].mxu0
  %v3156 = vadd.f32 %v2363, %v3155
  %v3157 = vpop.f32.mrb[0].mxu0
  %v3158 = vadd.f32 %v2365, %v3157
  %3159 = vmatprep.mubr.bf16.mxu0 %v754
  %3160 = vmatmul.mubr.bf16.gmra.mrb[0].mxu0 %v753
  %v3161 = vpop.f32.mrb[0].mxu0
  %v3162 = vadd.f32 %v2369, %v3161
  %v3163 = vpop.f32.mrb[0].mxu0
  %v3164 = vadd.f32 %v2371, %v3163
  %v3165 = vpop.f32.mrb[0].mxu0
  %v3166 = vadd.f32 %v2373, %v3165
  %v3167 = vpop.f32.mrb[0].mxu0
  %v3168 = vadd.f32 %v2375, %v3167
  %3169 = vdwg.mxu0
  %3170 = vmatprep.subr.bf16.mxu0 %v2842
  %3171 = vmatpush1.bf16.msra.mxu0 %v2841
  %3172 = vmatprep.subr.bf16.mxu0 %v2844
  %3173 = vmatpush1.bf16.msra.mxu0 %v2843
  %3174 = vmatprep.subr.bf16.mxu0 %v2846
  %3175 = vmatpush1.bf16.msra.mxu0 %v2845
  %3176 = vmatprep.subr.bf16.mxu0 %v2848
  %3177 = vmatpush1.bf16.msra.mxu0 %v2847
  %3178 = vmatprep.subr.bf16.mxu0 %v2850
  %3179 = vmatpush1.bf16.msra.mxu0 %v2849
  %3180 = vmatprep.subr.bf16.mxu0 %v2852
  %3181 = vmatpush1.bf16.msra.mxu0 %v2851
  %3182 = vmatprep.subr.bf16.mxu0 %v2854
  %3183 = vmatpush1.bf16.msra.mxu0 %v2853
  %3184 = vmatprep.subr.bf16.mxu0 %v2856
  %3185 = vmatpush1.bf16.msra.mxu0 %v2855
  %3186 = vmatprep.subr.bf16.mxu0 %v2858
  %3187 = vmatpush1.bf16.msra.mxu0 %v2857
  %3188 = vmatprep.subr.bf16.mxu0 %v2860
  %3189 = vmatpush1.bf16.msra.mxu0 %v2859
  %3190 = vmatprep.subr.bf16.mxu0 %v2862
  %3191 = vmatpush1.bf16.msra.mxu0 %v2861
  %3192 = vmatprep.subr.bf16.mxu0 %v2864
  %3193 = vmatpush1.bf16.msra.mxu0 %v2863
  %3194 = vmatprep.subr.bf16.mxu0 %v2866
  %3195 = vmatpush1.bf16.msra.mxu0 %v2865
  %3196 = vmatprep.subr.bf16.mxu0 %v2868
  %3197 = vmatpush1.bf16.msra.mxu0 %v2867
  %3198 = vmatprep.subr.bf16.mxu0 %v2870
  %3199 = vmatpush1.bf16.msra.mxu0 %v2869
  %3200 = vmatprep.subr.bf16.mxu0 %v2872
  %3201 = vmatpush1.bf16.msra.mxu0 %v2871
  %3202 = vmatprep.mubr.bf16.mxu0 %v729
  %3203 = vmatmul.mubr.bf16.gmra.mrb[0].mxu0 %v728
  %v3204 = vpop.f32.mrb[0].mxu0
  %v3205 = vadd.f32 %v3132, %v3204
  %v3206 = vpop.f32.mrb[0].mxu0
  %v3207 = vadd.f32 %v3134, %v3206
  %v3208 = vpop.f32.mrb[0].mxu0
  %v3209 = vadd.f32 %v3136, %v3208
  %v3210 = vpop.f32.mrb[0].mxu0
  %v3211 = vadd.f32 %v3138, %v3210
  %3212 = vmatprep.mubr.bf16.mxu0 %v738
  %3213 = vmatmul.mubr.bf16.gmra.mrb[0].mxu0 %v737
  %v3214 = vpop.f32.mrb[0].mxu0
  %v3215 = vadd.f32 %v3142, %v3214
  %v3216 = vpop.f32.mrb[0].mxu0
  %v3217 = vadd.f32 %v3144, %v3216
  %v3218 = vpop.f32.mrb[0].mxu0
  %v3219 = vadd.f32 %v3146, %v3218
  %v3220 = vpop.f32.mrb[0].mxu0
  %v3221 = vadd.f32 %v3148, %v3220
  %3222 = vmatprep.mubr.bf16.mxu0 %v747
  %3223 = vmatmul.mubr.bf16.gmra.mrb[0].mxu0 %v746
  %v3224 = vpop.f32.mrb[0].mxu0
  %v3225 = vadd.f32 %v3152, %v3224
  %v3226 = vpop.f32.mrb[0].mxu0
  %v3227 = vadd.f32 %v3154, %v3226
  %v3228 = vpop.f32.mrb[0].mxu0
  %v3229 = vadd.f32 %v3156, %v3228
  %v3230 = vpop.f32.mrb[0].mxu0
  %v3231 = vadd.f32 %v3158, %v3230
  %3232 = vmatprep.mubr.bf16.mxu0 %v756
  %3233 = vmatmul.mubr.bf16.gmra.mrb[0].mxu0 %v755
  %v3234 = vpop.f32.mrb[0].mxu0
  %v3235 = vadd.f32 %v3162, %v3234
  %v3236 = vpop.f32.mrb[0].mxu0
  %v3237 = vadd.f32 %v3164, %v3236
  %v3238 = vpop.f32.mrb[0].mxu0
  %v3239 = vadd.f32 %v3166, %v3238
  %v3240 = vpop.f32.mrb[0].mxu0
  %v3241 = vadd.f32 %v3168, %v3240
  %3242 = vdwg.mxu0
  %3243 = vmatprep.subr.bf16.mxu0 %v2874
  %3244 = vmatpush1.bf16.msra.mxu0 %v2873
  %3245 = vmatprep.subr.bf16.mxu0 %v2876
  %3246 = vmatpush1.bf16.msra.mxu0 %v2875
  %3247 = vmatprep.subr.bf16.mxu0 %v2878
  %3248 = vmatpush1.bf16.msra.mxu0 %v2877
  %3249 = vmatprep.subr.bf16.mxu0 %v2880
  %3250 = vmatpush1.bf16.msra.mxu0 %v2879
  %3251 = vmatprep.subr.bf16.mxu0 %v2882
  %3252 = vmatpush1.bf16.msra.mxu0 %v2881
  %3253 = vmatprep.subr.bf16.mxu0 %v2884
  %3254 = vmatpush1.bf16.msra.mxu0 %v2883
  %3255 = vmatprep.subr.bf16.mxu0 %v2886
  %3256 = vmatpush1.bf16.msra.mxu0 %v2885
  %3257 = vmatprep.subr.bf16.mxu0 %v2888
  %3258 = vmatpush1.bf16.msra.mxu0 %v2887
  %3259 = vmatprep.subr.bf16.mxu0 %v2890
  %3260 = vmatpush1.bf16.msra.mxu0 %v2889
  %3261 = vmatprep.subr.bf16.mxu0 %v2892
  %3262 = vmatpush1.bf16.msra.mxu0 %v2891
  %3263 = vmatprep.subr.bf16.mxu0 %v2894
  %3264 = vmatpush1.bf16.msra.mxu0 %v2893
  %3265 = vmatprep.subr.bf16.mxu0 %v2896
  %3266 = vmatpush1.bf16.msra.mxu0 %v2895
  %3267 = vmatprep.subr.bf16.mxu0 %v2898
  %3268 = vmatpush1.bf16.msra.mxu0 %v2897
  %3269 = vmatprep.subr.bf16.mxu0 %v2900
  %3270 = vmatpush1.bf16.msra.mxu0 %v2899
  %3271 = vmatprep.subr.bf16.mxu0 %v2902
  %3272 = vmatpush1.bf16.msra.mxu0 %v2901
  %3273 = vmatprep.subr.bf16.mxu0 %v2904
  %3274 = vmatpush1.bf16.msra.mxu0 %v2903
  %3275 = vmatprep.mubr.bf16.mxu0 %v731
  %3276 = vmatmul.mubr.bf16.gmra.mrb[0].mxu0 %v730
  %v3277 = vpop.f32.mrb[0].mxu0
  %v3278 = vadd.f32 %v3205, %v3277
  %v3279 = vpop.f32.mrb[0].mxu0
  %v3280 = vadd.f32 %v3207, %v3279
  %v3281 = vpop.f32.mrb[0].mxu0
  %v3282 = vadd.f32 %v3209, %v3281
  %v3283 = vpop.f32.mrb[0].mxu0
  %v3284 = vadd.f32 %v3211, %v3283
  %3285 = vmatprep.mubr.bf16.mxu0 %v740
  %3286 = vmatmul.mubr.bf16.gmra.mrb[0].mxu0 %v739
  %v3287 = vpop.f32.mrb[0].mxu0
  %v3288 = vadd.f32 %v3215, %v3287
  %v3289 = vpop.f32.mrb[0].mxu0
  %v3290 = vadd.f32 %v3217, %v3289
  %v3291 = vpop.f32.mrb[0].mxu0
  %v3292 = vadd.f32 %v3219, %v3291
  %v3293 = vpop.f32.mrb[0].mxu0
  %v3294 = vadd.f32 %v3221, %v3293
  %3295 = vmatprep.mubr.bf16.mxu0 %v749
  %3296 = vmatmul.mubr.bf16.gmra.mrb[0].mxu0 %v748
  %v3297 = vpop.f32.mrb[0].mxu0
  %v3298 = vadd.f32 %v3225, %v3297
  %v3299 = vpop.f32.mrb[0].mxu0
  %v3300 = vadd.f32 %v3227, %v3299
  %v3301 = vpop.f32.mrb[0].mxu0
  %v3302 = vadd.f32 %v3229, %v3301
  %v3303 = vpop.f32.mrb[0].mxu0
  %v3304 = vadd.f32 %v3231, %v3303
  %3305 = vmatprep.mubr.bf16.mxu0 %v758
  %3306 = vmatmul.mubr.bf16.gmra.mrb[0].mxu0 %v757
  %v3307 = vpop.f32.mrb[0].mxu0
  %v3308 = vadd.f32 %v3235, %v3307
  %v3309 = vpop.f32.mrb[0].mxu0
  %v3310 = vadd.f32 %v3237, %v3309
  %v3311 = vpop.f32.mrb[0].mxu0
  %v3312 = vadd.f32 %v3239, %v3311
  %v3313 = vpop.f32.mrb[0].mxu0
  %v3314 = vadd.f32 %v3241, %v3313
  %3315 = vdwg.mxu0
  %3316 = vmatprep.subr.bf16.mxu0 %v2906
  %3317 = vmatpush1.bf16.msra.mxu0 %v2905
  %3318 = vmatprep.subr.bf16.mxu0 %v2908
  %3319 = vmatpush1.bf16.msra.mxu0 %v2907
  %3320 = vmatprep.subr.bf16.mxu0 %v2910
  %3321 = vmatpush1.bf16.msra.mxu0 %v2909
  %3322 = vmatprep.subr.bf16.mxu0 %v2912
  %3323 = vmatpush1.bf16.msra.mxu0 %v2911
  %3324 = vmatprep.subr.bf16.mxu0 %v2914
  %3325 = vmatpush1.bf16.msra.mxu0 %v2913
  %3326 = vmatprep.subr.bf16.mxu0 %v2916
  %3327 = vmatpush1.bf16.msra.mxu0 %v2915
  %3328 = vmatprep.subr.bf16.mxu0 %v2918
  %3329 = vmatpush1.bf16.msra.mxu0 %v2917
  %3330 = vmatprep.subr.bf16.mxu0 %v2920
  %3331 = vmatpush1.bf16.msra.mxu0 %v2919
  %3332 = vmatprep.subr.bf16.mxu0 %v2922
  %3333 = vmatpush1.bf16.msra.mxu0 %v2921
  %3334 = vmatprep.subr.bf16.mxu0 %v2924
  %3335 = vmatpush1.bf16.msra.mxu0 %v2923
  %3336 = vmatprep.subr.bf16.mxu0 %v2926
  %3337 = vmatpush1.bf16.msra.mxu0 %v2925
  %3338 = vmatprep.subr.bf16.mxu0 %v2928
  %3339 = vmatpush1.bf16.msra.mxu0 %v2927
  %3340 = vmatprep.subr.bf16.mxu0 %v2930
  %3341 = vmatpush1.bf16.msra.mxu0 %v2929
  %3342 = vmatprep.subr.bf16.mxu0 %v2932
  %3343 = vmatpush1.bf16.msra.mxu0 %v2931
  %3344 = vmatprep.subr.bf16.mxu0 %v2934
  %3345 = vmatpush1.bf16.msra.mxu0 %v2933
  %3346 = vmatprep.subr.bf16.mxu0 %v2936
  %3347 = vmatpush1.bf16.msra.mxu0 %v2935
  %3348 = vmatprep.mubr.bf16.mxu0 %v733
  %3349 = vmatmul.mubr.bf16.gmra.mrb[0].mxu0 %v732
  %v3350 = vpop.f32.mrb[0].mxu0
  %v3351 = vadd.f32 %v3278, %v3350
  %v3352 = vpop.f32.mrb[0].mxu0
  %v3353 = vadd.f32 %v3280, %v3352
  %v3354 = vpop.f32.mrb[0].mxu0
  %v3355 = vadd.f32 %v3282, %v3354
  %v3356 = vpop.f32.mrb[0].mxu0
  %v3357 = vadd.f32 %v3284, %v3356
  %3358 = vmatprep.mubr.bf16.mxu0 %v742
  %3359 = vmatmul.mubr.bf16.gmra.mrb[0].mxu0 %v741
  %v3360 = vpop.f32.mrb[0].mxu0
  %v3361 = vadd.f32 %v3288, %v3360
  %v3362 = vpop.f32.mrb[0].mxu0
  %v3363 = vadd.f32 %v3290, %v3362
  %v3364 = vpop.f32.mrb[0].mxu0
  %v3365 = vadd.f32 %v3292, %v3364
  %v3366 = vpop.f32.mrb[0].mxu0
  %v3367 = vadd.f32 %v3294, %v3366
  %3368 = vmatprep.mubr.bf16.mxu0 %v751
  %3369 = vmatmul.mubr.bf16.gmra.mrb[0].mxu0 %v750
  %v3370 = vpop.f32.mrb[0].mxu0
  %v3371 = vadd.f32 %v3298, %v3370
  %v3372 = vpop.f32.mrb[0].mxu0
  %v3373 = vadd.f32 %v3300, %v3372
  %v3374 = vpop.f32.mrb[0].mxu0
  %v3375 = vadd.f32 %v3302, %v3374
  %v3376 = vpop.f32.mrb[0].mxu0
  %v3377 = vadd.f32 %v3304, %v3376
  %3378 = vmatprep.mubr.bf16.mxu0 %v760
  %3379 = vmatmul.mubr.bf16.gmra.mrb[0].mxu0 %v759
  %v3380 = vpop.f32.mrb[0].mxu0
  %v3381 = vadd.f32 %v3308, %v3380
  %v3382 = vpop.f32.mrb[0].mxu0
  %v3383 = vadd.f32 %v3310, %v3382
  %v3384 = vpop.f32.mrb[0].mxu0
  %v3385 = vadd.f32 %v3312, %v3384
  %v3386 = vpop.f32.mrb[0].mxu0
  %v3387 = vadd.f32 %v3314, %v3386
  %3388 = vdwg.mxu0
  %3389 = vmatprep.subr.bf16.mxu0 %v2938
  %3390 = vmatpush1.bf16.msra.mxu0 %v2937
  %3391 = vmatprep.subr.bf16.mxu0 %v2940
  %3392 = vmatpush1.bf16.msra.mxu0 %v2939
  %3393 = vmatprep.subr.bf16.mxu0 %v2942
  %3394 = vmatpush1.bf16.msra.mxu0 %v2941
  %3395 = vmatprep.subr.bf16.mxu0 %v2944
  %3396 = vmatpush1.bf16.msra.mxu0 %v2943
  %3397 = vmatprep.subr.bf16.mxu0 %v2946
  %3398 = vmatpush1.bf16.msra.mxu0 %v2945
  %3399 = vmatprep.subr.bf16.mxu0 %v2948
  %3400 = vmatpush1.bf16.msra.mxu0 %v2947
  %3401 = vmatprep.subr.bf16.mxu0 %v2950
  %3402 = vmatpush1.bf16.msra.mxu0 %v2949
  %3403 = vmatprep.subr.bf16.mxu0 %v2952
  %3404 = vmatpush1.bf16.msra.mxu0 %v2951
  %3405 = vmatprep.subr.bf16.mxu0 0
  %3406 = vmatpush1.bf16.msra.mxu0 0
  %3407 = vmatprep.subr.bf16.mxu0 0
  %3408 = vmatpush1.bf16.msra.mxu0 0
  %3409 = vmatprep.subr.bf16.mxu0 0
  %3410 = vmatpush1.bf16.msra.mxu0 0
  %3411 = vmatprep.subr.bf16.mxu0 0
  %3412 = vmatpush1.bf16.msra.mxu0 0
  %3413 = vmatprep.subr.bf16.mxu0 0
  %3414 = vmatpush1.bf16.msra.mxu0 0
  %3415 = vmatprep.subr.bf16.mxu0 0
  %3416 = vmatpush1.bf16.msra.mxu0 0
  %3417 = vmatprep.subr.bf16.mxu0 0
  %3418 = vmatpush1.bf16.msra.mxu0 0
  %3419 = vmatprep.subr.bf16.mxu0 0
  %3420 = vmatpush1.bf16.msra.mxu0 0
  %3421 = vmatprep.mubr.bf16.mxu0 0
  %3422 = vmatmul.mubr.bf16.gmra.mrb[0].mxu0 %v734
  %v3423 = vpop.f32.mrb[0].mxu0
  %v3424 = vadd.f32 %v3351, %v3423
  %v3425 = vpop.f32.mrb[0].mxu0
  %v3426 = vadd.f32 %v3353, %v3425
  %v3427 = vpop.f32.mrb[0].mxu0
  %v3428 = vadd.f32 %v3355, %v3427
  %v3429 = vpop.f32.mrb[0].mxu0
  %v3430 = vadd.f32 %v3357, %v3429
  %3431 = vmatprep.mubr.bf16.mxu0 0
  %3432 = vmatmul.mubr.bf16.gmra.mrb[0].mxu0 %v743
  %v3433 = vpop.f32.mrb[0].mxu0
  %v3434 = vadd.f32 %v3361, %v3433
  %v3435 = vpop.f32.mrb[0].mxu0
  %v3436 = vadd.f32 %v3363, %v3435
  %v3437 = vpop.f32.mrb[0].mxu0
  %v3438 = vadd.f32 %v3365, %v3437
  %v3439 = vpop.f32.mrb[0].mxu0
  %v3440 = vadd.f32 %v3367, %v3439
  %3441 = vmatprep.mubr.bf16.mxu0 0
  %3442 = vmatmul.mubr.bf16.gmra.mrb[0].mxu0 %v752
  %v3443 = vpop.f32.mrb[0].mxu0
  %v3444 = vadd.f32 %v3371, %v3443
  %v3445 = vpop.f32.mrb[0].mxu0
  %v3446 = vadd.f32 %v3373, %v3445
  %v3447 = vpop.f32.mrb[0].mxu0
  %v3448 = vadd.f32 %v3375, %v3447
  %v3449 = vpop.f32.mrb[0].mxu0
  %v3450 = vadd.f32 %v3377, %v3449
  %3451 = vmatprep.mubr.bf16.mxu0 0
  %3452 = vmatmul.mubr.bf16.gmra.mrb[0].mxu0 %v761
  %v3453 = vpop.f32.mrb[0].mxu0
  %v3454 = vadd.f32 %v3381, %v3453
  %v3455 = vpop.f32.mrb[0].mxu0
  %v3456 = vadd.f32 %v3383, %v3455
  %v3457 = vpop.f32.mrb[0].mxu0
  %v3458 = vadd.f32 %v3385, %v3457
  %v3459 = vpop.f32.mrb[0].mxu0
  %v3460 = vadd.f32 %v3387, %v3459
  %3461 = vdwg.mxu0
  %v3462 = vld [vmem:[%s4] sm:$0x3]
  %v3464 = vlaneseq
  %v3465 = vshrl.u32 %v3464, 7
  %v3466 = vsub.s32 0, %v3465
  %v3467 = vrot.slane %v3462, %v3466
  %v3468 = vlaneseq
  %v3469 = vshrl.u32 %v3468, 7
  %v3470 = vsub.s32 1, %v3469
  %v3471 = vrot.slane %v3462, %v3470
  %v3474 = vadd.f32 %v3424, %v3467
  %v3475 = vadd.f32 %v3426, %v3471
  %v3476 = vadd.f32 %v3428, %v3467
  %v3477 = vadd.f32 %v3430, %v3471
  %v3478 = vadd.f32 %v3434, %v3467
  %v3479 = vadd.f32 %v3436, %v3471
  %v3480 = vadd.f32 %v3438, %v3467
  %v3481 = vadd.f32 %v3440, %v3471
  %v3482 = vadd.f32 %v3444, %v3467
  %v3483 = vadd.f32 %v3446, %v3471
  %v3484 = vadd.f32 %v3448, %v3467
  %v3485 = vadd.f32 %v3450, %v3471
  %v3486 = vadd.f32 %v3454, %v3467
  %v3487 = vadd.f32 %v3456, %v3471
  %v3488 = vadd.f32 %v3458, %v3467
  %v3489 = vadd.f32 %v3460, %v3471
  %vm3490 = vcmp.gt.f32.partialorder %v3474, 0.0
  %vm3491 = vcmp.gt.f32.partialorder %v3475, 0.0
  %vm3492 = vcmp.gt.f32.partialorder %v3476, 0.0
  %vm3493 = vcmp.gt.f32.partialorder %v3477, 0.0
  %vm3494 = vcmp.gt.f32.partialorder %v3478, 0.0
  %vm3495 = vcmp.gt.f32.partialorder %v3479, 0.0
  %vm3496 = vcmp.gt.f32.partialorder %v3480, 0.0
  %vm3497 = vcmp.gt.f32.partialorder %v3481, 0.0
  %vm3498 = vcmp.gt.f32.partialorder %v3482, 0.0
  %vm3499 = vcmp.gt.f32.partialorder %v3483, 0.0
  %vm3500 = vcmp.gt.f32.partialorder %v3484, 0.0
  %vm3501 = vcmp.gt.f32.partialorder %v3485, 0.0
  %vm3502 = vcmp.gt.f32.partialorder %v3486, 0.0
  %vm3503 = vcmp.gt.f32.partialorder %v3487, 0.0
  %vm3504 = vcmp.gt.f32.partialorder %v3488, 0.0
  %vm3505 = vcmp.gt.f32.partialorder %v3489, 0.0
  %v3506 = vmul.f32 %v3474, 0.2
  %v3507 = vmul.f32 %v3475, 0.2
  %v3508 = vmul.f32 %v3476, 0.2
  %v3509 = vmul.f32 %v3477, 0.2
  %v3510 = vmul.f32 %v3478, 0.2
  %v3511 = vmul.f32 %v3479, 0.2
  %v3512 = vmul.f32 %v3480, 0.2
  %v3513 = vmul.f32 %v3481, 0.2
  %v3514 = vmul.f32 %v3482, 0.2
  %v3515 = vmul.f32 %v3483, 0.2
  %v3516 = vmul.f32 %v3484, 0.2
  %v3517 = vmul.f32 %v3485, 0.2
  %v3518 = vmul.f32 %v3486, 0.2
  %v3519 = vmul.f32 %v3487, 0.2
  %v3520 = vmul.f32 %v3488, 0.2
  %v3521 = vmul.f32 %v3489, 0.2
  %v3522 = vsel %vm3490, %v3474, %v3506
  %v3523 = vsel %vm3491, %v3475, %v3507
  %v3524 = vsel %vm3492, %v3476, %v3508
  %v3525 = vsel %vm3493, %v3477, %v3509
  %v3526 = vsel %vm3494, %v3478, %v3510
  %v3527 = vsel %vm3495, %v3479, %v3511
  %v3528 = vsel %vm3496, %v3480, %v3512
  %v3529 = vsel %vm3497, %v3481, %v3513
  %v3530 = vsel %vm3498, %v3482, %v3514
  %v3531 = vsel %vm3499, %v3483, %v3515
  %v3532 = vsel %vm3500, %v3484, %v3516
  %v3533 = vsel %vm3501, %v3485, %v3517
  %v3534 = vsel %vm3502, %v3486, %v3518
  %v3535 = vsel %vm3503, %v3487, %v3519
  %v3536 = vsel %vm3504, %v3488, %v3520
  %v3537 = vsel %vm3505, %v3489, %v3521
  %v3538 = vadd.f32 %v3522, %v3524
  %v3539 = vadd.f32 %v3538, %v3526
  %v3540 = vadd.f32 %v3539, %v3528
  %v3541 = vrot.slane %v3540, 4
  %v3542 = vadd.f32 %v3540, %v3541
  %v3543 = vrot.slane %v3542, 2
  %v3544 = vadd.f32 %v3542, %v3543
  %v3545 = vrot.slane %v3544, 1
  %v3546 = vadd.f32 %v3544, %v3545
  %v3547 = vadd.f32 %v3523, %v3525
  %v3548 = vadd.f32 %v3547, %v3527
  %v3549 = vadd.f32 %v3548, %v3529
  %v3550 = vrot.slane %v3549, 4
  %v3551 = vadd.f32 %v3549, %v3550
  %v3552 = vrot.slane %v3551, 2
  %v3553 = vadd.f32 %v3551, %v3552
  %v3554 = vrot.slane %v3553, 1
  %v3555 = vadd.f32 %v3553, %v3554
  %v3556 = vld [vmem:[%s5] sm:$0x3]
  %v3558 = vlaneseq
  %v3559 = vshrl.u32 %v3558, 7
  %v3560 = vsub.s32 0, %v3559
  %v3561 = vrot.slane %v3556, %v3560
  %v3562 = vlaneseq
  %v3563 = vshrl.u32 %v3562, 7
  %v3564 = vsub.s32 1, %v3563
  %v3565 = vrot.slane %v3556, %v3564
  %v3568 = vmul.f32 %v3546, %v3561
  %v3569 = vmul.f32 %v3555, %v3565
  %vm3570 = vcmask 1040384
  %v3571 = vsel %vm3570, %v3568, 0.0
  %v3572 = vsel %vm3570, %v3569, 0.0
  %v3573 = vadd.f32 %v3571, %v3572
  %3574 = vadd.xlane.f32.xlu0 %v3573
  %v3575 = vpop.xlane.xlu0 %3574
  %v3576 = vmul.f32 %v3575, 0.03125
  %s3577 = sld [smem:[#allocation5]]
  %v3578 = vstv %s3577
  %v3579 = vadd.f32 %v3576, %v3578
  %3580 = vst [vmem:[%s7] sm:$0x1] %v3579
  %v3581 = vadd.f32 %v3530, %v3532
  %v3582 = vadd.f32 %v3581, %v3534
  %v3583 = vadd.f32 %v3582, %v3536
  %v3584 = vrot.slane %v3583, 4
  %v3585 = vadd.f32 %v3583, %v3584
  %v3586 = vrot.slane %v3585, 2
  %v3587 = vadd.f32 %v3585, %v3586
  %v3588 = vrot.slane %v3587, 1
  %v3589 = vadd.f32 %v3587, %v3588
  %v3590 = vadd.f32 %v3531, %v3533
  %v3591 = vadd.f32 %v3590, %v3535
  %v3592 = vadd.f32 %v3591, %v3537
  %v3593 = vrot.slane %v3592, 4
  %v3594 = vadd.f32 %v3592, %v3593
  %v3595 = vrot.slane %v3594, 2
  %v3596 = vadd.f32 %v3594, %v3595
  %v3597 = vrot.slane %v3596, 1
  %v3598 = vadd.f32 %v3596, %v3597
  %v3599 = vld [vmem:[%s5] sm:$0x3]
  %v3601 = vlaneseq
  %v3602 = vshrl.u32 %v3601, 7
  %v3603 = vsub.s32 0, %v3602
  %v3604 = vrot.slane %v3599, %v3603
  %v3605 = vlaneseq
  %v3606 = vshrl.u32 %v3605, 7
  %v3607 = vsub.s32 1, %v3606
  %v3608 = vrot.slane %v3599, %v3607
  %v3611 = vmul.f32 %v3589, %v3604
  %v3612 = vmul.f32 %v3598, %v3608
  %v3613 = vsel %vm3570, %v3611, 0.0
  %v3614 = vsel %vm3570, %v3612, 0.0
  %v3615 = vadd.f32 %v3613, %v3614
  %3616 = vadd.xlane.f32.xlu0 %v3615
  %v3617 = vpop.xlane.xlu0 %3616
  %v3618 = vmul.f32 %v3617, 0.03125
  %s3619 = sld [smem:[#allocation5]]
  %v3620 = vstv %s3619
  %v3621 = vadd.f32 %v3618, %v3620
  %s3622 = scalar_lea.vmem %s7, 1
  %3623 = vst [vmem:[%s3622] sm:$0x1] %v3621
  // Predicated region
  $region30: #{_disc_forward_impl.1} parent=0 // pred_check
    _
  $region31: #{_disc_forward_impl.1} parent=0 // pred_check_branch
    %3625 = sbr.rel (0) target = $region33
  $region32: #{_disc_forward_impl.1} parent=0 // pred_region
    _
  $region33: #{_disc_forward_impl.1} parent=0 // pred_fallthru
    _
  // Predicated region
  $region34: #{_disc_forward_impl.1} parent=0 // pred_check
    _
  $region35: #{_disc_forward_impl.1} parent=0 // pred_check_branch
    %3627 = sbr.rel (0) target = $region37
  $region36: #{_disc_forward_impl.1} parent=0 // pred_region
    _
  $region37: #{_disc_forward_impl.1} parent=0 // pred_fallthru
    _

</llo_original>
